<compile_context>
chip_gen: v7x
topology: tpu7x:2x2x1
jax: 0.10.0
libtpu: 0.0.40
codegen_flags: <defaults>
</compile_context>

<pallas_src>
import jax
import jax.numpy as jnp
from jax.experimental import pallas as pl
from jax.experimental.pallas import tpu as pltpu


# ----------------------------- hardware budget ------------------------------

def _vmem_physical_bytes():
    """Physical VMEM of the current generation (v5e/v6e: 128 MiB, v7x: 64 MiB/TC)."""
    try:
        return int(pltpu.get_tpu_info().vmem_capacity_bytes)
    except Exception:
        return 64 * 1024 * 1024            # conservative fallback (v7x per-TC)


def _pick_tile_h(h, w, cin, cout, in_bytes, comp_bytes, budget_bytes):
    """Largest row-tile height (divisor of h, multiples of 8 preferred) whose
    per-grid-step VMEM working set fits the per-generation budget."""
    def est(th):
        b = (h + 2) * w * cin * comp_bytes            # persistent padded scratch
        b += 2 * h * w * cin * in_bytes               # double-buffered image input block(s)
        b += 2 * 9 * cin * cout * comp_bytes          # double-buffered conv weights
        b += 2 * th * w * cout * comp_bytes           # double-buffered output tile
        b += th * w * 3 * cin * comp_bytes            # im2col slab (one kh live at a time)
        b += th * w * cin * comp_bytes                # row band
        b += 2 * th * w * cout * 4                    # f32 accumulator + stat temps
        return b
    cands = [t for t in range(h, 0, -1) if h % t == 0]
    for th in [t for t in cands if t % 8 == 0] + cands:
        if est(th) <= budget_bytes:
            return th
    return cands[-1]


def _compiler_params(vmem_limit_bytes):
    return pltpu.CompilerParams(
        dimension_semantics=("parallel", "arbitrary"),
        vmem_limit_bytes=int(vmem_limit_bytes))


# --------------------------- in-kernel conv tile ----------------------------

def _conv3x3_tile(xpad_ref, wp_ref, b_ref, t, tile_h):
    """relu(conv3x3(x) + b) for output rows [t*tile_h, (t+1)*tile_h), f32 accum.

    xpad_ref: (H+2, W, Cin) scratch; rows 0 and H+1 are zero, rows 1..H hold the
              (already affine-normalized) conv input.  The left/right zero
              columns of SAME padding are synthesized here during slab
              construction (so the scratch never needs sublane-offset stores).
    wp_ref  : (3, 3*Cin, Cout) -- K index = kw*Cin + ci (kw taps folded into K).
    b_ref   : (1, Cout) f32.
    """
    _, w, cin = xpad_ref.shape
    cout = wp_ref.shape[-1]
    r0 = pl.multiple_of(t * tile_h, tile_h)
    zcol = jnp.zeros((tile_h, 1, cin), xpad_ref.dtype)   # hoisted out of the kh loop

    acc = jnp.zeros((tile_h * w, cout), jnp.float32)
    for kh in range(3):                                   # 3 wide MXU matmuls, K = 3*Cin
        rows = xpad_ref[pl.ds(r0 + kh, tile_h), :, :]     # (tile_h, W, Cin)
        left = jnp.concatenate([zcol, rows[:, :w - 1, :]], axis=1)    # kw = 0 taps
        right = jnp.concatenate([rows[:, 1:, :], zcol], axis=1)       # kw = 2 taps
        slab = jnp.concatenate([left, rows, right], axis=-1)          # (th, W, 3*Cin)
        acc = acc + jnp.dot(slab.reshape(tile_h * w, 3 * cin), wp_ref[kh],
                            preferred_element_type=jnp.float32)
    acc = acc + b_ref[...]
    return jnp.maximum(acc, 0.0)                          # ReLU (before BN, as in module)


def _emit_tile(acc, y_ref, stats_ref):
    _, th, w, cout = y_ref.shape
    y_ref[...] = acc.reshape(1, th, w, cout).astype(y_ref.dtype)
    # Per-tile (mean, M2) partials of the post-ReLU activation; combined
    # Chan/Welford-style in the wrapper (avoids E[x^2]-E[x]^2 cancellation).
    cnt = acc.shape[0]
    mean_t = jnp.sum(acc, axis=0, keepdims=True) * (1.0 / cnt)
    m2_t = jnp.sum(jnp.square(acc - mean_t), axis=0, keepdims=True)
    stats_ref[0, 0, 0:1, :] = mean_t
    stats_ref[0, 0, 1:2, :] = m2_t


# ------------------------------- conv kernels -------------------------------

def _conv1_kernel(x1u_ref, x2_ref, wp_ref, b_ref, y_ref, stats_ref, xpad_ref):
    """Stage 1: concat(x1_up, x2) assembled into the padded VMEM scratch once per
    batch element, conv3x3 + bias + ReLU per row tile, BN1 partial stats."""
    t = pl.program_id(1)
    hp, w, cin = xpad_ref.shape
    h = hp - 2
    c1 = x1u_ref.shape[-1]
    tile_h = y_ref.shape[1]

    @pl.when(t == 0)                                      # assemble once per batch element
    def _():
        zrow = jnp.zeros((1, w, cin), xpad_ref.dtype)
        xpad_ref[0:1, :, :] = zrow                        # only the border rows are zeroed
        xpad_ref[h + 1:h + 2, :, :] = zrow
        xpad_ref[1:h + 1, :, 0:c1] = x1u_ref[0]           # channel concat happens here
        xpad_ref[1:h + 1, :, c1:cin] = x2_ref[0]

    acc = _conv3x3_tile(xpad_ref, wp_ref, b_ref, t, tile_h)
    _emit_tile(acc, y_ref, stats_ref)


def _conv2_kernel(y1_ref, scale_ref, shift_ref, wp_ref, b_ref,
                  y_ref, stats_ref, xpad_ref):
    """Stage 2: BN1 affine applied on the load path (zero rows preserved ==
    pad(bn1(y1))), conv3x3 + bias + ReLU per row tile, BN2 partial stats."""
    t = pl.program_id(1)
    hp, w, cin = xpad_ref.shape
    h = hp - 2
    tile_h = y_ref.shape[1]

    @pl.when(t == 0)
    def _():
        zrow = jnp.zeros((1, w, cin), xpad_ref.dtype)
        xpad_ref[0:1, :, :] = zrow
        xpad_ref[h + 1:h + 2, :, :] = zrow
        xpad_ref[1:h + 1, :, :] = (
            y1_ref[0].astype(jnp.float32) * scale_ref[...] + shift_ref[...]
        ).astype(xpad_ref.dtype)

    acc = _conv3x3_tile(xpad_ref, wp_ref, b_ref, t, tile_h)
    _emit_tile(acc, y_ref, stats_ref)


# --------------------------------- wrappers ---------------------------------

def conv1_relu_stats(x1u, x2, w_hwio, bias):
    n, h, w, c1 = x1u.shape
    c2 = x2.shape[-1]
    cin = c1 + c2
    cout = w_hwio.shape[-1]
    comp = x1u.dtype
    comp_b = jnp.dtype(comp).itemsize
    phys = _vmem_physical_bytes()
    th = _pick_tile_h(h, w, cin, cout, comp_b, comp_b, int(0.6 * phys))
    tgrid = h // th
    wp = w_hwio.astype(comp).reshape(3, 3 * cin, cout)    # kw taps stacked along K
    return pl.pallas_call(
        _conv1_kernel,
        out_shape=(jax.ShapeDtypeStruct((n, h, w, cout), comp),
                   jax.ShapeDtypeStruct((n, tgrid, 2, cout), jnp.float32)),
        grid=(n, tgrid),
        in_specs=[
            pl.BlockSpec((1, h, w, c1), lambda i, t: (i, 0, 0, 0)),
            pl.BlockSpec((1, h, w, c2), lambda i, t: (i, 0, 0, 0)),
            pl.BlockSpec((3, 3 * cin, cout), lambda i, t: (0, 0, 0)),
            pl.BlockSpec((1, cout), lambda i, t: (0, 0)),
        ],
        out_specs=(
            pl.BlockSpec((1, th, w, cout), lambda i, t: (i, t, 0, 0)),
            pl.BlockSpec((1, 1, 2, cout), lambda i, t: (i, t, 0, 0)),
        ),
        scratch_shapes=[pltpu.VMEM((h + 2, w, cin), comp)],
        compiler_params=_compiler_params(0.75 * phys),
    )(x1u, x2, wp, bias.astype(jnp.float32).reshape(1, cout))


def conv2_relu_stats(y1, scale, shift, w_hwio, bias):
    n, h, w, cin = y1.shape
    cout = w_hwio.shape[-1]
    comp = y1.dtype
    comp_b = jnp.dtype(comp).itemsize
    phys = _vmem_physical_bytes()
    th = _pick_tile_h(h, w, cin, cout, comp_b, comp_b, int(0.6 * phys))
    tgrid = h // th
    wp = w_hwio.astype(comp).reshape(3, 3 * cin, cout)
    return pl.pallas_call(
        _conv2_kernel,
        out_shape=(jax.ShapeDtypeStruct((n, h, w, cout), comp),
                   jax.ShapeDtypeStruct((n, tgrid, 2, cout), jnp.float32)),
        grid=(n, tgrid),
        in_specs=[
            pl.BlockSpec((1, h, w, cin), lambda i, t: (i, 0, 0, 0)),
            pl.BlockSpec((1, cin), lambda i, t: (0, 0)),
            pl.BlockSpec((1, cin), lambda i, t: (0, 0)),
            pl.BlockSpec((3, 3 * cin, cout), lambda i, t: (0, 0, 0)),
            pl.BlockSpec((1, cout), lambda i, t: (0, 0)),
        ],
        out_specs=(
            pl.BlockSpec((1, th, w, cout), lambda i, t: (i, t, 0, 0)),
            pl.BlockSpec((1, 1, 2, cout), lambda i, t: (i, t, 0, 0)),
        ),
        scratch_shapes=[pltpu.VMEM((h + 2, w, cin), comp)],
        compiler_params=_compiler_params(0.75 * phys),
    )(y1, scale.astype(jnp.float32).reshape(1, cin),
      shift.astype(jnp.float32).reshape(1, cin),
      wp, bias.astype(jnp.float32).reshape(1, cout))


def _bn_affine_from_stats(stats, per_tile_count, gamma, beta, eps=1e-5):
    """Training-mode BN (biased variance) folded to a per-channel affine.
    stats: (N, T, 2, C) with per-tile [mean, M2]; all tiles have per_tile_count
    elements.  Combined with Chan's parallel algorithm (equal counts)."""
    means = stats[:, :, 0, :]
    m2s = stats[:, :, 1, :]
    n_tiles = means.shape[0] * means.shape[1]
    total = n_tiles * per_tile_count
    mean = jnp.mean(means, axis=(0, 1))
    m2 = (jnp.sum(m2s, axis=(0, 1))
          + per_tile_count * jnp.sum(jnp.square(means - mean), axis=(0, 1)))
    var = m2 / total
    inv = jax.lax.rsqrt(var + eps)
    scale = gamma * inv
    shift = beta - mean * scale
    return scale, shift


def _interp_matrix(n_in, n_out):
    """PyTorch align_corners=True linear interpolation matrix (n_out, n_in)."""
    if n_in == 1:
        return jnp.ones((n_out, 1), jnp.float32)
    pos = jnp.arange(n_out, dtype=jnp.float32) * (n_in - 1) / (n_out - 1)
    lo = jnp.clip(jnp.floor(pos).astype(jnp.int32), 0, n_in - 2)
    frac = pos - lo.astype(jnp.float32)
    return (jax.nn.one_hot(lo, n_in, dtype=jnp.float32) * (1.0 - frac)[:, None]
            + jax.nn.one_hot(lo + 1, n_in, dtype=jnp.float32) * frac[:, None])


def bilinear_upsample_2x(x_nhwc):
    # Two tiny matmuls on the small pre-upsample tensor; not the hot path.
    # TODO(synk): fuse the Ah/Aw interpolation into conv1's scratch assembly to
    # drop the 4x-sized x1u HBM round trip entirely.
    N, H, W, C = x_nhwc.shape
    Ah = _interp_matrix(H, 2 * H)
    Aw = _interp_matrix(W, 2 * W)
    return jnp.einsum('ih,jw,nhwc->nijc', Ah, Aw, x_nhwc)


def decoder_block_forward(params, x1_nchw, x2_nchw, *, compute_dtype=jnp.bfloat16):
    # NCHW (PyTorch) -> NHWC (kernel layout)
    x1 = jnp.transpose(x1_nchw, (0, 2, 3, 1))
    x2 = jnp.transpose(x2_nchw, (0, 2, 3, 1))
    # Upsample in f32, then emit x1u / x2 in the compute dtype (halves the HBM
    # round trips feeding conv1 when compute_dtype is bf16).
    x1u = bilinear_upsample_2x(x1).astype(compute_dtype)
    x2c = x2.astype(compute_dtype)

    n, h, w, _ = x1u.shape

    # conv1 + relu (+ BN1 stats); concat & padding handled inside the kernel.
    y1, stats1 = conv1_relu_stats(x1u, x2c, params['w1'], params['b1'])
    scale1, shift1 = _bn_affine_from_stats(
        stats1, (h // stats1.shape[1]) * w, params['g1'], params['beta1'])

    # conv2 + relu (+ BN2 stats); BN1 affine applied on conv2's load path.
    y2, stats2 = conv2_relu_stats(y1, scale1, shift1, params['w2'], params['b2'])
    scale2, shift2 = _bn_affine_from_stats(
        stats2, (h // stats2.shape[1]) * w, params['g2'], params['beta2'])

    # BN2 affine fused (by XLA) into the NHWC->NCHW transpose needed anyway.
    out = jnp.transpose(y2.astype(jnp.float32), (0, 3, 1, 2))
    return out * scale2[None, :, None, None] + shift2[None, :, None, None]


def init_params(key, in_channels, out_channels):
    k = jax.random.split(key, 8)
    return dict(
        w1=0.1 * jax.random.normal(k[0], (3, 3, in_channels, out_channels), jnp.float32),
        b1=0.1 * jax.random.normal(k[1], (out_channels,), jnp.float32),
        g1=1.0 + 0.1 * jax.random.normal(k[2], (out_channels,), jnp.float32),
        beta1=0.1 * jax.random.normal(k[3], (out_channels,), jnp.float32),
        w2=0.1 * jax.random.normal(k[4], (3, 3, out_channels, out_channels), jnp.float32),
        b2=0.1 * jax.random.normal(k[5], (out_channels,), jnp.float32),
        g2=1.0 + 0.1 * jax.random.normal(k[6], (out_channels,), jnp.float32),
        beta2=0.1 * jax.random.normal(k[7], (out_channels,), jnp.float32),
    )


# ----------------------- pure-JAX reference (sanity) ------------------------

def reference_forward(params, x1_nchw, x2_nchw):
    x1 = jnp.transpose(x1_nchw, (0, 2, 3, 1))
    x2 = jnp.transpose(x2_nchw, (0, 2, 3, 1))
    x1u = bilinear_upsample_2x(x1)
    x = jnp.concatenate([x1u, x2], axis=-1)

    def conv(x, w, b):
        y = jax.lax.conv_general_dilated(
            x, w, window_strides=(1, 1), padding='SAME',
            dimension_numbers=('NHWC', 'HWIO', 'NHWC'))
        return jax.nn.relu(y + b)

    def bn(x, g, shift):
        mean = jnp.mean(x, axis=(0, 1, 2), keepdims=True)
        var = jnp.mean((x - mean) ** 2, axis=(0, 1, 2), keepdims=True)
        return (x - mean) * jax.lax.rsqrt(var + 1e-5) * g + shift

    x = bn(conv(x, params['w1'], params['b1']), params['g1'], params['beta1'])
    x = bn(conv(x, params['w2'], params['b2']), params['g2'], params['beta2'])
    return jnp.transpose(x, (0, 3, 1, 2))


if __name__ == "__main__":
    key = jax.random.PRNGKey(0)
    in_channels, out_channels = 8, 8        # concat channels = 8 (4 from x1, 4 from x2)
    N, H, W = 2, 8, 8                       # x1 spatial; x2 is at 2x resolution

    kx1, kx2, kp = jax.random.split(key, 3)
    x1 = jax.random.normal(kx1, (N, in_channels // 2, H, W), jnp.float32)
    x2 = jax.random.normal(kx2, (N, in_channels // 2, 2 * H, 2 * W), jnp.float32)
    params = init_params(kp, in_channels, out_channels)

    fwd_bf16 = jax.jit(lambda p, a, b: decoder_block_forward(p, a, b, compute_dtype=jnp.bfloat16))
    fwd_f32 = jax.jit(lambda p, a, b: decoder_block_forward(p, a, b, compute_dtype=jnp.float32))

    out_bf16 = jax.block_until_ready(fwd_bf16(params, x1, x2))
    out_f32 = jax.block_until_ready(fwd_f32(params, x1, x2))
    assert out_bf16.shape == (N, out_channels, 2 * H, 2 * W)
    assert out_f32.shape == (N, out_channels, 2 * H, 2 * W)

    ref = reference_forward(params, x1, x2)

    # f32 compute path: exact-semantics check.
    err32 = float(jnp.max(jnp.abs(out_f32 - ref)))
    assert jnp.allclose(out_f32, ref, rtol=2e-3, atol=2e-3), f"f32 max abs err {err32}"
    # bf16 compute path (default / fast): tolerance budget for a 2x(conv+BN)
    # chain in bf16 with f32 accumulation.
    err16 = float(jnp.max(jnp.abs(out_bf16 - ref)))
    assert jnp.allclose(out_bf16, ref, rtol=5e-2, atol=1.5e-1), f"bf16 max abs err {err16}"

    print("KERNEL_OK")
</pallas_src>

<mosaic_0001>
module attributes {stable_mosaic.version = 11 : i64} {
  func.func @_conv1_kernel(%arg0: i32, %arg1: i32, %arg2: memref<1x16x16x4xbf16, #tpu.memory_space<vmem>>, %arg3: memref<1x16x16x4xbf16, #tpu.memory_space<vmem>>, %arg4: memref<3x24x8xbf16, #tpu.memory_space<vmem>>, %arg5: memref<1x8xf32, #tpu.memory_space<vmem>>, %arg6: memref<1x16x16x8xbf16, #tpu.memory_space<vmem>>, %arg7: memref<1x1x2x8xf32, #tpu.memory_space<vmem>>, %arg8: memref<18x16x8xbf16, #tpu.memory_space<vmem>>) attributes {dimension_semantics = [#tpu.dimension_semantics<parallel>, #tpu.dimension_semantics<arbitrary>], iteration_bounds = array<i64: 2, 1>, scalar_prefetch = 0 : i64, scratch_operands = 1 : i64, tpu.core_type = #tpu.core_type<tc>, window_params = [{transform_indices = @transform_0, window_bounds = array<i64: 1, 16, 16, 4>}, {transform_indices = @transform_1, window_bounds = array<i64: 1, 16, 16, 4>}, {pipeline_mode = #tpu.pipeline_mode<synchronous>, transform_indices = @transform_2, window_bounds = array<i64: 3, 24, 8>}, {pipeline_mode = #tpu.pipeline_mode<synchronous>, transform_indices = @transform_3, window_bounds = array<i64: 1, 8>}, {transform_indices = @transform_4, window_bounds = array<i64: 1, 16, 16, 8>}, {transform_indices = @transform_5, window_bounds = array<i64: 1, 1, 2, 8>}]} {
    %c0_i32 = arith.constant 0 : i32
    %0 = arith.cmpi eq, %arg1, %c0_i32 : i32
    %1 = arith.extui %0 : i1 to i32
    %c0_i32_0 = arith.constant 0 : i32
    %2 = arith.cmpi ne, %1, %c0_i32_0 : i32
    scf.if %2 {
      %cst_36 = arith.constant 0.000000e+00 : bf16
      %69 = vector.broadcast %cst_36 : bf16 to vector<1x16x8xbf16>
      %c0_37 = arith.constant 0 : index
      %c0_38 = arith.constant 0 : index
      %c0_39 = arith.constant 0 : index
      %70 = vector.load %arg8[%c0_37, %c0_38, %c0_39] : memref<18x16x8xbf16, #tpu.memory_space<vmem>>, vector<1x16x8xbf16>
      tpu.vector_store %arg8[%c0_37, %c0_38, %c0_39], %69 {strides = array<i32>} : memref<18x16x8xbf16, #tpu.memory_space<vmem>>, vector<1x16x8xbf16>,
      %c17 = arith.constant 17 : index
      %c0_40 = arith.constant 0 : index
      %c0_41 = arith.constant 0 : index
      %71 = vector.load %arg8[%c17, %c0_40, %c0_41] : memref<18x16x8xbf16, #tpu.memory_space<vmem>>, vector<1x16x8xbf16>
      tpu.vector_store %arg8[%c17, %c0_40, %c0_41], %69 {strides = array<i32>} : memref<18x16x8xbf16, #tpu.memory_space<vmem>>, vector<1x16x8xbf16>,
      %c0_42 = arith.constant 0 : index
      %c0_43 = arith.constant 0 : index
      %c0_44 = arith.constant 0 : index
      %c0_45 = arith.constant 0 : index
      %72 = vector.load %arg2[%c0_42, %c0_43, %c0_44, %c0_45] : memref<1x16x16x4xbf16, #tpu.memory_space<vmem>>, vector<1x16x16x4xbf16>
      %73 = vector.shape_cast %72 : vector<1x16x16x4xbf16> to vector<16x16x4xbf16>
      %c1_46 = arith.constant 1 : index
      %c0_47 = arith.constant 0 : index
      %c0_48 = arith.constant 0 : index
      %74 = vector.load %arg8[%c1_46, %c0_47, %c0_48] : memref<18x16x8xbf16, #tpu.memory_space<vmem>>, vector<16x16x4xbf16>
      tpu.vector_store %arg8[%c1_46, %c0_47, %c0_48], %73 {strides = array<i32>} : memref<18x16x8xbf16, #tpu.memory_space<vmem>>, vector<16x16x4xbf16>,
      %c0_49 = arith.constant 0 : index
      %c0_50 = arith.constant 0 : index
      %c0_51 = arith.constant 0 : index
      %c0_52 = arith.constant 0 : index
      %75 = vector.load %arg3[%c0_49, %c0_50, %c0_51, %c0_52] : memref<1x16x16x4xbf16, #tpu.memory_space<vmem>>, vector<1x16x16x4xbf16>
      %76 = vector.shape_cast %75 : vector<1x16x16x4xbf16> to vector<16x16x4xbf16>
      %c1_53 = arith.constant 1 : index
      %c0_54 = arith.constant 0 : index
      %c4 = arith.constant 4 : index
      %77 = vector.load %arg8[%c1_53, %c0_54, %c4] : memref<18x16x8xbf16, #tpu.memory_space<vmem>>, vector<16x16x4xbf16>
      tpu.vector_store %arg8[%c1_53, %c0_54, %c4], %76 {strides = array<i32>} : memref<18x16x8xbf16, #tpu.memory_space<vmem>>, vector<16x16x4xbf16>,
    } else {
    }
    %c16_i32 = arith.constant 16 : i32
    %3 = arith.muli %arg1, %c16_i32 : i32
    %4 = tpu.assume_multiple %3, 16 : i32
    %cst = arith.constant 0.000000e+00 : bf16
    %5 = vector.broadcast %cst : bf16 to vector<16x1x8xbf16>
    %cst_1 = arith.constant 0.000000e+00 : f32
    %6 = vector.broadcast %cst_1 : f32 to vector<256x8xf32>
    %c0_i32_2 = arith.constant 0 : i32
    %7 = arith.addi %4, %c0_i32_2 : i32
    %8 = arith.index_cast %7 : i32 to index
    %c0 = arith.constant 0 : index
    %c0_3 = arith.constant 0 : index
    %9 = vector.load %arg8[%8, %c0, %c0_3] : memref<18x16x8xbf16, #tpu.memory_space<vmem>>, vector<16x16x8xbf16>
    %10 = vector.extract_strided_slice %9 {offsets = [0, 0, 0], sizes = [16, 15, 8], strides = [1, 1, 1]} : vector<16x16x8xbf16> to vector<16x15x8xbf16>
    %11 = tpu.concatenate %5, %10 in 1 : vector<16x1x8xbf16>, vector<16x15x8xbf16> -> vector<16x16x8xbf16>
    %12 = vector.extract_strided_slice %9 {offsets = [0, 1, 0], sizes = [16, 15, 8], strides = [1, 1, 1]} : vector<16x16x8xbf16> to vector<16x15x8xbf16>
    %13 = tpu.concatenate %12, %5 in 1 : vector<16x15x8xbf16>, vector<16x1x8xbf16> -> vector<16x16x8xbf16>
    %14 = tpu.concatenate %11, %9, %13 in 2 : vector<16x16x8xbf16>, vector<16x16x8xbf16>, vector<16x16x8xbf16> -> vector<16x16x24xbf16>
    %15 = vector.shape_cast %14 : vector<16x16x24xbf16> to vector<256x24xbf16>
    %c0_4 = arith.constant 0 : index
    %c0_5 = arith.constant 0 : index
    %c0_6 = arith.constant 0 : index
    %16 = vector.load %arg4[%c0_4, %c0_5, %c0_6] : memref<3x24x8xbf16, #tpu.memory_space<vmem>>, vector<1x24x8xbf16>
    %17 = vector.shape_cast %16 : vector<1x24x8xbf16> to vector<24x8xbf16>
    %cst_7 = arith.constant dense<0.000000e+00> : vector<256x8xf32>
    %18 = tpu.matmul %15, %17, %cst_7 {dimension_numbers = #tpu.dot_dimension_numbers<[1], [0], [0], [1], [0, 0, 1, 1], [], []>} : vector<256x24xbf16>, vector<24x8xbf16>, vector<256x8xf32> -> vector<256x8xf32>
    %19 = arith.addf %6, %18 : vector<256x8xf32>
    %c1_i32 = arith.constant 1 : i32
    %20 = arith.addi %4, %c1_i32 : i32
    %21 = arith.index_cast %20 : i32 to index
    %c0_8 = arith.constant 0 : index
    %c0_9 = arith.constant 0 : index
    %22 = vector.load %arg8[%21, %c0_8, %c0_9] : memref<18x16x8xbf16, #tpu.memory_space<vmem>>, vector<16x16x8xbf16>
    %23 = vector.extract_strided_slice %22 {offsets = [0, 0, 0], sizes = [16, 15, 8], strides = [1, 1, 1]} : vector<16x16x8xbf16> to vector<16x15x8xbf16>
    %24 = tpu.concatenate %5, %23 in 1 : vector<16x1x8xbf16>, vector<16x15x8xbf16> -> vector<16x16x8xbf16>
    %25 = vector.extract_strided_slice %22 {offsets = [0, 1, 0], sizes = [16, 15, 8], strides = [1, 1, 1]} : vector<16x16x8xbf16> to vector<16x15x8xbf16>
    %26 = tpu.concatenate %25, %5 in 1 : vector<16x15x8xbf16>, vector<16x1x8xbf16> -> vector<16x16x8xbf16>
    %27 = tpu.concatenate %24, %22, %26 in 2 : vector<16x16x8xbf16>, vector<16x16x8xbf16>, vector<16x16x8xbf16> -> vector<16x16x24xbf16>
    %28 = vector.shape_cast %27 : vector<16x16x24xbf16> to vector<256x24xbf16>
    %c1 = arith.constant 1 : index
    %c0_10 = arith.constant 0 : index
    %c0_11 = arith.constant 0 : index
    %29 = vector.load %arg4[%c1, %c0_10, %c0_11] : memref<3x24x8xbf16, #tpu.memory_space<vmem>>, vector<1x24x8xbf16>
    %30 = vector.shape_cast %29 : vector<1x24x8xbf16> to vector<24x8xbf16>
    %cst_12 = arith.constant dense<0.000000e+00> : vector<256x8xf32>
    %31 = tpu.matmul %28, %30, %cst_12 {dimension_numbers = #tpu.dot_dimension_numbers<[1], [0], [0], [1], [0, 0, 1, 1], [], []>} : vector<256x24xbf16>, vector<24x8xbf16>, vector<256x8xf32> -> vector<256x8xf32>
    %32 = arith.addf %19, %31 : vector<256x8xf32>
    %c2_i32 = arith.constant 2 : i32
    %33 = arith.addi %4, %c2_i32 : i32
    %34 = arith.index_cast %33 : i32 to index
    %c0_13 = arith.constant 0 : index
    %c0_14 = arith.constant 0 : index
    %35 = vector.load %arg8[%34, %c0_13, %c0_14] : memref<18x16x8xbf16, #tpu.memory_space<vmem>>, vector<16x16x8xbf16>
    %36 = vector.extract_strided_slice %35 {offsets = [0, 0, 0], sizes = [16, 15, 8], strides = [1, 1, 1]} : vector<16x16x8xbf16> to vector<16x15x8xbf16>
    %37 = tpu.concatenate %5, %36 in 1 : vector<16x1x8xbf16>, vector<16x15x8xbf16> -> vector<16x16x8xbf16>
    %38 = vector.extract_strided_slice %35 {offsets = [0, 1, 0], sizes = [16, 15, 8], strides = [1, 1, 1]} : vector<16x16x8xbf16> to vector<16x15x8xbf16>
    %39 = tpu.concatenate %38, %5 in 1 : vector<16x15x8xbf16>, vector<16x1x8xbf16> -> vector<16x16x8xbf16>
    %40 = tpu.concatenate %37, %35, %39 in 2 : vector<16x16x8xbf16>, vector<16x16x8xbf16>, vector<16x16x8xbf16> -> vector<16x16x24xbf16>
    %41 = vector.shape_cast %40 : vector<16x16x24xbf16> to vector<256x24xbf16>
    %c2 = arith.constant 2 : index
    %c0_15 = arith.constant 0 : index
    %c0_16 = arith.constant 0 : index
    %42 = vector.load %arg4[%c2, %c0_15, %c0_16] : memref<3x24x8xbf16, #tpu.memory_space<vmem>>, vector<1x24x8xbf16>
    %43 = vector.shape_cast %42 : vector<1x24x8xbf16> to vector<24x8xbf16>
    %cst_17 = arith.constant dense<0.000000e+00> : vector<256x8xf32>
    %44 = tpu.matmul %41, %43, %cst_17 {dimension_numbers = #tpu.dot_dimension_numbers<[1], [0], [0], [1], [0, 0, 1, 1], [], []>} : vector<256x24xbf16>, vector<24x8xbf16>, vector<256x8xf32> -> vector<256x8xf32>
    %45 = arith.addf %32, %44 : vector<256x8xf32>
    %c0_18 = arith.constant 0 : index
    %c0_19 = arith.constant 0 : index
    %46 = vector.load %arg5[%c0_18, %c0_19] : memref<1x8xf32, #tpu.memory_space<vmem>>, vector<1x8xf32>
    %47 = vector.broadcast %46 : vector<1x8xf32> to vector<256x8xf32>
    %48 = arith.addf %45, %47 : vector<256x8xf32>
    %cst_20 = arith.constant 0.000000e+00 : f32
    %49 = vector.broadcast %cst_20 : f32 to vector<256x8xf32>
    %50 = arith.maximumf %48, %49 : vector<256x8xf32>
    %51 = vector.shape_cast %50 : vector<256x8xf32> to vector<1x16x16x8xf32>
    %52 = arith.truncf %51 : vector<1x16x16x8xf32> to vector<1x16x16x8xbf16>
    %c0_21 = arith.constant 0 : index
    %c0_22 = arith.constant 0 : index
    %c0_23 = arith.constant 0 : index
    %c0_24 = arith.constant 0 : index
    %53 = vector.load %arg6[%c0_21, %c0_22, %c0_23, %c0_24] : memref<1x16x16x8xbf16, #tpu.memory_space<vmem>>, vector<1x16x16x8xbf16>
    tpu.vector_store %arg6[%c0_21, %c0_22, %c0_23, %c0_24], %52 {strides = array<i32>} : memref<1x16x16x8xbf16, #tpu.memory_space<vmem>>, vector<1x16x16x8xbf16>,
    %cst_25 = arith.constant dense<0.000000e+00> : vector<8xf32>
    %54 = vector.multi_reduction <add>, %50, %cst_25 [0] : vector<256x8xf32> to vector<8xf32>
    %55 = vector.shape_cast %54 : vector<8xf32> to vector<1x8xf32>
    %cst_26 = arith.constant 3.906250e-03 : f32
    %56 = vector.broadcast %cst_26 : f32 to vector<1x8xf32>
    %57 = arith.mulf %55, %56 : vector<1x8xf32>
    %58 = vector.broadcast %57 : vector<1x8xf32> to vector<256x8xf32>
    %59 = arith.subf %50, %58 : vector<256x8xf32>
    %60 = arith.mulf %59, %59 : vector<256x8xf32>
    %cst_27 = arith.constant dense<0.000000e+00> : vector<8xf32>
    %61 = vector.multi_reduction <add>, %60, %cst_27 [0] : vector<256x8xf32> to vector<8xf32>
    %62 = vector.shape_cast %61 : vector<8xf32> to vector<1x8xf32>
    %c0_28 = arith.constant 0 : index
    %c0_29 = arith.constant 0 : index
    %c0_30 = arith.constant 0 : index
    %c0_31 = arith.constant 0 : index
    %63 = vector.load %arg7[%c0_28, %c0_29, %c0_30, %c0_31] : memref<1x1x2x8xf32, #tpu.memory_space<vmem>>, vector<1x1x1x8xf32>
    %64 = vector.shape_cast %63 : vector<1x1x1x8xf32> to vector<1x8xf32>
    %65 = vector.shape_cast %57 : vector<1x8xf32> to vector<1x1x1x8xf32>
    tpu.vector_store %arg7[%c0_28, %c0_29, %c0_30, %c0_31], %65 {strides = array<i32>} : memref<1x1x2x8xf32, #tpu.memory_space<vmem>>, vector<1x1x1x8xf32>,
    %c0_32 = arith.constant 0 : index
    %c0_33 = arith.constant 0 : index
    %c1_34 = arith.constant 1 : index
    %c0_35 = arith.constant 0 : index
    %66 = vector.load %arg7[%c0_32, %c0_33, %c1_34, %c0_35] : memref<1x1x2x8xf32, #tpu.memory_space<vmem>>, vector<1x1x1x8xf32>
    %67 = vector.shape_cast %66 : vector<1x1x1x8xf32> to vector<1x8xf32>
    %68 = vector.shape_cast %62 : vector<1x8xf32> to vector<1x1x1x8xf32>
    tpu.vector_store %arg7[%c0_32, %c0_33, %c1_34, %c0_35], %68 {strides = array<i32>} : memref<1x1x2x8xf32, #tpu.memory_space<vmem>>, vector<1x1x1x8xf32>,
    return
  }
  func.func @transform_0(%arg0: i32, %arg1: i32) -> (i32, i32, i32, i32) {
    %c0_i32 = arith.constant 0 : i32
    %c0_i32_0 = arith.constant 0 : i32
    %c0_i32_1 = arith.constant 0 : i32
    %c0_i32_2 = arith.constant 0 : i32
    return %arg0, %c0_i32, %c0_i32_0, %c0_i32_1 : i32, i32, i32, i32
  }
  func.func @transform_1(%arg0: i32, %arg1: i32) -> (i32, i32, i32, i32) {
    %c0_i32 = arith.constant 0 : i32
    %c0_i32_0 = arith.constant 0 : i32
    %c0_i32_1 = arith.constant 0 : i32
    %c0_i32_2 = arith.constant 0 : i32
    return %arg0, %c0_i32, %c0_i32_0, %c0_i32_1 : i32, i32, i32, i32
  }
  func.func @transform_2(%arg0: i32, %arg1: i32) -> (i32, i32, i32) {
    %c0_i32 = arith.constant 0 : i32
    %c0_i32_0 = arith.constant 0 : i32
    %c0_i32_1 = arith.constant 0 : i32
    %c0_i32_2 = arith.constant 0 : i32
    return %c0_i32, %c0_i32_0, %c0_i32_1 : i32, i32, i32
  }
  func.func @transform_3(%arg0: i32, %arg1: i32) -> (i32, i32) {
    %c0_i32 = arith.constant 0 : i32
    %c0_i32_0 = arith.constant 0 : i32
    %c0_i32_1 = arith.constant 0 : i32
    return %c0_i32, %c0_i32_0 : i32, i32
  }
  func.func @transform_4(%arg0: i32, %arg1: i32) -> (i32, i32, i32, i32) {
    %c0_i32 = arith.constant 0 : i32
    %c0_i32_0 = arith.constant 0 : i32
    %c0_i32_1 = arith.constant 0 : i32
    return %arg0, %arg1, %c0_i32, %c0_i32_0 : i32, i32, i32, i32
  }
  func.func @transform_5(%arg0: i32, %arg1: i32) -> (i32, i32, i32, i32) {
    %c0_i32 = arith.constant 0 : i32
    %c0_i32_0 = arith.constant 0 : i32
    %c0_i32_1 = arith.constant 0 : i32
    return %arg0, %arg1, %c0_i32, %c0_i32_0 : i32, i32, i32, i32
  }
}

module attributes {stable_mosaic.version = 11 : i64} {
  func.func @_conv2_kernel(%arg0: i32, %arg1: i32, %arg2: memref<1x16x16x8xbf16, #tpu.memory_space<vmem>>, %arg3: memref<1x8xf32, #tpu.memory_space<vmem>>, %arg4: memref<1x8xf32, #tpu.memory_space<vmem>>, %arg5: memref<3x24x8xbf16, #tpu.memory_space<vmem>>, %arg6: memref<1x8xf32, #tpu.memory_space<vmem>>, %arg7: memref<1x16x16x8xbf16, #tpu.memory_space<vmem>>, %arg8: memref<1x1x2x8xf32, #tpu.memory_space<vmem>>, %arg9: memref<18x16x8xbf16, #tpu.memory_space<vmem>>) attributes {dimension_semantics = [#tpu.dimension_semantics<parallel>, #tpu.dimension_semantics<arbitrary>], iteration_bounds = array<i64: 2, 1>, scalar_prefetch = 0 : i64, scratch_operands = 1 : i64, tpu.core_type = #tpu.core_type<tc>, window_params = [{transform_indices = @transform_0, window_bounds = array<i64: 1, 16, 16, 8>}, {pipeline_mode = #tpu.pipeline_mode<synchronous>, transform_indices = @transform_1, window_bounds = array<i64: 1, 8>}, {pipeline_mode = #tpu.pipeline_mode<synchronous>, transform_indices = @transform_2, window_bounds = array<i64: 1, 8>}, {pipeline_mode = #tpu.pipeline_mode<synchronous>, transform_indices = @transform_3, window_bounds = array<i64: 3, 24, 8>}, {pipeline_mode = #tpu.pipeline_mode<synchronous>, transform_indices = @transform_4, window_bounds = array<i64: 1, 8>}, {transform_indices = @transform_5, window_bounds = array<i64: 1, 16, 16, 8>}, {transform_indices = @transform_6, window_bounds = array<i64: 1, 1, 2, 8>}]} {
    %c0_i32 = arith.constant 0 : i32
    %0 = arith.cmpi eq, %arg1, %c0_i32 : i32
    %1 = arith.extui %0 : i1 to i32
    %c0_i32_0 = arith.constant 0 : i32
    %2 = arith.cmpi ne, %1, %c0_i32_0 : i32
    scf.if %2 {
      %cst_36 = arith.constant 0.000000e+00 : bf16
      %69 = vector.broadcast %cst_36 : bf16 to vector<1x16x8xbf16>
      %c0_37 = arith.constant 0 : index
      %c0_38 = arith.constant 0 : index
      %c0_39 = arith.constant 0 : index
      %70 = vector.load %arg9[%c0_37, %c0_38, %c0_39] : memref<18x16x8xbf16, #tpu.memory_space<vmem>>, vector<1x16x8xbf16>
      tpu.vector_store %arg9[%c0_37, %c0_38, %c0_39], %69 {strides = array<i32>} : memref<18x16x8xbf16, #tpu.memory_space<vmem>>, vector<1x16x8xbf16>,
      %c17 = arith.constant 17 : index
      %c0_40 = arith.constant 0 : index
      %c0_41 = arith.constant 0 : index
      %71 = vector.load %arg9[%c17, %c0_40, %c0_41] : memref<18x16x8xbf16, #tpu.memory_space<vmem>>, vector<1x16x8xbf16>
      tpu.vector_store %arg9[%c17, %c0_40, %c0_41], %69 {strides = array<i32>} : memref<18x16x8xbf16, #tpu.memory_space<vmem>>, vector<1x16x8xbf16>,
      %c0_42 = arith.constant 0 : index
      %c0_43 = arith.constant 0 : index
      %c0_44 = arith.constant 0 : index
      %c0_45 = arith.constant 0 : index
      %72 = vector.load %arg2[%c0_42, %c0_43, %c0_44, %c0_45] : memref<1x16x16x8xbf16, #tpu.memory_space<vmem>>, vector<1x16x16x8xbf16>
      %73 = vector.shape_cast %72 : vector<1x16x16x8xbf16> to vector<16x16x8xbf16>
      %74 = arith.extf %73 : vector<16x16x8xbf16> to vector<16x16x8xf32>
      %c0_46 = arith.constant 0 : index
      %c0_47 = arith.constant 0 : index
      %75 = vector.load %arg3[%c0_46, %c0_47] : memref<1x8xf32, #tpu.memory_space<vmem>>, vector<1x8xf32>
      %76 = vector.shape_cast %75 : vector<1x8xf32> to vector<1x1x8xf32>
      %77 = vector.broadcast %76 : vector<1x1x8xf32> to vector<16x16x8xf32>
      %78 = arith.mulf %74, %77 : vector<16x16x8xf32>
      %c0_48 = arith.constant 0 : index
      %c0_49 = arith.constant 0 : index
      %79 = vector.load %arg4[%c0_48, %c0_49] : memref<1x8xf32, #tpu.memory_space<vmem>>, vector<1x8xf32>
      %80 = vector.shape_cast %79 : vector<1x8xf32> to vector<1x1x8xf32>
      %81 = vector.broadcast %80 : vector<1x1x8xf32> to vector<16x16x8xf32>
      %82 = arith.addf %78, %81 : vector<16x16x8xf32>
      %83 = arith.truncf %82 : vector<16x16x8xf32> to vector<16x16x8xbf16>
      %c1_50 = arith.constant 1 : index
      %c0_51 = arith.constant 0 : index
      %c0_52 = arith.constant 0 : index
      %84 = vector.load %arg9[%c1_50, %c0_51, %c0_52] : memref<18x16x8xbf16, #tpu.memory_space<vmem>>, vector<16x16x8xbf16>
      tpu.vector_store %arg9[%c1_50, %c0_51, %c0_52], %83 {strides = array<i32>} : memref<18x16x8xbf16, #tpu.memory_space<vmem>>, vector<16x16x8xbf16>,
    } else {
    }
    %c16_i32 = arith.constant 16 : i32
    %3 = arith.muli %arg1, %c16_i32 : i32
    %4 = tpu.assume_multiple %3, 16 : i32
    %cst = arith.constant 0.000000e+00 : bf16
    %5 = vector.broadcast %cst : bf16 to vector<16x1x8xbf16>
    %cst_1 = arith.constant 0.000000e+00 : f32
    %6 = vector.broadcast %cst_1 : f32 to vector<256x8xf32>
    %c0_i32_2 = arith.constant 0 : i32
    %7 = arith.addi %4, %c0_i32_2 : i32
    %8 = arith.index_cast %7 : i32 to index
    %c0 = arith.constant 0 : index
    %c0_3 = arith.constant 0 : index
    %9 = vector.load %arg9[%8, %c0, %c0_3] : memref<18x16x8xbf16, #tpu.memory_space<vmem>>, vector<16x16x8xbf16>
    %10 = vector.extract_strided_slice %9 {offsets = [0, 0, 0], sizes = [16, 15, 8], strides = [1, 1, 1]} : vector<16x16x8xbf16> to vector<16x15x8xbf16>
    %11 = tpu.concatenate %5, %10 in 1 : vector<16x1x8xbf16>, vector<16x15x8xbf16> -> vector<16x16x8xbf16>
    %12 = vector.extract_strided_slice %9 {offsets = [0, 1, 0], sizes = [16, 15, 8], strides = [1, 1, 1]} : vector<16x16x8xbf16> to vector<16x15x8xbf16>
    %13 = tpu.concatenate %12, %5 in 1 : vector<16x15x8xbf16>, vector<16x1x8xbf16> -> vector<16x16x8xbf16>
    %14 = tpu.concatenate %11, %9, %13 in 2 : vector<16x16x8xbf16>, vector<16x16x8xbf16>, vector<16x16x8xbf16> -> vector<16x16x24xbf16>
    %15 = vector.shape_cast %14 : vector<16x16x24xbf16> to vector<256x24xbf16>
    %c0_4 = arith.constant 0 : index
    %c0_5 = arith.constant 0 : index
    %c0_6 = arith.constant 0 : index
    %16 = vector.load %arg5[%c0_4, %c0_5, %c0_6] : memref<3x24x8xbf16, #tpu.memory_space<vmem>>, vector<1x24x8xbf16>
    %17 = vector.shape_cast %16 : vector<1x24x8xbf16> to vector<24x8xbf16>
    %cst_7 = arith.constant dense<0.000000e+00> : vector<256x8xf32>
    %18 = tpu.matmul %15, %17, %cst_7 {dimension_numbers = #tpu.dot_dimension_numbers<[1], [0], [0], [1], [0, 0, 1, 1], [], []>} : vector<256x24xbf16>, vector<24x8xbf16>, vector<256x8xf32> -> vector<256x8xf32>
    %19 = arith.addf %6, %18 : vector<256x8xf32>
    %c1_i32 = arith.constant 1 : i32
    %20 = arith.addi %4, %c1_i32 : i32
    %21 = arith.index_cast %20 : i32 to index
    %c0_8 = arith.constant 0 : index
    %c0_9 = arith.constant 0 : index
    %22 = vector.load %arg9[%21, %c0_8, %c0_9] : memref<18x16x8xbf16, #tpu.memory_space<vmem>>, vector<16x16x8xbf16>
    %23 = vector.extract_strided_slice %22 {offsets = [0, 0, 0], sizes = [16, 15, 8], strides = [1, 1, 1]} : vector<16x16x8xbf16> to vector<16x15x8xbf16>
    %24 = tpu.concatenate %5, %23 in 1 : vector<16x1x8xbf16>, vector<16x15x8xbf16> -> vector<16x16x8xbf16>
    %25 = vector.extract_strided_slice %22 {offsets = [0, 1, 0], sizes = [16, 15, 8], strides = [1, 1, 1]} : vector<16x16x8xbf16> to vector<16x15x8xbf16>
    %26 = tpu.concatenate %25, %5 in 1 : vector<16x15x8xbf16>, vector<16x1x8xbf16> -> vector<16x16x8xbf16>
    %27 = tpu.concatenate %24, %22, %26 in 2 : vector<16x16x8xbf16>, vector<16x16x8xbf16>, vector<16x16x8xbf16> -> vector<16x16x24xbf16>
    %28 = vector.shape_cast %27 : vector<16x16x24xbf16> to vector<256x24xbf16>
    %c1 = arith.constant 1 : index
    %c0_10 = arith.constant 0 : index
    %c0_11 = arith.constant 0 : index
    %29 = vector.load %arg5[%c1, %c0_10, %c0_11] : memref<3x24x8xbf16, #tpu.memory_space<vmem>>, vector<1x24x8xbf16>
    %30 = vector.shape_cast %29 : vector<1x24x8xbf16> to vector<24x8xbf16>
    %cst_12 = arith.constant dense<0.000000e+00> : vector<256x8xf32>
    %31 = tpu.matmul %28, %30, %cst_12 {dimension_numbers = #tpu.dot_dimension_numbers<[1], [0], [0], [1], [0, 0, 1, 1], [], []>} : vector<256x24xbf16>, vector<24x8xbf16>, vector<256x8xf32> -> vector<256x8xf32>
    %32 = arith.addf %19, %31 : vector<256x8xf32>
    %c2_i32 = arith.constant 2 : i32
    %33 = arith.addi %4, %c2_i32 : i32
    %34 = arith.index_cast %33 : i32 to index
    %c0_13 = arith.constant 0 : index
    %c0_14 = arith.constant 0 : index
    %35 = vector.load %arg9[%34, %c0_13, %c0_14] : memref<18x16x8xbf16, #tpu.memory_space<vmem>>, vector<16x16x8xbf16>
    %36 = vector.extract_strided_slice %35 {offsets = [0, 0, 0], sizes = [16, 15, 8], strides = [1, 1, 1]} : vector<16x16x8xbf16> to vector<16x15x8xbf16>
    %37 = tpu.concatenate %5, %36 in 1 : vector<16x1x8xbf16>, vector<16x15x8xbf16> -> vector<16x16x8xbf16>
    %38 = vector.extract_strided_slice %35 {offsets = [0, 1, 0], sizes = [16, 15, 8], strides = [1, 1, 1]} : vector<16x16x8xbf16> to vector<16x15x8xbf16>
    %39 = tpu.concatenate %38, %5 in 1 : vector<16x15x8xbf16>, vector<16x1x8xbf16> -> vector<16x16x8xbf16>
    %40 = tpu.concatenate %37, %35, %39 in 2 : vector<16x16x8xbf16>, vector<16x16x8xbf16>, vector<16x16x8xbf16> -> vector<16x16x24xbf16>
    %41 = vector.shape_cast %40 : vector<16x16x24xbf16> to vector<256x24xbf16>
    %c2 = arith.constant 2 : index
    %c0_15 = arith.constant 0 : index
    %c0_16 = arith.constant 0 : index
    %42 = vector.load %arg5[%c2, %c0_15, %c0_16] : memref<3x24x8xbf16, #tpu.memory_space<vmem>>, vector<1x24x8xbf16>
    %43 = vector.shape_cast %42 : vector<1x24x8xbf16> to vector<24x8xbf16>
    %cst_17 = arith.constant dense<0.000000e+00> : vector<256x8xf32>
    %44 = tpu.matmul %41, %43, %cst_17 {dimension_numbers = #tpu.dot_dimension_numbers<[1], [0], [0], [1], [0, 0, 1, 1], [], []>} : vector<256x24xbf16>, vector<24x8xbf16>, vector<256x8xf32> -> vector<256x8xf32>
    %45 = arith.addf %32, %44 : vector<256x8xf32>
    %c0_18 = arith.constant 0 : index
    %c0_19 = arith.constant 0 : index
    %46 = vector.load %arg6[%c0_18, %c0_19] : memref<1x8xf32, #tpu.memory_space<vmem>>, vector<1x8xf32>
    %47 = vector.broadcast %46 : vector<1x8xf32> to vector<256x8xf32>
    %48 = arith.addf %45, %47 : vector<256x8xf32>
    %cst_20 = arith.constant 0.000000e+00 : f32
    %49 = vector.broadcast %cst_20 : f32 to vector<256x8xf32>
    %50 = arith.maximumf %48, %49 : vector<256x8xf32>
    %51 = vector.shape_cast %50 : vector<256x8xf32> to vector<1x16x16x8xf32>
    %52 = arith.truncf %51 : vector<1x16x16x8xf32> to vector<1x16x16x8xbf16>
    %c0_21 = arith.constant 0 : index
    %c0_22 = arith.constant 0 : index
    %c0_23 = arith.constant 0 : index
    %c0_24 = arith.constant 0 : index
    %53 = vector.load %arg7[%c0_21, %c0_22, %c0_23, %c0_24] : memref<1x16x16x8xbf16, #tpu.memory_space<vmem>>, vector<1x16x16x8xbf16>
    tpu.vector_store %arg7[%c0_21, %c0_22, %c0_23, %c0_24], %52 {strides = array<i32>} : memref<1x16x16x8xbf16, #tpu.memory_space<vmem>>, vector<1x16x16x8xbf16>,
    %cst_25 = arith.constant dense<0.000000e+00> : vector<8xf32>
    %54 = vector.multi_reduction <add>, %50, %cst_25 [0] : vector<256x8xf32> to vector<8xf32>
    %55 = vector.shape_cast %54 : vector<8xf32> to vector<1x8xf32>
    %cst_26 = arith.constant 3.906250e-03 : f32
    %56 = vector.broadcast %cst_26 : f32 to vector<1x8xf32>
    %57 = arith.mulf %55, %56 : vector<1x8xf32>
    %58 = vector.broadcast %57 : vector<1x8xf32> to vector<256x8xf32>
    %59 = arith.subf %50, %58 : vector<256x8xf32>
    %60 = arith.mulf %59, %59 : vector<256x8xf32>
    %cst_27 = arith.constant dense<0.000000e+00> : vector<8xf32>
    %61 = vector.multi_reduction <add>, %60, %cst_27 [0] : vector<256x8xf32> to vector<8xf32>
    %62 = vector.shape_cast %61 : vector<8xf32> to vector<1x8xf32>
    %c0_28 = arith.constant 0 : index
    %c0_29 = arith.constant 0 : index
    %c0_30 = arith.constant 0 : index
    %c0_31 = arith.constant 0 : index
    %63 = vector.load %arg8[%c0_28, %c0_29, %c0_30, %c0_31] : memref<1x1x2x8xf32, #tpu.memory_space<vmem>>, vector<1x1x1x8xf32>
    %64 = vector.shape_cast %63 : vector<1x1x1x8xf32> to vector<1x8xf32>
    %65 = vector.shape_cast %57 : vector<1x8xf32> to vector<1x1x1x8xf32>
    tpu.vector_store %arg8[%c0_28, %c0_29, %c0_30, %c0_31], %65 {strides = array<i32>} : memref<1x1x2x8xf32, #tpu.memory_space<vmem>>, vector<1x1x1x8xf32>,
    %c0_32 = arith.constant 0 : index
    %c0_33 = arith.constant 0 : index
    %c1_34 = arith.constant 1 : index
    %c0_35 = arith.constant 0 : index
    %66 = vector.load %arg8[%c0_32, %c0_33, %c1_34, %c0_35] : memref<1x1x2x8xf32, #tpu.memory_space<vmem>>, vector<1x1x1x8xf32>
    %67 = vector.shape_cast %66 : vector<1x1x1x8xf32> to vector<1x8xf32>
    %68 = vector.shape_cast %62 : vector<1x8xf32> to vector<1x1x1x8xf32>
    tpu.vector_store %arg8[%c0_32, %c0_33, %c1_34, %c0_35], %68 {strides = array<i32>} : memref<1x1x2x8xf32, #tpu.memory_space<vmem>>, vector<1x1x1x8xf32>,
    return
  }
  func.func @transform_0(%arg0: i32, %arg1: i32) -> (i32, i32, i32, i32) {
    %c0_i32 = arith.constant 0 : i32
    %c0_i32_0 = arith.constant 0 : i32
    %c0_i32_1 = arith.constant 0 : i32
    %c0_i32_2 = arith.constant 0 : i32
    return %arg0, %c0_i32, %c0_i32_0, %c0_i32_1 : i32, i32, i32, i32
  }
  func.func @transform_1(%arg0: i32, %arg1: i32) -> (i32, i32) {
    %c0_i32 = arith.constant 0 : i32
    %c0_i32_0 = arith.constant 0 : i32
    %c0_i32_1 = arith.constant 0 : i32
    return %c0_i32, %c0_i32_0 : i32, i32
  }
  func.func @transform_2(%arg0: i32, %arg1: i32) -> (i32, i32) {
    %c0_i32 = arith.constant 0 : i32
    %c0_i32_0 = arith.constant 0 : i32
    %c0_i32_1 = arith.constant 0 : i32
    return %c0_i32, %c0_i32_0 : i32, i32
  }
  func.func @transform_3(%arg0: i32, %arg1: i32) -> (i32, i32, i32) {
    %c0_i32 = arith.constant 0 : i32
    %c0_i32_0 = arith.constant 0 : i32
    %c0_i32_1 = arith.constant 0 : i32
    %c0_i32_2 = arith.constant 0 : i32
    return %c0_i32, %c0_i32_0, %c0_i32_1 : i32, i32, i32
  }
  func.func @transform_4(%arg0: i32, %arg1: i32) -> (i32, i32) {
    %c0_i32 = arith.constant 0 : i32
    %c0_i32_0 = arith.constant 0 : i32
    %c0_i32_1 = arith.constant 0 : i32
    return %c0_i32, %c0_i32_0 : i32, i32
  }
  func.func @transform_5(%arg0: i32, %arg1: i32) -> (i32, i32, i32, i32) {
    %c0_i32 = arith.constant 0 : i32
    %c0_i32_0 = arith.constant 0 : i32
    %c0_i32_1 = arith.constant 0 : i32
    return %arg0, %arg1, %c0_i32, %c0_i32_0 : i32, i32, i32, i32
  }
  func.func @transform_6(%arg0: i32, %arg1: i32) -> (i32, i32, i32, i32) {
    %c0_i32 = arith.constant 0 : i32
    %c0_i32_0 = arith.constant 0 : i32
    %c0_i32_1 = arith.constant 0 : i32
    return %arg0, %arg1, %c0_i32, %c0_i32_0 : i32, i32, i32, i32
  }
}

</mosaic_0001>

<llo_original>
// kernel: _lambda_.3
$region0: #{_lambda_.3}
  #allocation0 [shape = 'u32[]', space=smem, size = 0x4, offset = 0x4, fixed_abs, tag = 'smem constant byte address 0x4 - core index']
  #allocation1 [shape = 'u32[144,128]{1,0:T(1,128)}', space=vmem, size = 0x12000, scoped, tag = 'internal scratch']
  #allocation2 [shape = 'bf16[18,16,8]{2,1,0:T(16,128)(2,1)}', space=vmem, size = 0x12000, scoped, tag = 'scratch operand']
  %s0 = inlined_call_operand.vmem [shape: bf16[2,16,16,8], index: 0, kind: input, shape index: {}]
  %s1 = inlined_call_operand.vmem [shape: f32[1,8], index: 1, kind: input, shape index: {}]
  %s2 = inlined_call_operand.vmem [shape: f32[1,8], index: 2, kind: input, shape index: {}]
  %s3 = inlined_call_operand.vmem [shape: bf16[3,24,8], index: 3, kind: input, shape index: {}]
  %s4 = inlined_call_operand.vmem [shape: f32[1,8], index: 4, kind: input, shape index: {}]
  %s5 = inlined_call_operand.vmem [shape: bf16[2,16,16,8], index: 5, kind: output, shape index: {0}]
  %s6 = inlined_call_operand.vmem [shape: f32[2,1,2,8], index: 6, kind: output, shape index: {1}]
  %7 = xla_tuple %s5, %s6
  %s8 = sld [smem:[#allocation0]]
  $region65: #{_lambda_.3} parent=0
    _
  %s10 = ssub.s32 1, %s8
  %s11 = scalar_select 0, %s10, %s8
  loop: start=0, step=1, limit=4
  $region2: #{_lambda_.3} parent=0 // loop_pre_header
    _
  $region3: #{_lambda_.3} parent=0 // loop_header
    %s13 = sphi 0, %s17
    %p14 = scmp.ge.s32.totalorder %s13, 4
    %s20 = sphi 0, %s32
    %s21 = sphi 0, %s28
    %s22 = sphi 0, %s20
    %s23 = sphi 0, %s21
    %s24 = sphi 0, %s22
    %s25 = sphi 0, %s23
    %s35 = sphi 0, %s37
    %s38 = sphi 0, %s35
    %s39 = sphi 0, %s38
    %s55 = sphi 0, %s39
    %s59 = sphi 0, %s59
    %s61 = sphi 0, %s59
    %s62 = sphi 0, %s61
    %s76 = sphi 0, %s62
    %s80 = sphi 0, %s80
    %s82 = sphi 0, %s80
    %s83 = sphi 0, %s82
    %s97 = sphi 0, %s83
    %s101 = sphi 0, %s101
    %s103 = sphi 0, %s101
    %s104 = sphi 0, %s103
    %s118 = sphi 0, %s104
    %s122 = sphi 0, %s122
    %s124 = sphi 0, %s122
    %s125 = sphi 0, %s124
    %s139 = sphi 0, %s125
    %s147 = sphi 0, %s149
    %s150 = sphi 0, %s147
    %s151 = sphi 0, %s150
    %s167 = sphi 0, %s151
    %s175 = sphi 0, %s177
    %s178 = sphi 0, %s175
    %s179 = sphi 0, %s178
    %s195 = sphi 0, %s179
  $region4: #{_lambda_.3} parent=0 // loop_header_branch
    %16 = sbr.rel (%p14) target = $region8
  $region5: #{_lambda_.3} parent=0 // loop_body
    %s18 = ssub.s32 %s13, 1
    %s19 = ssub.s32 %s13, 2
    %s26 = sadd.s32 1, %s21
    %p27 = scmp.ge.s32.totalorder %s26, 1
    %s28 = scalar_select %p27, 0, %s26
    %s29 = sadd.s32 1, %s20
    %s30 = scalar_select %p27, %s29, %s20
    %p31 = scmp.ge.s32.totalorder %s30, 2
    %s32 = scalar_select %p31, 0, %s30
    %s33 = ssub.s32 %s20, %s32
    %p34 = scmp.eq.s32.totalorder %s33, 0
    %s36 = sadd.s32 %s35, 1
    %s37 = scalar_select %p34, %s35, %s36
    %p40 = pneg %p34
    %p41 = scmp.eq.s32.totalorder %s13, 1
    %p42 = por %p40, %p41
    %p43 = scmp.ne.s32.totalorder %s35, %s38
    %p44 = scmp.eq.s32.totalorder %s13, 0
    %p45 = por %p43, %p44
    %p46 = scmp.ne.s32.totalorder %s35, %s38
    %p47 = scmp.eq.s32.totalorder %s18, 1
    %p48 = por %p46, %p47
    %p49 = scmp.ne.s32.totalorder %s38, %s39
    %p50 = scmp.eq.s32.totalorder %s18, 0
    %p51 = por %p49, %p50
    %p52 = scmp.ne.s32.totalorder %s38, %s39
    %p53 = scmp.eq.s32.totalorder %s19, 1
    %p54 = por %p52, %p53
    %p56 = scmp.ne.s32.totalorder %s39, %s55
    %p57 = scmp.eq.s32.totalorder %s19, 0
    %p58 = por %p56, %p57
    %s60 = sadd.s32 %s59, 1
    %p63 = scmp.eq.s32.totalorder %s13, 1
    %p64 = scmp.ne.s32.totalorder %s59, %s61
    %p65 = scmp.eq.s32.totalorder %s13, 0
    %p66 = por %p64, %p65
    %p67 = scmp.ne.s32.totalorder %s59, %s61
    %p68 = scmp.eq.s32.totalorder %s18, 1
    %p69 = por %p67, %p68
    %p70 = scmp.ne.s32.totalorder %s61, %s62
    %p71 = scmp.eq.s32.totalorder %s18, 0
    %p72 = por %p70, %p71
    %p73 = scmp.ne.s32.totalorder %s61, %s62
    %p74 = scmp.eq.s32.totalorder %s19, 1
    %p75 = por %p73, %p74
    %p77 = scmp.ne.s32.totalorder %s62, %s76
    %p78 = scmp.eq.s32.totalorder %s19, 0
    %p79 = por %p77, %p78
    %s81 = sadd.s32 %s80, 1
    %p84 = scmp.eq.s32.totalorder %s13, 1
    %p85 = scmp.ne.s32.totalorder %s80, %s82
    %p86 = scmp.eq.s32.totalorder %s13, 0
    %p87 = por %p85, %p86
    %p88 = scmp.ne.s32.totalorder %s80, %s82
    %p89 = scmp.eq.s32.totalorder %s18, 1
    %p90 = por %p88, %p89
    %p91 = scmp.ne.s32.totalorder %s82, %s83
    %p92 = scmp.eq.s32.totalorder %s18, 0
    %p93 = por %p91, %p92
    %p94 = scmp.ne.s32.totalorder %s82, %s83
    %p95 = scmp.eq.s32.totalorder %s19, 1
    %p96 = por %p94, %p95
    %p98 = scmp.ne.s32.totalorder %s83, %s97
    %p99 = scmp.eq.s32.totalorder %s19, 0
    %p100 = por %p98, %p99
    %s102 = sadd.s32 %s101, 1
    %p105 = scmp.eq.s32.totalorder %s13, 1
    %p106 = scmp.ne.s32.totalorder %s101, %s103
    %p107 = scmp.eq.s32.totalorder %s13, 0
    %p108 = por %p106, %p107
    %p109 = scmp.ne.s32.totalorder %s101, %s103
    %p110 = scmp.eq.s32.totalorder %s18, 1
    %p111 = por %p109, %p110
    %p112 = scmp.ne.s32.totalorder %s103, %s104
    %p113 = scmp.eq.s32.totalorder %s18, 0
    %p114 = por %p112, %p113
    %p115 = scmp.ne.s32.totalorder %s103, %s104
    %p116 = scmp.eq.s32.totalorder %s19, 1
    %p117 = por %p115, %p116
    %p119 = scmp.ne.s32.totalorder %s104, %s118
    %p120 = scmp.eq.s32.totalorder %s19, 0
    %p121 = por %p119, %p120
    %s123 = sadd.s32 %s122, 1
    %p126 = scmp.eq.s32.totalorder %s13, 1
    %p127 = scmp.ne.s32.totalorder %s122, %s124
    %p128 = scmp.eq.s32.totalorder %s13, 0
    %p129 = por %p127, %p128
    %p130 = scmp.ne.s32.totalorder %s122, %s124
    %p131 = scmp.eq.s32.totalorder %s18, 1
    %p132 = por %p130, %p131
    %p133 = scmp.ne.s32.totalorder %s124, %s125
    %p134 = scmp.eq.s32.totalorder %s18, 0
    %p135 = por %p133, %p134
    %p136 = scmp.ne.s32.totalorder %s124, %s125
    %p137 = scmp.eq.s32.totalorder %s19, 1
    %p138 = por %p136, %p137
    %p140 = scmp.ne.s32.totalorder %s125, %s139
    %p141 = scmp.eq.s32.totalorder %s19, 0
    %p142 = por %p140, %p141
    %s143 = ssub.s32 %s20, %s32
    %s144 = ssub.s32 %s21, %s28
    %s145 = sor.u32 %s143, %s144
    %p146 = scmp.eq.s32.totalorder %s145, 0
    %s148 = sadd.s32 %s147, 1
    %s149 = scalar_select %p146, %s147, %s148
    %p152 = pneg %p146
    %p153 = scmp.eq.s32.totalorder %s13, 1
    %p154 = por %p152, %p153
    %p155 = scmp.ne.s32.totalorder %s147, %s150
    %p156 = scmp.eq.s32.totalorder %s13, 0
    %p157 = por %p155, %p156
    %p158 = scmp.ne.s32.totalorder %s147, %s150
    %p159 = scmp.eq.s32.totalorder %s18, 1
    %p160 = por %p158, %p159
    %p161 = scmp.ne.s32.totalorder %s150, %s151
    %p162 = scmp.eq.s32.totalorder %s18, 0
    %p163 = por %p161, %p162
    %p164 = scmp.ne.s32.totalorder %s150, %s151
    %p165 = scmp.eq.s32.totalorder %s19, 1
    %p166 = por %p164, %p165
    %p168 = scmp.ne.s32.totalorder %s151, %s167
    %p169 = scmp.eq.s32.totalorder %s19, 0
    %p170 = por %p168, %p169
    %s171 = ssub.s32 %s20, %s32
    %s172 = ssub.s32 %s21, %s28
    %s173 = sor.u32 %s171, %s172
    %p174 = scmp.eq.s32.totalorder %s173, 0
    %s176 = sadd.s32 %s175, 1
    %s177 = scalar_select %p174, %s175, %s176
    %p180 = pneg %p174
    %p181 = scmp.eq.s32.totalorder %s13, 1
    %p182 = por %p180, %p181
    %p183 = scmp.ne.s32.totalorder %s175, %s178
    %p184 = scmp.eq.s32.totalorder %s13, 0
    %p185 = por %p183, %p184
    %p186 = scmp.ne.s32.totalorder %s175, %s178
    %p187 = scmp.eq.s32.totalorder %s18, 1
    %p188 = por %p186, %p187
    %p189 = scmp.ne.s32.totalorder %s178, %s179
    %p190 = scmp.eq.s32.totalorder %s18, 0
    %p191 = por %p189, %p190
    %p192 = scmp.ne.s32.totalorder %s178, %s179
    %p193 = scmp.eq.s32.totalorder %s19, 1
    %p194 = por %p192, %p193
    %p196 = scmp.ne.s32.totalorder %s179, %s195
    %p197 = scmp.eq.s32.totalorder %s19, 0
    %p198 = por %p196, %p197
    %p199 = scmp.le.s32.totalorder 1, %s13
    %p200 = scmp.lt.s32.totalorder %s13, 3
    %p201 = pnand %p199, %p200
    %p202 = pneg %p201
    // Predicated region
    $region9: #{_lambda_.3} parent=5 // pred_check
      _
    $region10: #{_lambda_.3} parent=5 // pred_check_branch
      %204 = sbr.rel (%p201) target = $region12
    $region11: #{_lambda_.3} parent=5 // pred_region
      %s205 = ssub.s32 %s13, 1
      // Predicated region
      $region13: #{_lambda_.3} parent=11 // pred_check
        %p206 = pneg %p72
      $region14: #{_lambda_.3} parent=11 // pred_check_branch
        %208 = sbr.rel (%p206) target = $region16
      $region15: #{_lambda_.3} parent=11 // pred_region
        _
      $region16: #{_lambda_.3} parent=11 // pred_fallthru
        _
      // Predicated region
      $region17: #{_lambda_.3} parent=11 // pred_check
        %p209 = pneg %p93
      $region18: #{_lambda_.3} parent=11 // pred_check_branch
        %211 = sbr.rel (%p209) target = $region20
      $region19: #{_lambda_.3} parent=11 // pred_region
        _
      $region20: #{_lambda_.3} parent=11 // pred_fallthru
        _
      // Predicated region
      $region21: #{_lambda_.3} parent=11 // pred_check
        %p212 = pneg %p114
      $region22: #{_lambda_.3} parent=11 // pred_check_branch
        %214 = sbr.rel (%p212) target = $region24
      $region23: #{_lambda_.3} parent=11 // pred_region
        _
      $region24: #{_lambda_.3} parent=11 // pred_fallthru
        _
      // Predicated region
      $region25: #{_lambda_.3} parent=11 // pred_check
        %p215 = pneg %p135
      $region26: #{_lambda_.3} parent=11 // pred_check_branch
        %217 = sbr.rel (%p215) target = $region28
      $region27: #{_lambda_.3} parent=11 // pred_region
        _
      $region28: #{_lambda_.3} parent=11 // pred_fallthru
        _
    $region12: #{_lambda_.3} parent=5 // pred_fallthru
      _
    %p218 = scmp.lt.s32.totalorder %s13, 2
    // Predicated region
    $region29: #{_lambda_.3} parent=5 // pred_check
      %p219 = pneg %p218
    $region30: #{_lambda_.3} parent=5 // pred_check_branch
      %221 = sbr.rel (%p219) target = $region32
    $region31: #{_lambda_.3} parent=5 // pred_region
      // Predicated region
      $region33: #{_lambda_.3} parent=31 // pred_check
        %p222 = pneg %p45
      $region34: #{_lambda_.3} parent=31 // pred_check_branch
        %224 = sbr.rel (%p222) target = $region36
      $region35: #{_lambda_.3} parent=31 // pred_region
        %p225 = scmp.lt.s32.totalorder %s20, 1
        %s226 = scalar_select %p225, %s20, 1
        %s227 = smul.addr %s226, 32
        %s228 = smul.addr %s227, 4
        %s229 = scalar_lea.vmem %s0, %s228
      $region36: #{_lambda_.3} parent=31 // pred_fallthru
        _
    $region32: #{_lambda_.3} parent=5 // pred_fallthru
      _
    %p230 = scmp.le.s32.totalorder 1, %s13
    %p231 = scmp.lt.s32.totalorder %s13, 3
    %p232 = pnand %p230, %p231
    %p233 = pneg %p232
    // Predicated region
    $region37: #{_lambda_.3} parent=5 // pred_check
      _
    $region38: #{_lambda_.3} parent=5 // pred_check_branch
      %235 = sbr.rel (%p232) target = $region40
    $region39: #{_lambda_.3} parent=5 // pred_region
      %s236 = ssub.s32 %s13, 1
      %p237 = scmp.lt.s32.totalorder %s22, 1
      %s238 = scalar_select %p237, %s22, 1
      %s239 = smul.addr %s238, 32
      %s240 = smul.addr %s239, 4
      %s241 = scalar_lea.vmem %s0, %s240
      %p242 = pneg %p51
      %p243 = pneg %p48
      %p244 = pneg %p72
      %p245 = pneg %p69
      %p246 = pneg %p93
      %p247 = pneg %p90
      %p248 = pneg %p114
      %p249 = pneg %p111
      %p250 = pneg %p135
      %p251 = pneg %p132
      %p252 = pneg %p163
      %p253 = pneg %p160
      %s254 = smul.u32 16, %s23
      %p255 = scmp.lt.s32.totalorder %s22, 1
      %s256 = scalar_select %p255, %s22, 1
      %p257 = scmp.lt.s32.totalorder %s254, 15
      %s258 = scalar_select %p257, %s254, 15
      %s259 = smul.addr %s258, 2
      %s260 = smul.addr %s256, 32
      %s261 = sadd.s32 %s259, %s260
      %s262 = smul.addr %s261, 4
      %s263 = scalar_lea.vmem %s5, %s262
      %p264 = pneg %p191
      %p265 = pneg %p188
      %p266 = scmp.lt.s32.totalorder %s22, 1
      %s267 = scalar_select %p266, %s22, 1
      %p268 = scmp.lt.s32.totalorder %s23, 0
      %s269 = scalar_select %p268, %s23, 0
      %s270 = sadd.s32 %s269, %s267
      %s271 = smul.addr %s270, 2
      %s272 = scalar_lea.vmem %s6, %s271
      %p273 = scmp.lt.s32.totalorder %s22, 1
      %s274 = scalar_select %p273, %s22, 1
      %s275 = smul.addr %s274, 32
      %s276 = smul.addr %s275, 4
      %s277 = scalar_lea.vmem %s0, %s276
      %s278 = smul.u32 16, %s23
      %p279 = scmp.lt.s32.totalorder %s22, 1
      %s280 = scalar_select %p279, %s22, 1
      %p281 = scmp.lt.s32.totalorder %s278, 15
      %s282 = scalar_select %p281, %s278, 15
      %s283 = smul.addr %s282, 2
      %s284 = smul.addr %s280, 32
      %s285 = sadd.s32 %s283, %s284
      %s286 = smul.addr %s285, 4
      %s287 = scalar_lea.vmem %s5, %s286
      %s288 = smul.u32 16, %s23
      %p289 = scmp.lt.s32.totalorder %s22, 1
      %s290 = scalar_select %p289, %s22, 1
      %p291 = scmp.lt.s32.totalorder %s23, 0
      %s292 = scalar_select %p291, %s23, 0
      %s293 = sadd.s32 %s292, %s290
      %s294 = smul.addr %s293, 2
      %s295 = scalar_lea.vmem %s6, %s294
      %p297 = scmp.eq.s32.totalorder %s23, 0
      // Predicated region
      $region41: #{_lambda_.3} parent=39 // pred_check
        %p298 = pneg %p297
      $region42: #{_lambda_.3} parent=39 // pred_check_branch
        %300 = sbr.rel (%p298) target = $region44
      $region43: #{_lambda_.3} parent=39 // pred_region
        %vm301 = vcmask 64512
        %302 = vst.msk [vmem:[#allocation2] sm:$0xff] %vm301, 0
        %s303 = scalar_lea.vmem [#allocation2], 136
        %304 = vst.msk [vmem:[%s303] sm:$0xff] %vm301, 0
        %v305 = vld [vmem:[%s277] sm:$0xf]
        %v306 = vld [vmem:[%s277 + $0x4] sm:$0xf]
        %v307 = vld [vmem:[%s277 + $0x8] sm:$0xf]
        %v308 = vld [vmem:[%s277 + $0xc] sm:$0xf]
        %v309 = vld [vmem:[%s277 + $0x10] sm:$0xf]
        %v310 = vld [vmem:[%s277 + $0x14] sm:$0xf]
        %v311 = vld [vmem:[%s277 + $0x18] sm:$0xf]
        %v312 = vld [vmem:[%s277 + $0x1c] sm:$0xf]
        %v313 = vld [vmem:[%s277 + $0x20] sm:$0xf]
        %v314 = vld [vmem:[%s277 + $0x24] sm:$0xf]
        %v315 = vld [vmem:[%s277 + $0x28] sm:$0xf]
        %v316 = vld [vmem:[%s277 + $0x2c] sm:$0xf]
        %v317 = vld [vmem:[%s277 + $0x30] sm:$0xf]
        %v318 = vld [vmem:[%s277 + $0x34] sm:$0xf]
        %v319 = vld [vmem:[%s277 + $0x38] sm:$0xf]
        %v320 = vld [vmem:[%s277 + $0x3c] sm:$0xf]
        %v321 = vld [vmem:[%s277 + $0x40] sm:$0xf]
        %v322 = vld [vmem:[%s277 + $0x44] sm:$0xf]
        %v323 = vld [vmem:[%s277 + $0x48] sm:$0xf]
        %v324 = vld [vmem:[%s277 + $0x4c] sm:$0xf]
        %v325 = vld [vmem:[%s277 + $0x50] sm:$0xf]
        %v326 = vld [vmem:[%s277 + $0x54] sm:$0xf]
        %v327 = vld [vmem:[%s277 + $0x58] sm:$0xf]
        %v328 = vld [vmem:[%s277 + $0x5c] sm:$0xf]
        %v329 = vld [vmem:[%s277 + $0x60] sm:$0xf]
        %v330 = vld [vmem:[%s277 + $0x64] sm:$0xf]
        %v331 = vld [vmem:[%s277 + $0x68] sm:$0xf]
        %v332 = vld [vmem:[%s277 + $0x6c] sm:$0xf]
        %v333 = vld [vmem:[%s277 + $0x70] sm:$0xf]
        %v334 = vld [vmem:[%s277 + $0x74] sm:$0xf]
        %v335 = vld [vmem:[%s277 + $0x78] sm:$0xf]
        %v336 = vld [vmem:[%s277 + $0x7c] sm:$0xf]
        %v337 = vunpack.c.l.bf16 %v305
        %v338 = vunpack.c.l.bf16 %v306
        %v339 = vunpack.c.l.bf16 %v307
        %v340 = vunpack.c.l.bf16 %v308
        %v341 = vunpack.c.l.bf16 %v309
        %v342 = vunpack.c.l.bf16 %v310
        %v343 = vunpack.c.l.bf16 %v311
        %v344 = vunpack.c.l.bf16 %v312
        %v345 = vunpack.c.l.bf16 %v313
        %v346 = vunpack.c.l.bf16 %v314
        %v347 = vunpack.c.l.bf16 %v315
        %v348 = vunpack.c.l.bf16 %v316
        %v349 = vunpack.c.l.bf16 %v317
        %v350 = vunpack.c.l.bf16 %v318
        %v351 = vunpack.c.l.bf16 %v319
        %v352 = vunpack.c.l.bf16 %v320
        %v353 = vunpack.c.l.bf16 %v321
        %v354 = vunpack.c.l.bf16 %v322
        %v355 = vunpack.c.l.bf16 %v323
        %v356 = vunpack.c.l.bf16 %v324
        %v357 = vunpack.c.l.bf16 %v325
        %v358 = vunpack.c.l.bf16 %v326
        %v359 = vunpack.c.l.bf16 %v327
        %v360 = vunpack.c.l.bf16 %v328
        %v361 = vunpack.c.l.bf16 %v329
        %v362 = vunpack.c.l.bf16 %v330
        %v363 = vunpack.c.l.bf16 %v331
        %v364 = vunpack.c.l.bf16 %v332
        %v365 = vunpack.c.l.bf16 %v333
        %v366 = vunpack.c.l.bf16 %v334
        %v367 = vunpack.c.l.bf16 %v335
        %v368 = vunpack.c.l.bf16 %v336
        %v369 = vld [vmem:[%s1] sm:$0x1]
        %v371 = vlaneseq
        %v372 = vshrl.u32 %v371, 7
        %v373 = vsub.s32 0, %v372
        %v374 = vrot.slane %v369, %v373
        %v376 = vmul.f32 %v337, %v374
        %v377 = vmul.f32 %v338, %v374
        %v378 = vmul.f32 %v339, %v374
        %v379 = vmul.f32 %v340, %v374
        %v380 = vmul.f32 %v341, %v374
        %v381 = vmul.f32 %v342, %v374
        %v382 = vmul.f32 %v343, %v374
        %v383 = vmul.f32 %v344, %v374
        %v384 = vmul.f32 %v345, %v374
        %v385 = vmul.f32 %v346, %v374
        %v386 = vmul.f32 %v347, %v374
        %v387 = vmul.f32 %v348, %v374
        %v388 = vmul.f32 %v349, %v374
        %v389 = vmul.f32 %v350, %v374
        %v390 = vmul.f32 %v351, %v374
        %v391 = vmul.f32 %v352, %v374
        %v392 = vmul.f32 %v353, %v374
        %v393 = vmul.f32 %v354, %v374
        %v394 = vmul.f32 %v355, %v374
        %v395 = vmul.f32 %v356, %v374
        %v396 = vmul.f32 %v357, %v374
        %v397 = vmul.f32 %v358, %v374
        %v398 = vmul.f32 %v359, %v374
        %v399 = vmul.f32 %v360, %v374
        %v400 = vmul.f32 %v361, %v374
        %v401 = vmul.f32 %v362, %v374
        %v402 = vmul.f32 %v363, %v374
        %v403 = vmul.f32 %v364, %v374
        %v404 = vmul.f32 %v365, %v374
        %v405 = vmul.f32 %v366, %v374
        %v406 = vmul.f32 %v367, %v374
        %v407 = vmul.f32 %v368, %v374
        %v408 = vld [vmem:[%s2] sm:$0x1]
        %v410 = vlaneseq
        %v411 = vshrl.u32 %v410, 7
        %v412 = vsub.s32 0, %v411
        %v413 = vrot.slane %v408, %v412
        %v415 = vadd.f32 %v376, %v413
        %v416 = vadd.f32 %v377, %v413
        %v417 = vadd.f32 %v378, %v413
        %v418 = vadd.f32 %v379, %v413
        %v419 = vadd.f32 %v380, %v413
        %v420 = vadd.f32 %v381, %v413
        %v421 = vadd.f32 %v382, %v413
        %v422 = vadd.f32 %v383, %v413
        %v423 = vadd.f32 %v384, %v413
        %v424 = vadd.f32 %v385, %v413
        %v425 = vadd.f32 %v386, %v413
        %v426 = vadd.f32 %v387, %v413
        %v427 = vadd.f32 %v388, %v413
        %v428 = vadd.f32 %v389, %v413
        %v429 = vadd.f32 %v390, %v413
        %v430 = vadd.f32 %v391, %v413
        %v431 = vadd.f32 %v392, %v413
        %v432 = vadd.f32 %v393, %v413
        %v433 = vadd.f32 %v394, %v413
        %v434 = vadd.f32 %v395, %v413
        %v435 = vadd.f32 %v396, %v413
        %v436 = vadd.f32 %v397, %v413
        %v437 = vadd.f32 %v398, %v413
        %v438 = vadd.f32 %v399, %v413
        %v439 = vadd.f32 %v400, %v413
        %v440 = vadd.f32 %v401, %v413
        %v441 = vadd.f32 %v402, %v413
        %v442 = vadd.f32 %v403, %v413
        %v443 = vadd.f32 %v404, %v413
        %v444 = vadd.f32 %v405, %v413
        %v445 = vadd.f32 %v406, %v413
        %v446 = vadd.f32 %v407, %v413
        %v447 = vpack.c.bf16 %v416, %v415
        %v448 = vpack.c.bf16 %v418, %v417
        %v449 = vpack.c.bf16 %v420, %v419
        %v450 = vpack.c.bf16 %v422, %v421
        %v451 = vpack.c.bf16 %v424, %v423
        %v452 = vpack.c.bf16 %v426, %v425
        %v453 = vpack.c.bf16 %v428, %v427
        %v454 = vpack.c.bf16 %v430, %v429
        %v455 = vpack.c.bf16 %v432, %v431
        %v456 = vpack.c.bf16 %v434, %v433
        %v457 = vpack.c.bf16 %v436, %v435
        %v458 = vpack.c.bf16 %v438, %v437
        %v459 = vpack.c.bf16 %v440, %v439
        %v460 = vpack.c.bf16 %v442, %v441
        %v461 = vpack.c.bf16 %v444, %v443
        %v462 = vpack.c.bf16 %v446, %v445
        %s463 = scalar_lea.vmem [#allocation2], 8
        %464 = vst.msk [vmem:[%s463] sm:$0xff] %vm301, %v447
        %465 = vst.msk [vmem:[%s463 + $0x8] sm:$0xff] %vm301, %v448
        %466 = vst.msk [vmem:[%s463 + $0x10] sm:$0xff] %vm301, %v449
        %467 = vst.msk [vmem:[%s463 + $0x18] sm:$0xff] %vm301, %v450
        %468 = vst.msk [vmem:[%s463 + $0x20] sm:$0xff] %vm301, %v451
        %469 = vst.msk [vmem:[%s463 + $0x28] sm:$0xff] %vm301, %v452
        %470 = vst.msk [vmem:[%s463 + $0x30] sm:$0xff] %vm301, %v453
        %471 = vst.msk [vmem:[%s463 + $0x38] sm:$0xff] %vm301, %v454
        %472 = vst.msk [vmem:[%s463 + $0x40] sm:$0xff] %vm301, %v455
        %473 = vst.msk [vmem:[%s463 + $0x48] sm:$0xff] %vm301, %v456
        %474 = vst.msk [vmem:[%s463 + $0x50] sm:$0xff] %vm301, %v457
        %475 = vst.msk [vmem:[%s463 + $0x58] sm:$0xff] %vm301, %v458
        %476 = vst.msk [vmem:[%s463 + $0x60] sm:$0xff] %vm301, %v459
        %477 = vst.msk [vmem:[%s463 + $0x68] sm:$0xff] %vm301, %v460
        %478 = vst.msk [vmem:[%s463 + $0x70] sm:$0xff] %vm301, %v461
        %479 = vst.msk [vmem:[%s463 + $0x78] sm:$0xff] %vm301, %v462
      $region44: #{_lambda_.3} parent=39 // pred_fallthru
        _
      %s480 = smul.u32 %s23, 16
      %s481 = smul.addr %s480, 8
      %s482 = scalar_lea.vmem [#allocation2], %s481
      %v483 = vld [vmem:[%s482] sm:$0xff]
      %v484 = vld [vmem:[%s482 + $0x8] sm:$0xff]
      %v485 = vld [vmem:[%s482 + $0x10] sm:$0xff]
      %v486 = vld [vmem:[%s482 + $0x18] sm:$0xff]
      %v487 = vld [vmem:[%s482 + $0x20] sm:$0xff]
      %v488 = vld [vmem:[%s482 + $0x28] sm:$0xff]
      %v489 = vld [vmem:[%s482 + $0x30] sm:$0xff]
      %v490 = vld [vmem:[%s482 + $0x38] sm:$0xff]
      %v491 = vld [vmem:[%s482 + $0x40] sm:$0xff]
      %v492 = vld [vmem:[%s482 + $0x48] sm:$0xff]
      %v493 = vld [vmem:[%s482 + $0x50] sm:$0xff]
      %v494 = vld [vmem:[%s482 + $0x58] sm:$0xff]
      %v495 = vld [vmem:[%s482 + $0x60] sm:$0xff]
      %v496 = vld [vmem:[%s482 + $0x68] sm:$0xff]
      %v497 = vld [vmem:[%s482 + $0x70] sm:$0xff]
      %v498 = vld [vmem:[%s482 + $0x78] sm:$0xff]
      %v500 = vshrl.u32 %v483, 16
      %v502 = vrot.slane %v500, 7
      %v503 = vshll.u32 %v483, 16
      %v505 = vor.u32 %v502, %v503
      %v507 = vshrl.u32 %v484, 16
      %v509 = vrot.slane %v507, 7
      %v510 = vshll.u32 %v484, 16
      %v512 = vor.u32 %v509, %v510
      %v514 = vshrl.u32 %v485, 16
      %v516 = vrot.slane %v514, 7
      %v517 = vshll.u32 %v485, 16
      %v519 = vor.u32 %v516, %v517
      %v521 = vshrl.u32 %v486, 16
      %v523 = vrot.slane %v521, 7
      %v524 = vshll.u32 %v486, 16
      %v526 = vor.u32 %v523, %v524
      %v528 = vshrl.u32 %v487, 16
      %v530 = vrot.slane %v528, 7
      %v531 = vshll.u32 %v487, 16
      %v533 = vor.u32 %v530, %v531
      %v535 = vshrl.u32 %v488, 16
      %v537 = vrot.slane %v535, 7
      %v538 = vshll.u32 %v488, 16
      %v540 = vor.u32 %v537, %v538
      %v542 = vshrl.u32 %v489, 16
      %v544 = vrot.slane %v542, 7
      %v545 = vshll.u32 %v489, 16
      %v547 = vor.u32 %v544, %v545
      %v549 = vshrl.u32 %v490, 16
      %v551 = vrot.slane %v549, 7
      %v552 = vshll.u32 %v490, 16
      %v554 = vor.u32 %v551, %v552
      %v556 = vshrl.u32 %v491, 16
      %v558 = vrot.slane %v556, 7
      %v559 = vshll.u32 %v491, 16
      %v561 = vor.u32 %v558, %v559
      %v563 = vshrl.u32 %v492, 16
      %v565 = vrot.slane %v563, 7
      %v566 = vshll.u32 %v492, 16
      %v568 = vor.u32 %v565, %v566
      %v570 = vshrl.u32 %v493, 16
      %v572 = vrot.slane %v570, 7
      %v573 = vshll.u32 %v493, 16
      %v575 = vor.u32 %v572, %v573
      %v577 = vshrl.u32 %v494, 16
      %v579 = vrot.slane %v577, 7
      %v580 = vshll.u32 %v494, 16
      %v582 = vor.u32 %v579, %v580
      %v584 = vshrl.u32 %v495, 16
      %v586 = vrot.slane %v584, 7
      %v587 = vshll.u32 %v495, 16
      %v589 = vor.u32 %v586, %v587
      %v591 = vshrl.u32 %v496, 16
      %v593 = vrot.slane %v591, 7
      %v594 = vshll.u32 %v496, 16
      %v596 = vor.u32 %v593, %v594
      %v598 = vshrl.u32 %v497, 16
      %v600 = vrot.slane %v598, 7
      %v601 = vshll.u32 %v497, 16
      %v603 = vor.u32 %v600, %v601
      %v605 = vshrl.u32 %v498, 16
      %v607 = vrot.slane %v605, 7
      %v608 = vshll.u32 %v498, 16
      %v610 = vor.u32 %v607, %v608
      %vm627 = vcmask 1040384
      %vm628 = vsmask.f32 256
      %vm629 = vmand %vm627, %vm628
      %v630 = vsel %vm629, 0, %v505
      %v631 = vsel %vm629, 0, %v512
      %v632 = vsel %vm629, 0, %v519
      %v633 = vsel %vm629, 0, %v526
      %v634 = vsel %vm629, 0, %v533
      %v635 = vsel %vm629, 0, %v540
      %v636 = vsel %vm629, 0, %v547
      %v637 = vsel %vm629, 0, %v554
      %v638 = vsel %vm629, 0, %v561
      %v639 = vsel %vm629, 0, %v568
      %v640 = vsel %vm629, 0, %v575
      %v641 = vsel %vm629, 0, %v582
      %v642 = vsel %vm629, 0, %v589
      %v643 = vsel %vm629, 0, %v596
      %v644 = vsel %vm629, 0, %v603
      %v645 = vsel %vm629, 0, %v610
      %v646 = vrot.slane %v503, 1
      %v647 = vor.u32 %v500, %v646
      %v648 = vrot.slane %v510, 1
      %v649 = vor.u32 %v507, %v648
      %v650 = vrot.slane %v517, 1
      %v651 = vor.u32 %v514, %v650
      %v652 = vrot.slane %v524, 1
      %v653 = vor.u32 %v521, %v652
      %v654 = vrot.slane %v531, 1
      %v655 = vor.u32 %v528, %v654
      %v656 = vrot.slane %v538, 1
      %v657 = vor.u32 %v535, %v656
      %v658 = vrot.slane %v545, 1
      %v659 = vor.u32 %v542, %v658
      %v660 = vrot.slane %v552, 1
      %v661 = vor.u32 %v549, %v660
      %v662 = vrot.slane %v559, 1
      %v663 = vor.u32 %v556, %v662
      %v664 = vrot.slane %v566, 1
      %v665 = vor.u32 %v563, %v664
      %v666 = vrot.slane %v573, 1
      %v667 = vor.u32 %v570, %v666
      %v668 = vrot.slane %v580, 1
      %v669 = vor.u32 %v577, %v668
      %v670 = vrot.slane %v587, 1
      %v671 = vor.u32 %v584, %v670
      %v672 = vrot.slane %v594, 1
      %v673 = vor.u32 %v591, %v672
      %v674 = vrot.slane %v601, 1
      %v675 = vor.u32 %v598, %v674
      %v676 = vrot.slane %v608, 1
      %v677 = vor.u32 %v605, %v676
      %vm694 = vcmask 1047552
      %vm695 = vsmask.f32 7424
      %vm696 = vmand %vm694, %vm695
      %v697 = vsel %vm696, %v647, 0
      %v698 = vsel %vm696, %v649, 0
      %v699 = vsel %vm696, %v651, 0
      %v700 = vsel %vm696, %v653, 0
      %v701 = vsel %vm696, %v655, 0
      %v702 = vsel %vm696, %v657, 0
      %v703 = vsel %vm696, %v659, 0
      %v704 = vsel %vm696, %v661, 0
      %v705 = vsel %vm696, %v663, 0
      %v706 = vsel %vm696, %v665, 0
      %v707 = vsel %vm696, %v667, 0
      %v708 = vsel %vm696, %v669, 0
      %v709 = vsel %vm696, %v671, 0
      %v710 = vsel %vm696, %v673, 0
      %v711 = vsel %vm696, %v675, 0
      %v712 = vsel %vm696, %v677, 0
      %729 = vrot.lane.b32.xlu0 %v483, 8
      %v730 = vpop.permute.xlu0 %729
      %731 = vrot.lane.b32.xlu0 %v484, 8
      %v732 = vpop.permute.xlu0 %731
      %733 = vrot.lane.b32.xlu0 %v485, 8
      %v734 = vpop.permute.xlu0 %733
      %735 = vrot.lane.b32.xlu0 %v486, 8
      %v736 = vpop.permute.xlu0 %735
      %737 = vrot.lane.b32.xlu0 %v487, 8
      %v738 = vpop.permute.xlu0 %737
      %739 = vrot.lane.b32.xlu0 %v488, 8
      %v740 = vpop.permute.xlu0 %739
      %741 = vrot.lane.b32.xlu0 %v489, 8
      %v742 = vpop.permute.xlu0 %741
      %743 = vrot.lane.b32.xlu0 %v490, 8
      %v744 = vpop.permute.xlu0 %743
      %745 = vrot.lane.b32.xlu0 %v491, 8
      %v746 = vpop.permute.xlu0 %745
      %747 = vrot.lane.b32.xlu0 %v492, 8
      %v748 = vpop.permute.xlu0 %747
      %749 = vrot.lane.b32.xlu0 %v493, 8
      %v750 = vpop.permute.xlu0 %749
      %751 = vrot.lane.b32.xlu0 %v494, 8
      %v752 = vpop.permute.xlu0 %751
      %753 = vrot.lane.b32.xlu0 %v495, 8
      %v754 = vpop.permute.xlu0 %753
      %755 = vrot.lane.b32.xlu0 %v496, 8
      %v756 = vpop.permute.xlu0 %755
      %757 = vrot.lane.b32.xlu0 %v497, 8
      %v758 = vpop.permute.xlu0 %757
      %759 = vrot.lane.b32.xlu0 %v498, 8
      %v760 = vpop.permute.xlu0 %759
      %777 = vrot.lane.b32.xlu0 %v697, 16
      %v778 = vpop.permute.xlu0 %777
      %779 = vrot.lane.b32.xlu0 %v698, 16
      %v780 = vpop.permute.xlu0 %779
      %781 = vrot.lane.b32.xlu0 %v699, 16
      %v782 = vpop.permute.xlu0 %781
      %783 = vrot.lane.b32.xlu0 %v700, 16
      %v784 = vpop.permute.xlu0 %783
      %785 = vrot.lane.b32.xlu0 %v701, 16
      %v786 = vpop.permute.xlu0 %785
      %787 = vrot.lane.b32.xlu0 %v702, 16
      %v788 = vpop.permute.xlu0 %787
      %789 = vrot.lane.b32.xlu0 %v703, 16
      %v790 = vpop.permute.xlu0 %789
      %791 = vrot.lane.b32.xlu0 %v704, 16
      %v792 = vpop.permute.xlu0 %791
      %793 = vrot.lane.b32.xlu0 %v705, 16
      %v794 = vpop.permute.xlu0 %793
      %795 = vrot.lane.b32.xlu0 %v706, 16
      %v796 = vpop.permute.xlu0 %795
      %797 = vrot.lane.b32.xlu0 %v707, 16
      %v798 = vpop.permute.xlu0 %797
      %799 = vrot.lane.b32.xlu0 %v708, 16
      %v800 = vpop.permute.xlu0 %799
      %801 = vrot.lane.b32.xlu0 %v709, 16
      %v802 = vpop.permute.xlu0 %801
      %803 = vrot.lane.b32.xlu0 %v710, 16
      %v804 = vpop.permute.xlu0 %803
      %805 = vrot.lane.b32.xlu0 %v711, 16
      %v806 = vpop.permute.xlu0 %805
      %807 = vrot.lane.b32.xlu0 %v712, 16
      %v808 = vpop.permute.xlu0 %807
      %vm809 = vcmask 64512
      %v812 = vsel %vm809, %v630, %v730
      %v815 = vsel %vm809, %v631, %v732
      %v818 = vsel %vm809, %v632, %v734
      %v821 = vsel %vm809, %v633, %v736
      %v824 = vsel %vm809, %v634, %v738
      %v827 = vsel %vm809, %v635, %v740
      %v830 = vsel %vm809, %v636, %v742
      %v833 = vsel %vm809, %v637, %v744
      %v836 = vsel %vm809, %v638, %v746
      %v839 = vsel %vm809, %v639, %v748
      %v842 = vsel %vm809, %v640, %v750
      %v845 = vsel %vm809, %v641, %v752
      %v848 = vsel %vm809, %v642, %v754
      %v851 = vsel %vm809, %v643, %v756
      %v854 = vsel %vm809, %v644, %v758
      %v857 = vsel %vm809, %v645, %v760
      %vm858 = vcmask 130048
      %v860 = vsel %vm858, %v812, %v778
      %v862 = vsel %vm858, %v815, %v780
      %v864 = vsel %vm858, %v818, %v782
      %v866 = vsel %vm858, %v821, %v784
      %v868 = vsel %vm858, %v824, %v786
      %v870 = vsel %vm858, %v827, %v788
      %v872 = vsel %vm858, %v830, %v790
      %v874 = vsel %vm858, %v833, %v792
      %v876 = vsel %vm858, %v836, %v794
      %v878 = vsel %vm858, %v839, %v796
      %v880 = vsel %vm858, %v842, %v798
      %v882 = vsel %vm858, %v845, %v800
      %v884 = vsel %vm858, %v848, %v802
      %v886 = vsel %vm858, %v851, %v804
      %v888 = vsel %vm858, %v854, %v806
      %v890 = vsel %vm858, %v857, %v808
      %v891 = vld [vmem:[%s3] sm:$0xf]
      %v892 = vld [vmem:[%s3 + $0x4] sm:$0xf]
      %v893 = vld [vmem:[%s3 + $0x8] sm:$0xf]
      %s894 = sadd.s32 %s480, 1
      %s895 = smul.addr %s894, 8
      %s896 = scalar_lea.vmem [#allocation2], %s895
      %v897 = vld [vmem:[%s896] sm:$0xff]
      %v898 = vld [vmem:[%s896 + $0x8] sm:$0xff]
      %v899 = vld [vmem:[%s896 + $0x10] sm:$0xff]
      %v900 = vld [vmem:[%s896 + $0x18] sm:$0xff]
      %v901 = vld [vmem:[%s896 + $0x20] sm:$0xff]
      %v902 = vld [vmem:[%s896 + $0x28] sm:$0xff]
      %v903 = vld [vmem:[%s896 + $0x30] sm:$0xff]
      %v904 = vld [vmem:[%s896 + $0x38] sm:$0xff]
      %v905 = vld [vmem:[%s896 + $0x40] sm:$0xff]
      %v906 = vld [vmem:[%s896 + $0x48] sm:$0xff]
      %v907 = vld [vmem:[%s896 + $0x50] sm:$0xff]
      %v908 = vld [vmem:[%s896 + $0x58] sm:$0xff]
      %v909 = vld [vmem:[%s896 + $0x60] sm:$0xff]
      %v910 = vld [vmem:[%s896 + $0x68] sm:$0xff]
      %v911 = vld [vmem:[%s896 + $0x70] sm:$0xff]
      %v912 = vld [vmem:[%s896 + $0x78] sm:$0xff]
      %v914 = vshrl.u32 %v897, 16
      %v916 = vrot.slane %v914, 7
      %v917 = vshll.u32 %v897, 16
      %v919 = vor.u32 %v916, %v917
      %v921 = vshrl.u32 %v898, 16
      %v923 = vrot.slane %v921, 7
      %v924 = vshll.u32 %v898, 16
      %v926 = vor.u32 %v923, %v924
      %v928 = vshrl.u32 %v899, 16
      %v930 = vrot.slane %v928, 7
      %v931 = vshll.u32 %v899, 16
      %v933 = vor.u32 %v930, %v931
      %v935 = vshrl.u32 %v900, 16
      %v937 = vrot.slane %v935, 7
      %v938 = vshll.u32 %v900, 16
      %v940 = vor.u32 %v937, %v938
      %v942 = vshrl.u32 %v901, 16
      %v944 = vrot.slane %v942, 7
      %v945 = vshll.u32 %v901, 16
      %v947 = vor.u32 %v944, %v945
      %v949 = vshrl.u32 %v902, 16
      %v951 = vrot.slane %v949, 7
      %v952 = vshll.u32 %v902, 16
      %v954 = vor.u32 %v951, %v952
      %v956 = vshrl.u32 %v903, 16
      %v958 = vrot.slane %v956, 7
      %v959 = vshll.u32 %v903, 16
      %v961 = vor.u32 %v958, %v959
      %v963 = vshrl.u32 %v904, 16
      %v965 = vrot.slane %v963, 7
      %v966 = vshll.u32 %v904, 16
      %v968 = vor.u32 %v965, %v966
      %v970 = vshrl.u32 %v905, 16
      %v972 = vrot.slane %v970, 7
      %v973 = vshll.u32 %v905, 16
      %v975 = vor.u32 %v972, %v973
      %v977 = vshrl.u32 %v906, 16
      %v979 = vrot.slane %v977, 7
      %v980 = vshll.u32 %v906, 16
      %v982 = vor.u32 %v979, %v980
      %v984 = vshrl.u32 %v907, 16
      %v986 = vrot.slane %v984, 7
      %v987 = vshll.u32 %v907, 16
      %v989 = vor.u32 %v986, %v987
      %v991 = vshrl.u32 %v908, 16
      %v993 = vrot.slane %v991, 7
      %v994 = vshll.u32 %v908, 16
      %v996 = vor.u32 %v993, %v994
      %v998 = vshrl.u32 %v909, 16
      %v1000 = vrot.slane %v998, 7
      %v1001 = vshll.u32 %v909, 16
      %v1003 = vor.u32 %v1000, %v1001
      %v1005 = vshrl.u32 %v910, 16
      %v1007 = vrot.slane %v1005, 7
      %v1008 = vshll.u32 %v910, 16
      %v1010 = vor.u32 %v1007, %v1008
      %v1012 = vshrl.u32 %v911, 16
      %v1014 = vrot.slane %v1012, 7
      %v1015 = vshll.u32 %v911, 16
      %v1017 = vor.u32 %v1014, %v1015
      %v1019 = vshrl.u32 %v912, 16
      %v1021 = vrot.slane %v1019, 7
      %v1022 = vshll.u32 %v912, 16
      %v1024 = vor.u32 %v1021, %v1022
      %v1041 = vsel %vm629, 0, %v919
      %v1042 = vsel %vm629, 0, %v926
      %v1043 = vsel %vm629, 0, %v933
      %v1044 = vsel %vm629, 0, %v940
      %v1045 = vsel %vm629, 0, %v947
      %v1046 = vsel %vm629, 0, %v954
      %v1047 = vsel %vm629, 0, %v961
      %v1048 = vsel %vm629, 0, %v968
      %v1049 = vsel %vm629, 0, %v975
      %v1050 = vsel %vm629, 0, %v982
      %v1051 = vsel %vm629, 0, %v989
      %v1052 = vsel %vm629, 0, %v996
      %v1053 = vsel %vm629, 0, %v1003
      %v1054 = vsel %vm629, 0, %v1010
      %v1055 = vsel %vm629, 0, %v1017
      %v1056 = vsel %vm629, 0, %v1024
      %v1057 = vrot.slane %v917, 1
      %v1058 = vor.u32 %v914, %v1057
      %v1059 = vrot.slane %v924, 1
      %v1060 = vor.u32 %v921, %v1059
      %v1061 = vrot.slane %v931, 1
      %v1062 = vor.u32 %v928, %v1061
      %v1063 = vrot.slane %v938, 1
      %v1064 = vor.u32 %v935, %v1063
      %v1065 = vrot.slane %v945, 1
      %v1066 = vor.u32 %v942, %v1065
      %v1067 = vrot.slane %v952, 1
      %v1068 = vor.u32 %v949, %v1067
      %v1069 = vrot.slane %v959, 1
      %v1070 = vor.u32 %v956, %v1069
      %v1071 = vrot.slane %v966, 1
      %v1072 = vor.u32 %v963, %v1071
      %v1073 = vrot.slane %v973, 1
      %v1074 = vor.u32 %v970, %v1073
      %v1075 = vrot.slane %v980, 1
      %v1076 = vor.u32 %v977, %v1075
      %v1077 = vrot.slane %v987, 1
      %v1078 = vor.u32 %v984, %v1077
      %v1079 = vrot.slane %v994, 1
      %v1080 = vor.u32 %v991, %v1079
      %v1081 = vrot.slane %v1001, 1
      %v1082 = vor.u32 %v998, %v1081
      %v1083 = vrot.slane %v1008, 1
      %v1084 = vor.u32 %v1005, %v1083
      %v1085 = vrot.slane %v1015, 1
      %v1086 = vor.u32 %v1012, %v1085
      %v1087 = vrot.slane %v1022, 1
      %v1088 = vor.u32 %v1019, %v1087
      %v1105 = vsel %vm696, %v1058, 0
      %v1106 = vsel %vm696, %v1060, 0
      %v1107 = vsel %vm696, %v1062, 0
      %v1108 = vsel %vm696, %v1064, 0
      %v1109 = vsel %vm696, %v1066, 0
      %v1110 = vsel %vm696, %v1068, 0
      %v1111 = vsel %vm696, %v1070, 0
      %v1112 = vsel %vm696, %v1072, 0
      %v1113 = vsel %vm696, %v1074, 0
      %v1114 = vsel %vm696, %v1076, 0
      %v1115 = vsel %vm696, %v1078, 0
      %v1116 = vsel %vm696, %v1080, 0
      %v1117 = vsel %vm696, %v1082, 0
      %v1118 = vsel %vm696, %v1084, 0
      %v1119 = vsel %vm696, %v1086, 0
      %v1120 = vsel %vm696, %v1088, 0
      %1137 = vrot.lane.b32.xlu0 %v897, 8
      %v1138 = vpop.permute.xlu0 %1137
      %1139 = vrot.lane.b32.xlu0 %v898, 8
      %v1140 = vpop.permute.xlu0 %1139
      %1141 = vrot.lane.b32.xlu0 %v899, 8
      %v1142 = vpop.permute.xlu0 %1141
      %1143 = vrot.lane.b32.xlu0 %v900, 8
      %v1144 = vpop.permute.xlu0 %1143
      %1145 = vrot.lane.b32.xlu0 %v901, 8
      %v1146 = vpop.permute.xlu0 %1145
      %1147 = vrot.lane.b32.xlu0 %v902, 8
      %v1148 = vpop.permute.xlu0 %1147
      %1149 = vrot.lane.b32.xlu0 %v903, 8
      %v1150 = vpop.permute.xlu0 %1149
      %1151 = vrot.lane.b32.xlu0 %v904, 8
      %v1152 = vpop.permute.xlu0 %1151
      %1153 = vrot.lane.b32.xlu0 %v905, 8
      %v1154 = vpop.permute.xlu0 %1153
      %1155 = vrot.lane.b32.xlu0 %v906, 8
      %v1156 = vpop.permute.xlu0 %1155
      %1157 = vrot.lane.b32.xlu0 %v907, 8
      %v1158 = vpop.permute.xlu0 %1157
      %1159 = vrot.lane.b32.xlu0 %v908, 8
      %v1160 = vpop.permute.xlu0 %1159
      %1161 = vrot.lane.b32.xlu0 %v909, 8
      %v1162 = vpop.permute.xlu0 %1161
      %1163 = vrot.lane.b32.xlu0 %v910, 8
      %v1164 = vpop.permute.xlu0 %1163
      %1165 = vrot.lane.b32.xlu0 %v911, 8
      %v1166 = vpop.permute.xlu0 %1165
      %1167 = vrot.lane.b32.xlu0 %v912, 8
      %v1168 = vpop.permute.xlu0 %1167
      %1185 = vrot.lane.b32.xlu0 %v1105, 16
      %v1186 = vpop.permute.xlu0 %1185
      %1187 = vrot.lane.b32.xlu0 %v1106, 16
      %v1188 = vpop.permute.xlu0 %1187
      %1189 = vrot.lane.b32.xlu0 %v1107, 16
      %v1190 = vpop.permute.xlu0 %1189
      %1191 = vrot.lane.b32.xlu0 %v1108, 16
      %v1192 = vpop.permute.xlu0 %1191
      %1193 = vrot.lane.b32.xlu0 %v1109, 16
      %v1194 = vpop.permute.xlu0 %1193
      %1195 = vrot.lane.b32.xlu0 %v1110, 16
      %v1196 = vpop.permute.xlu0 %1195
      %1197 = vrot.lane.b32.xlu0 %v1111, 16
      %v1198 = vpop.permute.xlu0 %1197
      %1199 = vrot.lane.b32.xlu0 %v1112, 16
      %v1200 = vpop.permute.xlu0 %1199
      %1201 = vrot.lane.b32.xlu0 %v1113, 16
      %v1202 = vpop.permute.xlu0 %1201
      %1203 = vrot.lane.b32.xlu0 %v1114, 16
      %v1204 = vpop.permute.xlu0 %1203
      %1205 = vrot.lane.b32.xlu0 %v1115, 16
      %v1206 = vpop.permute.xlu0 %1205
      %1207 = vrot.lane.b32.xlu0 %v1116, 16
      %v1208 = vpop.permute.xlu0 %1207
      %1209 = vrot.lane.b32.xlu0 %v1117, 16
      %v1210 = vpop.permute.xlu0 %1209
      %1211 = vrot.lane.b32.xlu0 %v1118, 16
      %v1212 = vpop.permute.xlu0 %1211
      %1213 = vrot.lane.b32.xlu0 %v1119, 16
      %v1214 = vpop.permute.xlu0 %1213
      %1215 = vrot.lane.b32.xlu0 %v1120, 16
      %v1216 = vpop.permute.xlu0 %1215
      %v1219 = vsel %vm809, %v1041, %v1138
      %v1222 = vsel %vm809, %v1042, %v1140
      %v1225 = vsel %vm809, %v1043, %v1142
      %v1228 = vsel %vm809, %v1044, %v1144
      %v1231 = vsel %vm809, %v1045, %v1146
      %v1234 = vsel %vm809, %v1046, %v1148
      %v1237 = vsel %vm809, %v1047, %v1150
      %v1240 = vsel %vm809, %v1048, %v1152
      %v1243 = vsel %vm809, %v1049, %v1154
      %v1246 = vsel %vm809, %v1050, %v1156
      %v1249 = vsel %vm809, %v1051, %v1158
      %v1252 = vsel %vm809, %v1052, %v1160
      %v1255 = vsel %vm809, %v1053, %v1162
      %v1258 = vsel %vm809, %v1054, %v1164
      %v1261 = vsel %vm809, %v1055, %v1166
      %v1264 = vsel %vm809, %v1056, %v1168
      %v1266 = vsel %vm858, %v1219, %v1186
      %v1268 = vsel %vm858, %v1222, %v1188
      %v1270 = vsel %vm858, %v1225, %v1190
      %v1272 = vsel %vm858, %v1228, %v1192
      %v1274 = vsel %vm858, %v1231, %v1194
      %v1276 = vsel %vm858, %v1234, %v1196
      %v1278 = vsel %vm858, %v1237, %v1198
      %v1280 = vsel %vm858, %v1240, %v1200
      %v1282 = vsel %vm858, %v1243, %v1202
      %v1284 = vsel %vm858, %v1246, %v1204
      %v1286 = vsel %vm858, %v1249, %v1206
      %v1288 = vsel %vm858, %v1252, %v1208
      %v1290 = vsel %vm858, %v1255, %v1210
      %v1292 = vsel %vm858, %v1258, %v1212
      %v1294 = vsel %vm858, %v1261, %v1214
      %v1296 = vsel %vm858, %v1264, %v1216
      %s1297 = scalar_lea.vmem %s3, 12
      %v1298 = vld [vmem:[%s1297] sm:$0xf]
      %v1299 = vld [vmem:[%s1297 + $0x4] sm:$0xf]
      %v1300 = vld [vmem:[%s1297 + $0x8] sm:$0xf]
      %v1304 = vunpack.c.l.b16 %v1298
      %v1305 = vunpack.c.l.b16 %v1299
      %v1306 = vunpack.c.l.b16 %v1300
      %v1307 = vpack.c.b16 %v1305, %v1304
      %v1308 = vpack.c.b16 %v1306, %v1306
      %vm1310 = vcmask 195584
      %v1311 = vsel %vm1310, %v1266, 0
      %v1313 = vsel %vm1310, %v1268, 0
      %v1315 = vsel %vm1310, %v1270, 0
      %v1317 = vsel %vm1310, %v1272, 0
      %v1319 = vsel %vm1310, %v1274, 0
      %v1321 = vsel %vm1310, %v1276, 0
      %v1323 = vsel %vm1310, %v1278, 0
      %v1325 = vsel %vm1310, %v1280, 0
      %v1327 = vsel %vm1310, %v1282, 0
      %v1329 = vsel %vm1310, %v1284, 0
      %v1331 = vsel %vm1310, %v1286, 0
      %v1333 = vsel %vm1310, %v1288, 0
      %v1335 = vsel %vm1310, %v1290, 0
      %v1337 = vsel %vm1310, %v1292, 0
      %v1339 = vsel %vm1310, %v1294, 0
      %v1341 = vsel %vm1310, %v1296, 0
      %vm1343 = vcmask 1043456
      %v1345 = vsel %vm1343, %v1308, 0
      %1347 = vmatprep.subr.bf16.mxu0 0
      %1348 = vmatpush1.bf16.msra.mxu0 %v1307
      %1349 = vmatprep.subr.bf16.mxu0 0
      %1350 = vmatpush1.bf16.msra.mxu0 %v1345
      %1351 = vmatprep.subr.bf16.mxu0 0
      %1352 = vmatpush1.bf16.msra.mxu0 0
      %1353 = vmatprep.subr.bf16.mxu0 0
      %1354 = vmatpush1.bf16.msra.mxu0 0
      %1355 = vmatprep.subr.bf16.mxu0 0
      %1356 = vmatpush1.bf16.msra.mxu0 0
      %1357 = vmatprep.subr.bf16.mxu0 0
      %1358 = vmatpush1.bf16.msra.mxu0 0
      %1359 = vmatprep.subr.bf16.mxu0 0
      %1360 = vmatpush1.bf16.msra.mxu0 0
      %1361 = vmatprep.subr.bf16.mxu0 0
      %1362 = vmatpush1.bf16.msra.mxu0 0
      %1363 = vmatprep.subr.bf16.mxu0 0
      %1364 = vmatpush1.bf16.msra.mxu0 0
      %1365 = vmatprep.subr.bf16.mxu0 0
      %1366 = vmatpush1.bf16.msra.mxu0 0
      %1367 = vmatprep.subr.bf16.mxu0 0
      %1368 = vmatpush1.bf16.msra.mxu0 0
      %1369 = vmatprep.subr.bf16.mxu0 0
      %1370 = vmatpush1.bf16.msra.mxu0 0
      %1371 = vmatprep.subr.bf16.mxu0 0
      %1372 = vmatpush1.bf16.msra.mxu0 0
      %1373 = vmatprep.subr.bf16.mxu0 0
      %1374 = vmatpush1.bf16.msra.mxu0 0
      %1375 = vmatprep.subr.bf16.mxu0 0
      %1376 = vmatpush1.bf16.msra.mxu0 0
      %1377 = vmatprep.subr.bf16.mxu0 0
      %1378 = vmatpush1.bf16.msra.mxu0 0
      %1379 = vmatprep.mubr.bf16.mxu0 0
      %1380 = vmatmul.mubr.bf16.gmra.mrb[0].mxu0 %v1311
      %v1381 = vpop.f32.mrb[0].mxu0
      %v1382 = vadd.f32 0.0, %v1381
      %v1383 = vpop.f32.mrb[0].mxu0
      %v1384 = vpop.f32.mrb[0].mxu0
      %v1385 = vadd.f32 0.0, %v1384
      %v1386 = vpop.f32.mrb[0].mxu0
      %1387 = vmatprep.mubr.bf16.mxu0 0
      %1388 = vmatmul.mubr.bf16.gmra.mrb[0].mxu0 %v1313
      %v1389 = vpop.f32.mrb[0].mxu0
      %v1390 = vadd.f32 0.0, %v1389
      %v1391 = vpop.f32.mrb[0].mxu0
      %v1392 = vpop.f32.mrb[0].mxu0
      %v1393 = vadd.f32 0.0, %v1392
      %v1394 = vpop.f32.mrb[0].mxu0
      %1395 = vmatprep.mubr.bf16.mxu0 0
      %1396 = vmatmul.mubr.bf16.gmra.mrb[0].mxu0 %v1315
      %v1397 = vpop.f32.mrb[0].mxu0
      %v1398 = vadd.f32 0.0, %v1397
      %v1399 = vpop.f32.mrb[0].mxu0
      %v1400 = vpop.f32.mrb[0].mxu0
      %v1401 = vadd.f32 0.0, %v1400
      %v1402 = vpop.f32.mrb[0].mxu0
      %1403 = vmatprep.mubr.bf16.mxu0 0
      %1404 = vmatmul.mubr.bf16.gmra.mrb[0].mxu0 %v1317
      %v1405 = vpop.f32.mrb[0].mxu0
      %v1406 = vadd.f32 0.0, %v1405
      %v1407 = vpop.f32.mrb[0].mxu0
      %v1408 = vpop.f32.mrb[0].mxu0
      %v1409 = vadd.f32 0.0, %v1408
      %v1410 = vpop.f32.mrb[0].mxu0
      %1411 = vmatprep.mubr.bf16.mxu0 0
      %1412 = vmatmul.mubr.bf16.gmra.mrb[0].mxu0 %v1319
      %v1413 = vpop.f32.mrb[0].mxu0
      %v1414 = vadd.f32 0.0, %v1413
      %v1415 = vpop.f32.mrb[0].mxu0
      %v1416 = vpop.f32.mrb[0].mxu0
      %v1417 = vadd.f32 0.0, %v1416
      %v1418 = vpop.f32.mrb[0].mxu0
      %1419 = vmatprep.mubr.bf16.mxu0 0
      %1420 = vmatmul.mubr.bf16.gmra.mrb[0].mxu0 %v1321
      %v1421 = vpop.f32.mrb[0].mxu0
      %v1422 = vadd.f32 0.0, %v1421
      %v1423 = vpop.f32.mrb[0].mxu0
      %v1424 = vpop.f32.mrb[0].mxu0
      %v1425 = vadd.f32 0.0, %v1424
      %v1426 = vpop.f32.mrb[0].mxu0
      %1427 = vmatprep.mubr.bf16.mxu0 0
      %1428 = vmatmul.mubr.bf16.gmra.mrb[0].mxu0 %v1323
      %v1429 = vpop.f32.mrb[0].mxu0
      %v1430 = vadd.f32 0.0, %v1429
      %v1431 = vpop.f32.mrb[0].mxu0
      %v1432 = vpop.f32.mrb[0].mxu0
      %v1433 = vadd.f32 0.0, %v1432
      %v1434 = vpop.f32.mrb[0].mxu0
      %1435 = vmatprep.mubr.bf16.mxu0 0
      %1436 = vmatmul.mubr.bf16.gmra.mrb[0].mxu0 %v1325
      %v1437 = vpop.f32.mrb[0].mxu0
      %v1438 = vadd.f32 0.0, %v1437
      %v1439 = vpop.f32.mrb[0].mxu0
      %v1440 = vpop.f32.mrb[0].mxu0
      %v1441 = vadd.f32 0.0, %v1440
      %v1442 = vpop.f32.mrb[0].mxu0
      %1443 = vmatprep.mubr.bf16.mxu0 0
      %1444 = vmatmul.mubr.bf16.gmra.mrb[0].mxu0 %v1327
      %v1445 = vpop.f32.mrb[0].mxu0
      %v1446 = vadd.f32 0.0, %v1445
      %v1447 = vpop.f32.mrb[0].mxu0
      %v1448 = vpop.f32.mrb[0].mxu0
      %v1449 = vadd.f32 0.0, %v1448
      %v1450 = vpop.f32.mrb[0].mxu0
      %1451 = vmatprep.mubr.bf16.mxu0 0
      %1452 = vmatmul.mubr.bf16.gmra.mrb[0].mxu0 %v1329
      %v1453 = vpop.f32.mrb[0].mxu0
      %v1454 = vadd.f32 0.0, %v1453
      %v1455 = vpop.f32.mrb[0].mxu0
      %v1456 = vpop.f32.mrb[0].mxu0
      %v1457 = vadd.f32 0.0, %v1456
      %v1458 = vpop.f32.mrb[0].mxu0
      %1459 = vmatprep.mubr.bf16.mxu0 0
      %1460 = vmatmul.mubr.bf16.gmra.mrb[0].mxu0 %v1331
      %v1461 = vpop.f32.mrb[0].mxu0
      %v1462 = vadd.f32 0.0, %v1461
      %v1463 = vpop.f32.mrb[0].mxu0
      %v1464 = vpop.f32.mrb[0].mxu0
      %v1465 = vadd.f32 0.0, %v1464
      %v1466 = vpop.f32.mrb[0].mxu0
      %1467 = vmatprep.mubr.bf16.mxu0 0
      %1468 = vmatmul.mubr.bf16.gmra.mrb[0].mxu0 %v1333
      %v1469 = vpop.f32.mrb[0].mxu0
      %v1470 = vadd.f32 0.0, %v1469
      %v1471 = vpop.f32.mrb[0].mxu0
      %v1472 = vpop.f32.mrb[0].mxu0
      %v1473 = vadd.f32 0.0, %v1472
      %v1474 = vpop.f32.mrb[0].mxu0
      %1475 = vmatprep.mubr.bf16.mxu0 0
      %1476 = vmatmul.mubr.bf16.gmra.mrb[0].mxu0 %v1335
      %v1477 = vpop.f32.mrb[0].mxu0
      %v1478 = vadd.f32 0.0, %v1477
      %v1479 = vpop.f32.mrb[0].mxu0
      %v1480 = vpop.f32.mrb[0].mxu0
      %v1481 = vadd.f32 0.0, %v1480
      %v1482 = vpop.f32.mrb[0].mxu0
      %1483 = vmatprep.mubr.bf16.mxu0 0
      %1484 = vmatmul.mubr.bf16.gmra.mrb[0].mxu0 %v1337
      %v1485 = vpop.f32.mrb[0].mxu0
      %v1486 = vadd.f32 0.0, %v1485
      %v1487 = vpop.f32.mrb[0].mxu0
      %v1488 = vpop.f32.mrb[0].mxu0
      %v1489 = vadd.f32 0.0, %v1488
      %v1490 = vpop.f32.mrb[0].mxu0
      %1491 = vmatprep.mubr.bf16.mxu0 0
      %1492 = vmatmul.mubr.bf16.gmra.mrb[0].mxu0 %v1339
      %v1493 = vpop.f32.mrb[0].mxu0
      %v1494 = vadd.f32 0.0, %v1493
      %v1495 = vpop.f32.mrb[0].mxu0
      %v1496 = vpop.f32.mrb[0].mxu0
      %v1497 = vadd.f32 0.0, %v1496
      %v1498 = vpop.f32.mrb[0].mxu0
      %1499 = vmatprep.mubr.bf16.mxu0 0
      %1500 = vmatmul.mubr.bf16.gmra.mrb[0].mxu0 %v1341
      %v1501 = vpop.f32.mrb[0].mxu0
      %v1502 = vadd.f32 0.0, %v1501
      %v1503 = vpop.f32.mrb[0].mxu0
      %v1504 = vpop.f32.mrb[0].mxu0
      %v1505 = vadd.f32 0.0, %v1504
      %v1506 = vpop.f32.mrb[0].mxu0
      %1507 = vdwg.mxu0
      %v1511 = vunpack.c.l.b16 %v891
      %v1512 = vunpack.c.l.b16 %v892
      %v1513 = vunpack.c.l.b16 %v893
      %v1514 = vpack.c.b16 %v1512, %v1511
      %v1515 = vpack.c.b16 %v1513, %v1513
      %v1517 = vsel %vm1310, %v860, 0
      %v1519 = vsel %vm1310, %v862, 0
      %v1521 = vsel %vm1310, %v864, 0
      %v1523 = vsel %vm1310, %v866, 0
      %v1525 = vsel %vm1310, %v868, 0
      %v1527 = vsel %vm1310, %v870, 0
      %v1529 = vsel %vm1310, %v872, 0
      %v1531 = vsel %vm1310, %v874, 0
      %v1533 = vsel %vm1310, %v876, 0
      %v1535 = vsel %vm1310, %v878, 0
      %v1537 = vsel %vm1310, %v880, 0
      %v1539 = vsel %vm1310, %v882, 0
      %v1541 = vsel %vm1310, %v884, 0
      %v1543 = vsel %vm1310, %v886, 0
      %v1545 = vsel %vm1310, %v888, 0
      %v1547 = vsel %vm1310, %v890, 0
      %v1550 = vsel %vm1343, %v1515, 0
      %1552 = vmatprep.subr.bf16.mxu0 0
      %1553 = vmatpush1.bf16.msra.mxu0 %v1514
      %1554 = vmatprep.subr.bf16.mxu0 0
      %1555 = vmatpush1.bf16.msra.mxu0 %v1550
      %1556 = vmatprep.subr.bf16.mxu0 0
      %1557 = vmatpush1.bf16.msra.mxu0 0
      %1558 = vmatprep.subr.bf16.mxu0 0
      %1559 = vmatpush1.bf16.msra.mxu0 0
      %1560 = vmatprep.subr.bf16.mxu0 0
      %1561 = vmatpush1.bf16.msra.mxu0 0
      %1562 = vmatprep.subr.bf16.mxu0 0
      %1563 = vmatpush1.bf16.msra.mxu0 0
      %1564 = vmatprep.subr.bf16.mxu0 0
      %1565 = vmatpush1.bf16.msra.mxu0 0
      %1566 = vmatprep.subr.bf16.mxu0 0
      %1567 = vmatpush1.bf16.msra.mxu0 0
      %1568 = vmatprep.subr.bf16.mxu0 0
      %1569 = vmatpush1.bf16.msra.mxu0 0
      %1570 = vmatprep.subr.bf16.mxu0 0
      %1571 = vmatpush1.bf16.msra.mxu0 0
      %1572 = vmatprep.subr.bf16.mxu0 0
      %1573 = vmatpush1.bf16.msra.mxu0 0
      %1574 = vmatprep.subr.bf16.mxu0 0
      %1575 = vmatpush1.bf16.msra.mxu0 0
      %1576 = vmatprep.subr.bf16.mxu0 0
      %1577 = vmatpush1.bf16.msra.mxu0 0
      %1578 = vmatprep.subr.bf16.mxu0 0
      %1579 = vmatpush1.bf16.msra.mxu0 0
      %1580 = vmatprep.subr.bf16.mxu0 0
      %1581 = vmatpush1.bf16.msra.mxu0 0
      %1582 = vmatprep.subr.bf16.mxu0 0
      %1583 = vmatpush1.bf16.msra.mxu0 0
      %1584 = vmatprep.mubr.bf16.mxu0 0
      %1585 = vmatmul.mubr.bf16.gmra.mrb[0].mxu0 %v1517
      %v1586 = vpop.f32.mrb[0].mxu0
      %v1587 = vadd.f32 %v1382, %v1586
      %v1588 = vpop.f32.mrb[0].mxu0
      %v1589 = vpop.f32.mrb[0].mxu0
      %v1590 = vadd.f32 %v1385, %v1589
      %v1591 = vpop.f32.mrb[0].mxu0
      %1592 = vmatprep.mubr.bf16.mxu0 0
      %1593 = vmatmul.mubr.bf16.gmra.mrb[0].mxu0 %v1519
      %v1594 = vpop.f32.mrb[0].mxu0
      %v1595 = vadd.f32 %v1390, %v1594
      %v1596 = vpop.f32.mrb[0].mxu0
      %v1597 = vpop.f32.mrb[0].mxu0
      %v1598 = vadd.f32 %v1393, %v1597
      %v1599 = vpop.f32.mrb[0].mxu0
      %1600 = vmatprep.mubr.bf16.mxu0 0
      %1601 = vmatmul.mubr.bf16.gmra.mrb[0].mxu0 %v1521
      %v1602 = vpop.f32.mrb[0].mxu0
      %v1603 = vadd.f32 %v1398, %v1602
      %v1604 = vpop.f32.mrb[0].mxu0
      %v1605 = vpop.f32.mrb[0].mxu0
      %v1606 = vadd.f32 %v1401, %v1605
      %v1607 = vpop.f32.mrb[0].mxu0
      %1608 = vmatprep.mubr.bf16.mxu0 0
      %1609 = vmatmul.mubr.bf16.gmra.mrb[0].mxu0 %v1523
      %v1610 = vpop.f32.mrb[0].mxu0
      %v1611 = vadd.f32 %v1406, %v1610
      %v1612 = vpop.f32.mrb[0].mxu0
      %v1613 = vpop.f32.mrb[0].mxu0
      %v1614 = vadd.f32 %v1409, %v1613
      %v1615 = vpop.f32.mrb[0].mxu0
      %1616 = vmatprep.mubr.bf16.mxu0 0
      %1617 = vmatmul.mubr.bf16.gmra.mrb[0].mxu0 %v1525
      %v1618 = vpop.f32.mrb[0].mxu0
      %v1619 = vadd.f32 %v1414, %v1618
      %v1620 = vpop.f32.mrb[0].mxu0
      %v1621 = vpop.f32.mrb[0].mxu0
      %v1622 = vadd.f32 %v1417, %v1621
      %v1623 = vpop.f32.mrb[0].mxu0
      %1624 = vmatprep.mubr.bf16.mxu0 0
      %1625 = vmatmul.mubr.bf16.gmra.mrb[0].mxu0 %v1527
      %v1626 = vpop.f32.mrb[0].mxu0
      %v1627 = vadd.f32 %v1422, %v1626
      %v1628 = vpop.f32.mrb[0].mxu0
      %v1629 = vpop.f32.mrb[0].mxu0
      %v1630 = vadd.f32 %v1425, %v1629
      %v1631 = vpop.f32.mrb[0].mxu0
      %1632 = vmatprep.mubr.bf16.mxu0 0
      %1633 = vmatmul.mubr.bf16.gmra.mrb[0].mxu0 %v1529
      %v1634 = vpop.f32.mrb[0].mxu0
      %v1635 = vadd.f32 %v1430, %v1634
      %v1636 = vpop.f32.mrb[0].mxu0
      %v1637 = vpop.f32.mrb[0].mxu0
      %v1638 = vadd.f32 %v1433, %v1637
      %v1639 = vpop.f32.mrb[0].mxu0
      %1640 = vmatprep.mubr.bf16.mxu0 0
      %1641 = vmatmul.mubr.bf16.gmra.mrb[0].mxu0 %v1531
      %v1642 = vpop.f32.mrb[0].mxu0
      %v1643 = vadd.f32 %v1438, %v1642
      %v1644 = vpop.f32.mrb[0].mxu0
      %v1645 = vpop.f32.mrb[0].mxu0
      %v1646 = vadd.f32 %v1441, %v1645
      %v1647 = vpop.f32.mrb[0].mxu0
      %1648 = vmatprep.mubr.bf16.mxu0 0
      %1649 = vmatmul.mubr.bf16.gmra.mrb[0].mxu0 %v1533
      %v1650 = vpop.f32.mrb[0].mxu0
      %v1651 = vadd.f32 %v1446, %v1650
      %v1652 = vpop.f32.mrb[0].mxu0
      %v1653 = vpop.f32.mrb[0].mxu0
      %v1654 = vadd.f32 %v1449, %v1653
      %v1655 = vpop.f32.mrb[0].mxu0
      %1656 = vmatprep.mubr.bf16.mxu0 0
      %1657 = vmatmul.mubr.bf16.gmra.mrb[0].mxu0 %v1535
      %v1658 = vpop.f32.mrb[0].mxu0
      %v1659 = vadd.f32 %v1454, %v1658
      %v1660 = vpop.f32.mrb[0].mxu0
      %v1661 = vpop.f32.mrb[0].mxu0
      %v1662 = vadd.f32 %v1457, %v1661
      %v1663 = vpop.f32.mrb[0].mxu0
      %1664 = vmatprep.mubr.bf16.mxu0 0
      %1665 = vmatmul.mubr.bf16.gmra.mrb[0].mxu0 %v1537
      %v1666 = vpop.f32.mrb[0].mxu0
      %v1667 = vadd.f32 %v1462, %v1666
      %v1668 = vpop.f32.mrb[0].mxu0
      %v1669 = vpop.f32.mrb[0].mxu0
      %v1670 = vadd.f32 %v1465, %v1669
      %v1671 = vpop.f32.mrb[0].mxu0
      %1672 = vmatprep.mubr.bf16.mxu0 0
      %1673 = vmatmul.mubr.bf16.gmra.mrb[0].mxu0 %v1539
      %v1674 = vpop.f32.mrb[0].mxu0
      %v1675 = vadd.f32 %v1470, %v1674
      %v1676 = vpop.f32.mrb[0].mxu0
      %v1677 = vpop.f32.mrb[0].mxu0
      %v1678 = vadd.f32 %v1473, %v1677
      %v1679 = vpop.f32.mrb[0].mxu0
      %1680 = vmatprep.mubr.bf16.mxu0 0
      %1681 = vmatmul.mubr.bf16.gmra.mrb[0].mxu0 %v1541
      %v1682 = vpop.f32.mrb[0].mxu0
      %v1683 = vadd.f32 %v1478, %v1682
      %v1684 = vpop.f32.mrb[0].mxu0
      %v1685 = vpop.f32.mrb[0].mxu0
      %v1686 = vadd.f32 %v1481, %v1685
      %v1687 = vpop.f32.mrb[0].mxu0
      %1688 = vmatprep.mubr.bf16.mxu0 0
      %1689 = vmatmul.mubr.bf16.gmra.mrb[0].mxu0 %v1543
      %v1690 = vpop.f32.mrb[0].mxu0
      %v1691 = vadd.f32 %v1486, %v1690
      %v1692 = vpop.f32.mrb[0].mxu0
      %v1693 = vpop.f32.mrb[0].mxu0
      %v1694 = vadd.f32 %v1489, %v1693
      %v1695 = vpop.f32.mrb[0].mxu0
      %1696 = vmatprep.mubr.bf16.mxu0 0
      %1697 = vmatmul.mubr.bf16.gmra.mrb[0].mxu0 %v1545
      %v1698 = vpop.f32.mrb[0].mxu0
      %v1699 = vadd.f32 %v1494, %v1698
      %v1700 = vpop.f32.mrb[0].mxu0
      %v1701 = vpop.f32.mrb[0].mxu0
      %v1702 = vadd.f32 %v1497, %v1701
      %v1703 = vpop.f32.mrb[0].mxu0
      %1704 = vmatprep.mubr.bf16.mxu0 0
      %1705 = vmatmul.mubr.bf16.gmra.mrb[0].mxu0 %v1547
      %v1706 = vpop.f32.mrb[0].mxu0
      %v1707 = vadd.f32 %v1502, %v1706
      %v1708 = vpop.f32.mrb[0].mxu0
      %v1709 = vpop.f32.mrb[0].mxu0
      %v1710 = vadd.f32 %v1505, %v1709
      %v1711 = vpop.f32.mrb[0].mxu0
      %1712 = vdwg.mxu0
      %s1713 = sadd.s32 %s480, 2
      %s1714 = smul.addr %s1713, 8
      %s1715 = scalar_lea.vmem [#allocation2], %s1714
      %v1716 = vld [vmem:[%s1715] sm:$0xff]
      %v1717 = vld [vmem:[%s1715 + $0x8] sm:$0xff]
      %v1718 = vld [vmem:[%s1715 + $0x10] sm:$0xff]
      %v1719 = vld [vmem:[%s1715 + $0x18] sm:$0xff]
      %v1720 = vld [vmem:[%s1715 + $0x20] sm:$0xff]
      %v1721 = vld [vmem:[%s1715 + $0x28] sm:$0xff]
      %v1722 = vld [vmem:[%s1715 + $0x30] sm:$0xff]
      %v1723 = vld [vmem:[%s1715 + $0x38] sm:$0xff]
      %v1724 = vld [vmem:[%s1715 + $0x40] sm:$0xff]
      %v1725 = vld [vmem:[%s1715 + $0x48] sm:$0xff]
      %v1726 = vld [vmem:[%s1715 + $0x50] sm:$0xff]
      %v1727 = vld [vmem:[%s1715 + $0x58] sm:$0xff]
      %v1728 = vld [vmem:[%s1715 + $0x60] sm:$0xff]
      %v1729 = vld [vmem:[%s1715 + $0x68] sm:$0xff]
      %v1730 = vld [vmem:[%s1715 + $0x70] sm:$0xff]
      %v1731 = vld [vmem:[%s1715 + $0x78] sm:$0xff]
      %v1733 = vshrl.u32 %v1716, 16
      %v1735 = vrot.slane %v1733, 7
      %v1736 = vshll.u32 %v1716, 16
      %v1738 = vor.u32 %v1735, %v1736
      %v1740 = vshrl.u32 %v1717, 16
      %v1742 = vrot.slane %v1740, 7
      %v1743 = vshll.u32 %v1717, 16
      %v1745 = vor.u32 %v1742, %v1743
      %v1747 = vshrl.u32 %v1718, 16
      %v1749 = vrot.slane %v1747, 7
      %v1750 = vshll.u32 %v1718, 16
      %v1752 = vor.u32 %v1749, %v1750
      %v1754 = vshrl.u32 %v1719, 16
      %v1756 = vrot.slane %v1754, 7
      %v1757 = vshll.u32 %v1719, 16
      %v1759 = vor.u32 %v1756, %v1757
      %v1761 = vshrl.u32 %v1720, 16
      %v1763 = vrot.slane %v1761, 7
      %v1764 = vshll.u32 %v1720, 16
      %v1766 = vor.u32 %v1763, %v1764
      %v1768 = vshrl.u32 %v1721, 16
      %v1770 = vrot.slane %v1768, 7
      %v1771 = vshll.u32 %v1721, 16
      %v1773 = vor.u32 %v1770, %v1771
      %v1775 = vshrl.u32 %v1722, 16
      %v1777 = vrot.slane %v1775, 7
      %v1778 = vshll.u32 %v1722, 16
      %v1780 = vor.u32 %v1777, %v1778
      %v1782 = vshrl.u32 %v1723, 16
      %v1784 = vrot.slane %v1782, 7
      %v1785 = vshll.u32 %v1723, 16
      %v1787 = vor.u32 %v1784, %v1785
      %v1789 = vshrl.u32 %v1724, 16
      %v1791 = vrot.slane %v1789, 7
      %v1792 = vshll.u32 %v1724, 16
      %v1794 = vor.u32 %v1791, %v1792
      %v1796 = vshrl.u32 %v1725, 16
      %v1798 = vrot.slane %v1796, 7
      %v1799 = vshll.u32 %v1725, 16
      %v1801 = vor.u32 %v1798, %v1799
      %v1803 = vshrl.u32 %v1726, 16
      %v1805 = vrot.slane %v1803, 7
      %v1806 = vshll.u32 %v1726, 16
      %v1808 = vor.u32 %v1805, %v1806
      %v1810 = vshrl.u32 %v1727, 16
      %v1812 = vrot.slane %v1810, 7
      %v1813 = vshll.u32 %v1727, 16
      %v1815 = vor.u32 %v1812, %v1813
      %v1817 = vshrl.u32 %v1728, 16
      %v1819 = vrot.slane %v1817, 7
      %v1820 = vshll.u32 %v1728, 16
      %v1822 = vor.u32 %v1819, %v1820
      %v1824 = vshrl.u32 %v1729, 16
      %v1826 = vrot.slane %v1824, 7
      %v1827 = vshll.u32 %v1729, 16
      %v1829 = vor.u32 %v1826, %v1827
      %v1831 = vshrl.u32 %v1730, 16
      %v1833 = vrot.slane %v1831, 7
      %v1834 = vshll.u32 %v1730, 16
      %v1836 = vor.u32 %v1833, %v1834
      %v1838 = vshrl.u32 %v1731, 16
      %v1840 = vrot.slane %v1838, 7
      %v1841 = vshll.u32 %v1731, 16
      %v1843 = vor.u32 %v1840, %v1841
      %v1860 = vsel %vm629, 0, %v1738
      %v1861 = vsel %vm629, 0, %v1745
      %v1862 = vsel %vm629, 0, %v1752
      %v1863 = vsel %vm629, 0, %v1759
      %v1864 = vsel %vm629, 0, %v1766
      %v1865 = vsel %vm629, 0, %v1773
      %v1866 = vsel %vm629, 0, %v1780
      %v1867 = vsel %vm629, 0, %v1787
      %v1868 = vsel %vm629, 0, %v1794
      %v1869 = vsel %vm629, 0, %v1801
      %v1870 = vsel %vm629, 0, %v1808
      %v1871 = vsel %vm629, 0, %v1815
      %v1872 = vsel %vm629, 0, %v1822
      %v1873 = vsel %vm629, 0, %v1829
      %v1874 = vsel %vm629, 0, %v1836
      %v1875 = vsel %vm629, 0, %v1843
      %v1876 = vrot.slane %v1736, 1
      %v1877 = vor.u32 %v1733, %v1876
      %v1878 = vrot.slane %v1743, 1
      %v1879 = vor.u32 %v1740, %v1878
      %v1880 = vrot.slane %v1750, 1
      %v1881 = vor.u32 %v1747, %v1880
      %v1882 = vrot.slane %v1757, 1
      %v1883 = vor.u32 %v1754, %v1882
      %v1884 = vrot.slane %v1764, 1
      %v1885 = vor.u32 %v1761, %v1884
      %v1886 = vrot.slane %v1771, 1
      %v1887 = vor.u32 %v1768, %v1886
      %v1888 = vrot.slane %v1778, 1
      %v1889 = vor.u32 %v1775, %v1888
      %v1890 = vrot.slane %v1785, 1
      %v1891 = vor.u32 %v1782, %v1890
      %v1892 = vrot.slane %v1792, 1
      %v1893 = vor.u32 %v1789, %v1892
      %v1894 = vrot.slane %v1799, 1
      %v1895 = vor.u32 %v1796, %v1894
      %v1896 = vrot.slane %v1806, 1
      %v1897 = vor.u32 %v1803, %v1896
      %v1898 = vrot.slane %v1813, 1
      %v1899 = vor.u32 %v1810, %v1898
      %v1900 = vrot.slane %v1820, 1
      %v1901 = vor.u32 %v1817, %v1900
      %v1902 = vrot.slane %v1827, 1
      %v1903 = vor.u32 %v1824, %v1902
      %v1904 = vrot.slane %v1834, 1
      %v1905 = vor.u32 %v1831, %v1904
      %v1906 = vrot.slane %v1841, 1
      %v1907 = vor.u32 %v1838, %v1906
      %v1924 = vsel %vm696, %v1877, 0
      %v1925 = vsel %vm696, %v1879, 0
      %v1926 = vsel %vm696, %v1881, 0
      %v1927 = vsel %vm696, %v1883, 0
      %v1928 = vsel %vm696, %v1885, 0
      %v1929 = vsel %vm696, %v1887, 0
      %v1930 = vsel %vm696, %v1889, 0
      %v1931 = vsel %vm696, %v1891, 0
      %v1932 = vsel %vm696, %v1893, 0
      %v1933 = vsel %vm696, %v1895, 0
      %v1934 = vsel %vm696, %v1897, 0
      %v1935 = vsel %vm696, %v1899, 0
      %v1936 = vsel %vm696, %v1901, 0
      %v1937 = vsel %vm696, %v1903, 0
      %v1938 = vsel %vm696, %v1905, 0
      %v1939 = vsel %vm696, %v1907, 0
      %1956 = vrot.lane.b32.xlu0 %v1716, 8
      %v1957 = vpop.permute.xlu0 %1956
      %1958 = vrot.lane.b32.xlu0 %v1717, 8
      %v1959 = vpop.permute.xlu0 %1958
      %1960 = vrot.lane.b32.xlu0 %v1718, 8
      %v1961 = vpop.permute.xlu0 %1960
      %1962 = vrot.lane.b32.xlu0 %v1719, 8
      %v1963 = vpop.permute.xlu0 %1962
      %1964 = vrot.lane.b32.xlu0 %v1720, 8
      %v1965 = vpop.permute.xlu0 %1964
      %1966 = vrot.lane.b32.xlu0 %v1721, 8
      %v1967 = vpop.permute.xlu0 %1966
      %1968 = vrot.lane.b32.xlu0 %v1722, 8
      %v1969 = vpop.permute.xlu0 %1968
      %1970 = vrot.lane.b32.xlu0 %v1723, 8
      %v1971 = vpop.permute.xlu0 %1970
      %1972 = vrot.lane.b32.xlu0 %v1724, 8
      %v1973 = vpop.permute.xlu0 %1972
      %1974 = vrot.lane.b32.xlu0 %v1725, 8
      %v1975 = vpop.permute.xlu0 %1974
      %1976 = vrot.lane.b32.xlu0 %v1726, 8
      %v1977 = vpop.permute.xlu0 %1976
      %1978 = vrot.lane.b32.xlu0 %v1727, 8
      %v1979 = vpop.permute.xlu0 %1978
      %1980 = vrot.lane.b32.xlu0 %v1728, 8
      %v1981 = vpop.permute.xlu0 %1980
      %1982 = vrot.lane.b32.xlu0 %v1729, 8
      %v1983 = vpop.permute.xlu0 %1982
      %1984 = vrot.lane.b32.xlu0 %v1730, 8
      %v1985 = vpop.permute.xlu0 %1984
      %1986 = vrot.lane.b32.xlu0 %v1731, 8
      %v1987 = vpop.permute.xlu0 %1986
      %2004 = vrot.lane.b32.xlu0 %v1924, 16
      %v2005 = vpop.permute.xlu0 %2004
      %2006 = vrot.lane.b32.xlu0 %v1925, 16
      %v2007 = vpop.permute.xlu0 %2006
      %2008 = vrot.lane.b32.xlu0 %v1926, 16
      %v2009 = vpop.permute.xlu0 %2008
      %2010 = vrot.lane.b32.xlu0 %v1927, 16
      %v2011 = vpop.permute.xlu0 %2010
      %2012 = vrot.lane.b32.xlu0 %v1928, 16
      %v2013 = vpop.permute.xlu0 %2012
      %2014 = vrot.lane.b32.xlu0 %v1929, 16
      %v2015 = vpop.permute.xlu0 %2014
      %2016 = vrot.lane.b32.xlu0 %v1930, 16
      %v2017 = vpop.permute.xlu0 %2016
      %2018 = vrot.lane.b32.xlu0 %v1931, 16
      %v2019 = vpop.permute.xlu0 %2018
      %2020 = vrot.lane.b32.xlu0 %v1932, 16
      %v2021 = vpop.permute.xlu0 %2020
      %2022 = vrot.lane.b32.xlu0 %v1933, 16
      %v2023 = vpop.permute.xlu0 %2022
      %2024 = vrot.lane.b32.xlu0 %v1934, 16
      %v2025 = vpop.permute.xlu0 %2024
      %2026 = vrot.lane.b32.xlu0 %v1935, 16
      %v2027 = vpop.permute.xlu0 %2026
      %2028 = vrot.lane.b32.xlu0 %v1936, 16
      %v2029 = vpop.permute.xlu0 %2028
      %2030 = vrot.lane.b32.xlu0 %v1937, 16
      %v2031 = vpop.permute.xlu0 %2030
      %2032 = vrot.lane.b32.xlu0 %v1938, 16
      %v2033 = vpop.permute.xlu0 %2032
      %2034 = vrot.lane.b32.xlu0 %v1939, 16
      %v2035 = vpop.permute.xlu0 %2034
      %v2038 = vsel %vm809, %v1860, %v1957
      %v2041 = vsel %vm809, %v1861, %v1959
      %v2044 = vsel %vm809, %v1862, %v1961
      %v2047 = vsel %vm809, %v1863, %v1963
      %v2050 = vsel %vm809, %v1864, %v1965
      %v2053 = vsel %vm809, %v1865, %v1967
      %v2056 = vsel %vm809, %v1866, %v1969
      %v2059 = vsel %vm809, %v1867, %v1971
      %v2062 = vsel %vm809, %v1868, %v1973
      %v2065 = vsel %vm809, %v1869, %v1975
      %v2068 = vsel %vm809, %v1870, %v1977
      %v2071 = vsel %vm809, %v1871, %v1979
      %v2074 = vsel %vm809, %v1872, %v1981
      %v2077 = vsel %vm809, %v1873, %v1983
      %v2080 = vsel %vm809, %v1874, %v1985
      %v2083 = vsel %vm809, %v1875, %v1987
      %v2085 = vsel %vm858, %v2038, %v2005
      %v2087 = vsel %vm858, %v2041, %v2007
      %v2089 = vsel %vm858, %v2044, %v2009
      %v2091 = vsel %vm858, %v2047, %v2011
      %v2093 = vsel %vm858, %v2050, %v2013
      %v2095 = vsel %vm858, %v2053, %v2015
      %v2097 = vsel %vm858, %v2056, %v2017
      %v2099 = vsel %vm858, %v2059, %v2019
      %v2101 = vsel %vm858, %v2062, %v2021
      %v2103 = vsel %vm858, %v2065, %v2023
      %v2105 = vsel %vm858, %v2068, %v2025
      %v2107 = vsel %vm858, %v2071, %v2027
      %v2109 = vsel %vm858, %v2074, %v2029
      %v2111 = vsel %vm858, %v2077, %v2031
      %v2113 = vsel %vm858, %v2080, %v2033
      %v2115 = vsel %vm858, %v2083, %v2035
      %s2116 = scalar_lea.vmem %s3, 24
      %v2117 = vld [vmem:[%s2116] sm:$0xf]
      %v2118 = vld [vmem:[%s2116 + $0x4] sm:$0xf]
      %v2119 = vld [vmem:[%s2116 + $0x8] sm:$0xf]
      %v2123 = vunpack.c.l.b16 %v2117
      %v2124 = vunpack.c.l.b16 %v2118
      %v2125 = vunpack.c.l.b16 %v2119
      %v2126 = vpack.c.b16 %v2124, %v2123
      %v2127 = vpack.c.b16 %v2125, %v2125
      %v2129 = vsel %vm1310, %v2085, 0
      %v2131 = vsel %vm1310, %v2087, 0
      %v2133 = vsel %vm1310, %v2089, 0
      %v2135 = vsel %vm1310, %v2091, 0
      %v2137 = vsel %vm1310, %v2093, 0
      %v2139 = vsel %vm1310, %v2095, 0
      %v2141 = vsel %vm1310, %v2097, 0
      %v2143 = vsel %vm1310, %v2099, 0
      %v2145 = vsel %vm1310, %v2101, 0
      %v2147 = vsel %vm1310, %v2103, 0
      %v2149 = vsel %vm1310, %v2105, 0
      %v2151 = vsel %vm1310, %v2107, 0
      %v2153 = vsel %vm1310, %v2109, 0
      %v2155 = vsel %vm1310, %v2111, 0
      %v2157 = vsel %vm1310, %v2113, 0
      %v2159 = vsel %vm1310, %v2115, 0
      %v2162 = vsel %vm1343, %v2127, 0
      %2164 = vmatprep.subr.bf16.mxu0 0
      %2165 = vmatpush1.bf16.msra.mxu0 %v2126
      %2166 = vmatprep.subr.bf16.mxu0 0
      %2167 = vmatpush1.bf16.msra.mxu0 %v2162
      %2168 = vmatprep.subr.bf16.mxu0 0
      %2169 = vmatpush1.bf16.msra.mxu0 0
      %2170 = vmatprep.subr.bf16.mxu0 0
      %2171 = vmatpush1.bf16.msra.mxu0 0
      %2172 = vmatprep.subr.bf16.mxu0 0
      %2173 = vmatpush1.bf16.msra.mxu0 0
      %2174 = vmatprep.subr.bf16.mxu0 0
      %2175 = vmatpush1.bf16.msra.mxu0 0
      %2176 = vmatprep.subr.bf16.mxu0 0
      %2177 = vmatpush1.bf16.msra.mxu0 0
      %2178 = vmatprep.subr.bf16.mxu0 0
      %2179 = vmatpush1.bf16.msra.mxu0 0
      %2180 = vmatprep.subr.bf16.mxu0 0
      %2181 = vmatpush1.bf16.msra.mxu0 0
      %2182 = vmatprep.subr.bf16.mxu0 0
      %2183 = vmatpush1.bf16.msra.mxu0 0
      %2184 = vmatprep.subr.bf16.mxu0 0
      %2185 = vmatpush1.bf16.msra.mxu0 0
      %2186 = vmatprep.subr.bf16.mxu0 0
      %2187 = vmatpush1.bf16.msra.mxu0 0
      %2188 = vmatprep.subr.bf16.mxu0 0
      %2189 = vmatpush1.bf16.msra.mxu0 0
      %2190 = vmatprep.subr.bf16.mxu0 0
      %2191 = vmatpush1.bf16.msra.mxu0 0
      %2192 = vmatprep.subr.bf16.mxu0 0
      %2193 = vmatpush1.bf16.msra.mxu0 0
      %2194 = vmatprep.subr.bf16.mxu0 0
      %2195 = vmatpush1.bf16.msra.mxu0 0
      %2196 = vmatprep.mubr.bf16.mxu0 0
      %2197 = vmatmul.mubr.bf16.gmra.mrb[0].mxu0 %v2129
      %v2198 = vpop.f32.mrb[0].mxu0
      %v2199 = vadd.f32 0.0, %v2198
      %v2200 = vpop.f32.mrb[0].mxu0
      %v2201 = vpop.f32.mrb[0].mxu0
      %v2202 = vadd.f32 0.0, %v2201
      %v2203 = vpop.f32.mrb[0].mxu0
      %2204 = vmatprep.mubr.bf16.mxu0 0
      %2205 = vmatmul.mubr.bf16.gmra.mrb[0].mxu0 %v2131
      %v2206 = vpop.f32.mrb[0].mxu0
      %v2207 = vadd.f32 0.0, %v2206
      %v2208 = vpop.f32.mrb[0].mxu0
      %v2209 = vpop.f32.mrb[0].mxu0
      %v2210 = vadd.f32 0.0, %v2209
      %v2211 = vpop.f32.mrb[0].mxu0
      %2212 = vmatprep.mubr.bf16.mxu0 0
      %2213 = vmatmul.mubr.bf16.gmra.mrb[0].mxu0 %v2133
      %v2214 = vpop.f32.mrb[0].mxu0
      %v2215 = vadd.f32 0.0, %v2214
      %v2216 = vpop.f32.mrb[0].mxu0
      %v2217 = vpop.f32.mrb[0].mxu0
      %v2218 = vadd.f32 0.0, %v2217
      %v2219 = vpop.f32.mrb[0].mxu0
      %2220 = vmatprep.mubr.bf16.mxu0 0
      %2221 = vmatmul.mubr.bf16.gmra.mrb[0].mxu0 %v2135
      %v2222 = vpop.f32.mrb[0].mxu0
      %v2223 = vadd.f32 0.0, %v2222
      %v2224 = vpop.f32.mrb[0].mxu0
      %v2225 = vpop.f32.mrb[0].mxu0
      %v2226 = vadd.f32 0.0, %v2225
      %v2227 = vpop.f32.mrb[0].mxu0
      %2228 = vmatprep.mubr.bf16.mxu0 0
      %2229 = vmatmul.mubr.bf16.gmra.mrb[0].mxu0 %v2137
      %v2230 = vpop.f32.mrb[0].mxu0
      %v2231 = vadd.f32 0.0, %v2230
      %v2232 = vpop.f32.mrb[0].mxu0
      %v2233 = vpop.f32.mrb[0].mxu0
      %v2234 = vadd.f32 0.0, %v2233
      %v2235 = vpop.f32.mrb[0].mxu0
      %2236 = vmatprep.mubr.bf16.mxu0 0
      %2237 = vmatmul.mubr.bf16.gmra.mrb[0].mxu0 %v2139
      %v2238 = vpop.f32.mrb[0].mxu0
      %v2239 = vadd.f32 0.0, %v2238
      %v2240 = vpop.f32.mrb[0].mxu0
      %v2241 = vpop.f32.mrb[0].mxu0
      %v2242 = vadd.f32 0.0, %v2241
      %v2243 = vpop.f32.mrb[0].mxu0
      %2244 = vmatprep.mubr.bf16.mxu0 0
      %2245 = vmatmul.mubr.bf16.gmra.mrb[0].mxu0 %v2141
      %v2246 = vpop.f32.mrb[0].mxu0
      %v2247 = vadd.f32 0.0, %v2246
      %v2248 = vpop.f32.mrb[0].mxu0
      %v2249 = vpop.f32.mrb[0].mxu0
      %v2250 = vadd.f32 0.0, %v2249
      %v2251 = vpop.f32.mrb[0].mxu0
      %2252 = vmatprep.mubr.bf16.mxu0 0
      %2253 = vmatmul.mubr.bf16.gmra.mrb[0].mxu0 %v2143
      %v2254 = vpop.f32.mrb[0].mxu0
      %v2255 = vadd.f32 0.0, %v2254
      %v2256 = vpop.f32.mrb[0].mxu0
      %v2257 = vpop.f32.mrb[0].mxu0
      %v2258 = vadd.f32 0.0, %v2257
      %v2259 = vpop.f32.mrb[0].mxu0
      %2260 = vmatprep.mubr.bf16.mxu0 0
      %2261 = vmatmul.mubr.bf16.gmra.mrb[0].mxu0 %v2145
      %v2262 = vpop.f32.mrb[0].mxu0
      %v2263 = vadd.f32 0.0, %v2262
      %v2264 = vpop.f32.mrb[0].mxu0
      %v2265 = vpop.f32.mrb[0].mxu0
      %v2266 = vadd.f32 0.0, %v2265
      %v2267 = vpop.f32.mrb[0].mxu0
      %2268 = vmatprep.mubr.bf16.mxu0 0
      %2269 = vmatmul.mubr.bf16.gmra.mrb[0].mxu0 %v2147
      %v2270 = vpop.f32.mrb[0].mxu0
      %v2271 = vadd.f32 0.0, %v2270
      %v2272 = vpop.f32.mrb[0].mxu0
      %v2273 = vpop.f32.mrb[0].mxu0
      %v2274 = vadd.f32 0.0, %v2273
      %v2275 = vpop.f32.mrb[0].mxu0
      %2276 = vmatprep.mubr.bf16.mxu0 0
      %2277 = vmatmul.mubr.bf16.gmra.mrb[0].mxu0 %v2149
      %v2278 = vpop.f32.mrb[0].mxu0
      %v2279 = vadd.f32 0.0, %v2278
      %v2280 = vpop.f32.mrb[0].mxu0
      %v2281 = vpop.f32.mrb[0].mxu0
      %v2282 = vadd.f32 0.0, %v2281
      %v2283 = vpop.f32.mrb[0].mxu0
      %2284 = vmatprep.mubr.bf16.mxu0 0
      %2285 = vmatmul.mubr.bf16.gmra.mrb[0].mxu0 %v2151
      %v2286 = vpop.f32.mrb[0].mxu0
      %v2287 = vadd.f32 0.0, %v2286
      %v2288 = vpop.f32.mrb[0].mxu0
      %v2289 = vpop.f32.mrb[0].mxu0
      %v2290 = vadd.f32 0.0, %v2289
      %v2291 = vpop.f32.mrb[0].mxu0
      %2292 = vmatprep.mubr.bf16.mxu0 0
      %2293 = vmatmul.mubr.bf16.gmra.mrb[0].mxu0 %v2153
      %v2294 = vpop.f32.mrb[0].mxu0
      %v2295 = vadd.f32 0.0, %v2294
      %v2296 = vpop.f32.mrb[0].mxu0
      %v2297 = vpop.f32.mrb[0].mxu0
      %v2298 = vadd.f32 0.0, %v2297
      %v2299 = vpop.f32.mrb[0].mxu0
      %2300 = vmatprep.mubr.bf16.mxu0 0
      %2301 = vmatmul.mubr.bf16.gmra.mrb[0].mxu0 %v2155
      %v2302 = vpop.f32.mrb[0].mxu0
      %v2303 = vadd.f32 0.0, %v2302
      %v2304 = vpop.f32.mrb[0].mxu0
      %v2305 = vpop.f32.mrb[0].mxu0
      %v2306 = vadd.f32 0.0, %v2305
      %v2307 = vpop.f32.mrb[0].mxu0
      %2308 = vmatprep.mubr.bf16.mxu0 0
      %2309 = vmatmul.mubr.bf16.gmra.mrb[0].mxu0 %v2157
      %v2310 = vpop.f32.mrb[0].mxu0
      %v2311 = vadd.f32 0.0, %v2310
      %v2312 = vpop.f32.mrb[0].mxu0
      %v2313 = vpop.f32.mrb[0].mxu0
      %v2314 = vadd.f32 0.0, %v2313
      %v2315 = vpop.f32.mrb[0].mxu0
      %2316 = vmatprep.mubr.bf16.mxu0 0
      %2317 = vmatmul.mubr.bf16.gmra.mrb[0].mxu0 %v2159
      %v2318 = vpop.f32.mrb[0].mxu0
      %v2319 = vadd.f32 0.0, %v2318
      %v2320 = vpop.f32.mrb[0].mxu0
      %v2321 = vpop.f32.mrb[0].mxu0
      %v2322 = vadd.f32 0.0, %v2321
      %v2323 = vpop.f32.mrb[0].mxu0
      %2324 = vdwg.mxu0
      %v2325 = vadd.f32 %v1587, %v2199
      %v2326 = vadd.f32 %v1590, %v2202
      %v2327 = vadd.f32 %v1595, %v2207
      %v2328 = vadd.f32 %v1598, %v2210
      %v2329 = vadd.f32 %v1603, %v2215
      %v2330 = vadd.f32 %v1606, %v2218
      %v2331 = vadd.f32 %v1611, %v2223
      %v2332 = vadd.f32 %v1614, %v2226
      %v2333 = vadd.f32 %v1619, %v2231
      %v2334 = vadd.f32 %v1622, %v2234
      %v2335 = vadd.f32 %v1627, %v2239
      %v2336 = vadd.f32 %v1630, %v2242
      %v2337 = vadd.f32 %v1635, %v2247
      %v2338 = vadd.f32 %v1638, %v2250
      %v2339 = vadd.f32 %v1643, %v2255
      %v2340 = vadd.f32 %v1646, %v2258
      %v2341 = vadd.f32 %v1651, %v2263
      %v2342 = vadd.f32 %v1654, %v2266
      %v2343 = vadd.f32 %v1659, %v2271
      %v2344 = vadd.f32 %v1662, %v2274
      %v2345 = vadd.f32 %v1667, %v2279
      %v2346 = vadd.f32 %v1670, %v2282
      %v2347 = vadd.f32 %v1675, %v2287
      %v2348 = vadd.f32 %v1678, %v2290
      %v2349 = vadd.f32 %v1683, %v2295
      %v2350 = vadd.f32 %v1686, %v2298
      %v2351 = vadd.f32 %v1691, %v2303
      %v2352 = vadd.f32 %v1694, %v2306
      %v2353 = vadd.f32 %v1699, %v2311
      %v2354 = vadd.f32 %v1702, %v2314
      %v2355 = vadd.f32 %v1707, %v2319
      %v2356 = vadd.f32 %v1710, %v2322
      %v2357 = vld [vmem:[%s4] sm:$0x1]
      %v2359 = vlaneseq
      %v2360 = vshrl.u32 %v2359, 7
      %v2361 = vsub.s32 0, %v2360
      %v2362 = vrot.slane %v2357, %v2361
      %v2364 = vadd.f32 %v2325, %v2362
      %v2365 = vadd.f32 %v2326, %v2362
      %v2366 = vadd.f32 %v2327, %v2362
      %v2367 = vadd.f32 %v2328, %v2362
      %v2368 = vadd.f32 %v2329, %v2362
      %v2369 = vadd.f32 %v2330, %v2362
      %v2370 = vadd.f32 %v2331, %v2362
      %v2371 = vadd.f32 %v2332, %v2362
      %v2372 = vadd.f32 %v2333, %v2362
      %v2373 = vadd.f32 %v2334, %v2362
      %v2374 = vadd.f32 %v2335, %v2362
      %v2375 = vadd.f32 %v2336, %v2362
      %v2376 = vadd.f32 %v2337, %v2362
      %v2377 = vadd.f32 %v2338, %v2362
      %v2378 = vadd.f32 %v2339, %v2362
      %v2379 = vadd.f32 %v2340, %v2362
      %v2380 = vadd.f32 %v2341, %v2362
      %v2381 = vadd.f32 %v2342, %v2362
      %v2382 = vadd.f32 %v2343, %v2362
      %v2383 = vadd.f32 %v2344, %v2362
      %v2384 = vadd.f32 %v2345, %v2362
      %v2385 = vadd.f32 %v2346, %v2362
      %v2386 = vadd.f32 %v2347, %v2362
      %v2387 = vadd.f32 %v2348, %v2362
      %v2388 = vadd.f32 %v2349, %v2362
      %v2389 = vadd.f32 %v2350, %v2362
      %v2390 = vadd.f32 %v2351, %v2362
      %v2391 = vadd.f32 %v2352, %v2362
      %v2392 = vadd.f32 %v2353, %v2362
      %v2393 = vadd.f32 %v2354, %v2362
      %v2394 = vadd.f32 %v2355, %v2362
      %v2395 = vadd.f32 %v2356, %v2362
      %v2396 = vmax.f32 %v2364, 0.0
      %v2397 = vmax.f32 %v2365, 0.0
      %v2398 = vmax.f32 %v2366, 0.0
      %v2399 = vmax.f32 %v2367, 0.0
      %v2400 = vmax.f32 %v2368, 0.0
      %v2401 = vmax.f32 %v2369, 0.0
      %v2402 = vmax.f32 %v2370, 0.0
      %v2403 = vmax.f32 %v2371, 0.0
      %v2404 = vmax.f32 %v2372, 0.0
      %v2405 = vmax.f32 %v2373, 0.0
      %v2406 = vmax.f32 %v2374, 0.0
      %v2407 = vmax.f32 %v2375, 0.0
      %v2408 = vmax.f32 %v2376, 0.0
      %v2409 = vmax.f32 %v2377, 0.0
      %v2410 = vmax.f32 %v2378, 0.0
      %v2411 = vmax.f32 %v2379, 0.0
      %v2412 = vmax.f32 %v2380, 0.0
      %v2413 = vmax.f32 %v2381, 0.0
      %v2414 = vmax.f32 %v2382, 0.0
      %v2415 = vmax.f32 %v2383, 0.0
      %v2416 = vmax.f32 %v2384, 0.0
      %v2417 = vmax.f32 %v2385, 0.0
      %v2418 = vmax.f32 %v2386, 0.0
      %v2419 = vmax.f32 %v2387, 0.0
      %v2420 = vmax.f32 %v2388, 0.0
      %v2421 = vmax.f32 %v2389, 0.0
      %v2422 = vmax.f32 %v2390, 0.0
      %v2423 = vmax.f32 %v2391, 0.0
      %v2424 = vmax.f32 %v2392, 0.0
      %v2425 = vmax.f32 %v2393, 0.0
      %v2426 = vmax.f32 %v2394, 0.0
      %v2427 = vmax.f32 %v2395, 0.0
      %v2428 = vpack.c.bf16 %v2397, %v2396
      %v2429 = vpack.c.bf16 %v2399, %v2398
      %v2430 = vpack.c.bf16 %v2401, %v2400
      %v2431 = vpack.c.bf16 %v2403, %v2402
      %v2432 = vpack.c.bf16 %v2405, %v2404
      %v2433 = vpack.c.bf16 %v2407, %v2406
      %v2434 = vpack.c.bf16 %v2409, %v2408
      %v2435 = vpack.c.bf16 %v2411, %v2410
      %v2436 = vpack.c.bf16 %v2413, %v2412
      %v2437 = vpack.c.bf16 %v2415, %v2414
      %v2438 = vpack.c.bf16 %v2417, %v2416
      %v2439 = vpack.c.bf16 %v2419, %v2418
      %v2440 = vpack.c.bf16 %v2421, %v2420
      %v2441 = vpack.c.bf16 %v2423, %v2422
      %v2442 = vpack.c.bf16 %v2425, %v2424
      %v2443 = vpack.c.bf16 %v2427, %v2426
      %v2460 = vunpack.c.l.b16 %v2428
      %v2461 = vunpack.c.h.b16 %v2428
      %v2462 = vunpack.c.l.b16 %v2429
      %v2463 = vunpack.c.h.b16 %v2429
      %v2464 = vunpack.c.l.b16 %v2430
      %v2465 = vunpack.c.h.b16 %v2430
      %v2466 = vunpack.c.l.b16 %v2431
      %v2467 = vunpack.c.h.b16 %v2431
      %v2468 = vunpack.c.l.b16 %v2432
      %v2469 = vunpack.c.h.b16 %v2432
      %v2470 = vunpack.c.l.b16 %v2433
      %v2471 = vunpack.c.h.b16 %v2433
      %v2472 = vunpack.c.l.b16 %v2434
      %v2473 = vunpack.c.h.b16 %v2434
      %v2474 = vunpack.c.l.b16 %v2435
      %v2475 = vunpack.c.h.b16 %v2435
      %v2476 = vunpack.c.l.b16 %v2436
      %v2477 = vunpack.c.h.b16 %v2436
      %v2478 = vunpack.c.l.b16 %v2437
      %v2479 = vunpack.c.h.b16 %v2437
      %v2480 = vunpack.c.l.b16 %v2438
      %v2481 = vunpack.c.h.b16 %v2438
      %v2482 = vunpack.c.l.b16 %v2439
      %v2483 = vunpack.c.h.b16 %v2439
      %v2484 = vunpack.c.l.b16 %v2440
      %v2485 = vunpack.c.h.b16 %v2440
      %v2486 = vunpack.c.l.b16 %v2441
      %v2487 = vunpack.c.h.b16 %v2441
      %v2488 = vunpack.c.l.b16 %v2442
      %v2489 = vunpack.c.h.b16 %v2442
      %v2490 = vunpack.c.l.b16 %v2443
      %v2491 = vunpack.c.h.b16 %v2443
      %v2492 = vpack.c.b16 %v2460, %v2460
      %v2493 = vpack.c.b16 %v2461, %v2461
      %v2494 = vpack.c.b16 %v2462, %v2462
      %v2495 = vpack.c.b16 %v2463, %v2463
      %v2496 = vpack.c.b16 %v2464, %v2464
      %v2497 = vpack.c.b16 %v2465, %v2465
      %v2498 = vpack.c.b16 %v2466, %v2466
      %v2499 = vpack.c.b16 %v2467, %v2467
      %v2500 = vpack.c.b16 %v2468, %v2468
      %v2501 = vpack.c.b16 %v2469, %v2469
      %v2502 = vpack.c.b16 %v2470, %v2470
      %v2503 = vpack.c.b16 %v2471, %v2471
      %v2504 = vpack.c.b16 %v2472, %v2472
      %v2505 = vpack.c.b16 %v2473, %v2473
      %v2506 = vpack.c.b16 %v2474, %v2474
      %v2507 = vpack.c.b16 %v2475, %v2475
      %v2508 = vpack.c.b16 %v2476, %v2476
      %v2509 = vpack.c.b16 %v2477, %v2477
      %v2510 = vpack.c.b16 %v2478, %v2478
      %v2511 = vpack.c.b16 %v2479, %v2479
      %v2512 = vpack.c.b16 %v2480, %v2480
      %v2513 = vpack.c.b16 %v2481, %v2481
      %v2514 = vpack.c.b16 %v2482, %v2482
      %v2515 = vpack.c.b16 %v2483, %v2483
      %v2516 = vpack.c.b16 %v2484, %v2484
      %v2517 = vpack.c.b16 %v2485, %v2485
      %v2518 = vpack.c.b16 %v2486, %v2486
      %v2519 = vpack.c.b16 %v2487, %v2487
      %v2520 = vpack.c.b16 %v2488, %v2488
      %v2521 = vpack.c.b16 %v2489, %v2489
      %v2522 = vpack.c.b16 %v2490, %v2490
      %v2523 = vpack.c.b16 %v2491, %v2491
      %vm2556 = vcmask 60416
      %2557 = vst.msk [vmem:[%s287] sm:$0xf] %vm2556, %v2492
      %2558 = vst.msk [vmem:[%s287 + $0x4] sm:$0xf] %vm2556, %v2493
      %2559 = vst.msk [vmem:[%s287 + $0x8] sm:$0xf] %vm2556, %v2494
      %2560 = vst.msk [vmem:[%s287 + $0xc] sm:$0xf] %vm2556, %v2495
      %2561 = vst.msk [vmem:[%s287 + $0x10] sm:$0xf] %vm2556, %v2496
      %2562 = vst.msk [vmem:[%s287 + $0x14] sm:$0xf] %vm2556, %v2497
      %2563 = vst.msk [vmem:[%s287 + $0x18] sm:$0xf] %vm2556, %v2498
      %2564 = vst.msk [vmem:[%s287 + $0x1c] sm:$0xf] %vm2556, %v2499
      %2565 = vst.msk [vmem:[%s287 + $0x20] sm:$0xf] %vm2556, %v2500
      %2566 = vst.msk [vmem:[%s287 + $0x24] sm:$0xf] %vm2556, %v2501
      %2567 = vst.msk [vmem:[%s287 + $0x28] sm:$0xf] %vm2556, %v2502
      %2568 = vst.msk [vmem:[%s287 + $0x2c] sm:$0xf] %vm2556, %v2503
      %2569 = vst.msk [vmem:[%s287 + $0x30] sm:$0xf] %vm2556, %v2504
      %2570 = vst.msk [vmem:[%s287 + $0x34] sm:$0xf] %vm2556, %v2505
      %2571 = vst.msk [vmem:[%s287 + $0x38] sm:$0xf] %vm2556, %v2506
      %2572 = vst.msk [vmem:[%s287 + $0x3c] sm:$0xf] %vm2556, %v2507
      %2573 = vst.msk [vmem:[%s287 + $0x40] sm:$0xf] %vm2556, %v2508
      %2574 = vst.msk [vmem:[%s287 + $0x44] sm:$0xf] %vm2556, %v2509
      %2575 = vst.msk [vmem:[%s287 + $0x48] sm:$0xf] %vm2556, %v2510
      %2576 = vst.msk [vmem:[%s287 + $0x4c] sm:$0xf] %vm2556, %v2511
      %2577 = vst.msk [vmem:[%s287 + $0x50] sm:$0xf] %vm2556, %v2512
      %2578 = vst.msk [vmem:[%s287 + $0x54] sm:$0xf] %vm2556, %v2513
      %2579 = vst.msk [vmem:[%s287 + $0x58] sm:$0xf] %vm2556, %v2514
      %2580 = vst.msk [vmem:[%s287 + $0x5c] sm:$0xf] %vm2556, %v2515
      %2581 = vst.msk [vmem:[%s287 + $0x60] sm:$0xf] %vm2556, %v2516
      %2582 = vst.msk [vmem:[%s287 + $0x64] sm:$0xf] %vm2556, %v2517
      %2583 = vst.msk [vmem:[%s287 + $0x68] sm:$0xf] %vm2556, %v2518
      %2584 = vst.msk [vmem:[%s287 + $0x6c] sm:$0xf] %vm2556, %v2519
      %2585 = vst.msk [vmem:[%s287 + $0x70] sm:$0xf] %vm2556, %v2520
      %2586 = vst.msk [vmem:[%s287 + $0x74] sm:$0xf] %vm2556, %v2521
      %2587 = vst.msk [vmem:[%s287 + $0x78] sm:$0xf] %vm2556, %v2522
      %2588 = vst.msk [vmem:[%s287 + $0x7c] sm:$0xf] %vm2556, %v2523
      %v2589 = vsel %vm809, %v2396, 0.0
      %v2590 = vsel %vm809, %v2397, 0.0
      %v2591 = vadd.f32 %v2589, %v2590
      %v2592 = vsel %vm809, %v2398, 0.0
      %v2593 = vadd.f32 %v2591, %v2592
      %v2594 = vsel %vm809, %v2399, 0.0
      %v2595 = vadd.f32 %v2593, %v2594
      %v2596 = vsel %vm809, %v2400, 0.0
      %v2597 = vadd.f32 %v2595, %v2596
      %v2598 = vsel %vm809, %v2401, 0.0
      %v2599 = vadd.f32 %v2597, %v2598
      %v2600 = vsel %vm809, %v2402, 0.0
      %v2601 = vadd.f32 %v2599, %v2600
      %v2602 = vsel %vm809, %v2403, 0.0
      %v2603 = vadd.f32 %v2601, %v2602
      %v2604 = vsel %vm809, %v2404, 0.0
      %v2605 = vadd.f32 %v2603, %v2604
      %v2606 = vsel %vm809, %v2405, 0.0
      %v2607 = vadd.f32 %v2605, %v2606
      %v2608 = vsel %vm809, %v2406, 0.0
      %v2609 = vadd.f32 %v2607, %v2608
      %v2610 = vsel %vm809, %v2407, 0.0
      %v2611 = vadd.f32 %v2609, %v2610
      %v2612 = vsel %vm809, %v2408, 0.0
      %v2613 = vadd.f32 %v2611, %v2612
      %v2614 = vsel %vm809, %v2409, 0.0
      %v2615 = vadd.f32 %v2613, %v2614
      %v2616 = vsel %vm809, %v2410, 0.0
      %v2617 = vadd.f32 %v2615, %v2616
      %v2618 = vsel %vm809, %v2411, 0.0
      %v2619 = vadd.f32 %v2617, %v2618
      %v2620 = vsel %vm809, %v2412, 0.0
      %v2621 = vadd.f32 %v2619, %v2620
      %v2622 = vsel %vm809, %v2413, 0.0
      %v2623 = vadd.f32 %v2621, %v2622
      %v2624 = vsel %vm809, %v2414, 0.0
      %v2625 = vadd.f32 %v2623, %v2624
      %v2626 = vsel %vm809, %v2415, 0.0
      %v2627 = vadd.f32 %v2625, %v2626
      %v2628 = vsel %vm809, %v2416, 0.0
      %v2629 = vadd.f32 %v2627, %v2628
      %v2630 = vsel %vm809, %v2417, 0.0
      %v2631 = vadd.f32 %v2629, %v2630
      %v2632 = vsel %vm809, %v2418, 0.0
      %v2633 = vadd.f32 %v2631, %v2632
      %v2634 = vsel %vm809, %v2419, 0.0
      %v2635 = vadd.f32 %v2633, %v2634
      %v2636 = vsel %vm809, %v2420, 0.0
      %v2637 = vadd.f32 %v2635, %v2636
      %v2638 = vsel %vm809, %v2421, 0.0
      %v2639 = vadd.f32 %v2637, %v2638
      %v2640 = vsel %vm809, %v2422, 0.0
      %v2641 = vadd.f32 %v2639, %v2640
      %v2642 = vsel %vm809, %v2423, 0.0
      %v2643 = vadd.f32 %v2641, %v2642
      %v2644 = vsel %vm809, %v2424, 0.0
      %v2645 = vadd.f32 %v2643, %v2644
      %v2646 = vsel %vm809, %v2425, 0.0
      %v2647 = vadd.f32 %v2645, %v2646
      %v2648 = vsel %vm809, %v2426, 0.0
      %v2649 = vadd.f32 %v2647, %v2648
      %v2650 = vsel %vm809, %v2427, 0.0
      %v2651 = vadd.f32 %v2649, %v2650
      %v2652 = vrot.slane %v2651, 4
      %v2653 = vadd.f32 %v2651, %v2652
      %v2654 = vrot.slane %v2653, 2
      %v2655 = vadd.f32 %v2653, %v2654
      %v2656 = vrot.slane %v2655, 1
      %v2657 = vadd.f32 %v2655, %v2656
      %v2658 = vmul.f32 %v2657, 0.00390625
      %v2659 = vsub.f32 %v2396, %v2658
      %v2660 = vsub.f32 %v2397, %v2658
      %v2661 = vsub.f32 %v2398, %v2658
      %v2662 = vsub.f32 %v2399, %v2658
      %v2663 = vsub.f32 %v2400, %v2658
      %v2664 = vsub.f32 %v2401, %v2658
      %v2665 = vsub.f32 %v2402, %v2658
      %v2666 = vsub.f32 %v2403, %v2658
      %v2667 = vsub.f32 %v2404, %v2658
      %v2668 = vsub.f32 %v2405, %v2658
      %v2669 = vsub.f32 %v2406, %v2658
      %v2670 = vsub.f32 %v2407, %v2658
      %v2671 = vsub.f32 %v2408, %v2658
      %v2672 = vsub.f32 %v2409, %v2658
      %v2673 = vsub.f32 %v2410, %v2658
      %v2674 = vsub.f32 %v2411, %v2658
      %v2675 = vsub.f32 %v2412, %v2658
      %v2676 = vsub.f32 %v2413, %v2658
      %v2677 = vsub.f32 %v2414, %v2658
      %v2678 = vsub.f32 %v2415, %v2658
      %v2679 = vsub.f32 %v2416, %v2658
      %v2680 = vsub.f32 %v2417, %v2658
      %v2681 = vsub.f32 %v2418, %v2658
      %v2682 = vsub.f32 %v2419, %v2658
      %v2683 = vsub.f32 %v2420, %v2658
      %v2684 = vsub.f32 %v2421, %v2658
      %v2685 = vsub.f32 %v2422, %v2658
      %v2686 = vsub.f32 %v2423, %v2658
      %v2687 = vsub.f32 %v2424, %v2658
      %v2688 = vsub.f32 %v2425, %v2658
      %v2689 = vsub.f32 %v2426, %v2658
      %v2690 = vsub.f32 %v2427, %v2658
      %v2691 = vmul.f32 %v2659, %v2659
      %v2692 = vmul.f32 %v2660, %v2660
      %v2693 = vmul.f32 %v2661, %v2661
      %v2694 = vmul.f32 %v2662, %v2662
      %v2695 = vmul.f32 %v2663, %v2663
      %v2696 = vmul.f32 %v2664, %v2664
      %v2697 = vmul.f32 %v2665, %v2665
      %v2698 = vmul.f32 %v2666, %v2666
      %v2699 = vmul.f32 %v2667, %v2667
      %v2700 = vmul.f32 %v2668, %v2668
      %v2701 = vmul.f32 %v2669, %v2669
      %v2702 = vmul.f32 %v2670, %v2670
      %v2703 = vmul.f32 %v2671, %v2671
      %v2704 = vmul.f32 %v2672, %v2672
      %v2705 = vmul.f32 %v2673, %v2673
      %v2706 = vmul.f32 %v2674, %v2674
      %v2707 = vmul.f32 %v2675, %v2675
      %v2708 = vmul.f32 %v2676, %v2676
      %v2709 = vmul.f32 %v2677, %v2677
      %v2710 = vmul.f32 %v2678, %v2678
      %v2711 = vmul.f32 %v2679, %v2679
      %v2712 = vmul.f32 %v2680, %v2680
      %v2713 = vmul.f32 %v2681, %v2681
      %v2714 = vmul.f32 %v2682, %v2682
      %v2715 = vmul.f32 %v2683, %v2683
      %v2716 = vmul.f32 %v2684, %v2684
      %v2717 = vmul.f32 %v2685, %v2685
      %v2718 = vmul.f32 %v2686, %v2686
      %v2719 = vmul.f32 %v2687, %v2687
      %v2720 = vmul.f32 %v2688, %v2688
      %v2721 = vmul.f32 %v2689, %v2689
      %v2722 = vmul.f32 %v2690, %v2690
      %v2723 = vsel %vm809, %v2691, 0.0
      %v2724 = vsel %vm809, %v2692, 0.0
      %v2725 = vadd.f32 %v2723, %v2724
      %v2726 = vsel %vm809, %v2693, 0.0
      %v2727 = vadd.f32 %v2725, %v2726
      %v2728 = vsel %vm809, %v2694, 0.0
      %v2729 = vadd.f32 %v2727, %v2728
      %v2730 = vsel %vm809, %v2695, 0.0
      %v2731 = vadd.f32 %v2729, %v2730
      %v2732 = vsel %vm809, %v2696, 0.0
      %v2733 = vadd.f32 %v2731, %v2732
      %v2734 = vsel %vm809, %v2697, 0.0
      %v2735 = vadd.f32 %v2733, %v2734
      %v2736 = vsel %vm809, %v2698, 0.0
      %v2737 = vadd.f32 %v2735, %v2736
      %v2738 = vsel %vm809, %v2699, 0.0
      %v2739 = vadd.f32 %v2737, %v2738
      %v2740 = vsel %vm809, %v2700, 0.0
      %v2741 = vadd.f32 %v2739, %v2740
      %v2742 = vsel %vm809, %v2701, 0.0
      %v2743 = vadd.f32 %v2741, %v2742
      %v2744 = vsel %vm809, %v2702, 0.0
      %v2745 = vadd.f32 %v2743, %v2744
      %v2746 = vsel %vm809, %v2703, 0.0
      %v2747 = vadd.f32 %v2745, %v2746
      %v2748 = vsel %vm809, %v2704, 0.0
      %v2749 = vadd.f32 %v2747, %v2748
      %v2750 = vsel %vm809, %v2705, 0.0
      %v2751 = vadd.f32 %v2749, %v2750
      %v2752 = vsel %vm809, %v2706, 0.0
      %v2753 = vadd.f32 %v2751, %v2752
      %v2754 = vsel %vm809, %v2707, 0.0
      %v2755 = vadd.f32 %v2753, %v2754
      %v2756 = vsel %vm809, %v2708, 0.0
      %v2757 = vadd.f32 %v2755, %v2756
      %v2758 = vsel %vm809, %v2709, 0.0
      %v2759 = vadd.f32 %v2757, %v2758
      %v2760 = vsel %vm809, %v2710, 0.0
      %v2761 = vadd.f32 %v2759, %v2760
      %v2762 = vsel %vm809, %v2711, 0.0
      %v2763 = vadd.f32 %v2761, %v2762
      %v2764 = vsel %vm809, %v2712, 0.0
      %v2765 = vadd.f32 %v2763, %v2764
      %v2766 = vsel %vm809, %v2713, 0.0
      %v2767 = vadd.f32 %v2765, %v2766
      %v2768 = vsel %vm809, %v2714, 0.0
      %v2769 = vadd.f32 %v2767, %v2768
      %v2770 = vsel %vm809, %v2715, 0.0
      %v2771 = vadd.f32 %v2769, %v2770
      %v2772 = vsel %vm809, %v2716, 0.0
      %v2773 = vadd.f32 %v2771, %v2772
      %v2774 = vsel %vm809, %v2717, 0.0
      %v2775 = vadd.f32 %v2773, %v2774
      %v2776 = vsel %vm809, %v2718, 0.0
      %v2777 = vadd.f32 %v2775, %v2776
      %v2778 = vsel %vm809, %v2719, 0.0
      %v2779 = vadd.f32 %v2777, %v2778
      %v2780 = vsel %vm809, %v2720, 0.0
      %v2781 = vadd.f32 %v2779, %v2780
      %v2782 = vsel %vm809, %v2721, 0.0
      %v2783 = vadd.f32 %v2781, %v2782
      %v2784 = vsel %vm809, %v2722, 0.0
      %v2785 = vadd.f32 %v2783, %v2784
      %v2786 = vrot.slane %v2785, 4
      %v2787 = vadd.f32 %v2785, %v2786
      %v2788 = vrot.slane %v2787, 2
      %v2789 = vadd.f32 %v2787, %v2788
      %v2790 = vrot.slane %v2789, 1
      %v2791 = vadd.f32 %v2789, %v2790
      %vm2792 = vcmask 57344
      %2793 = vst.msk [vmem:[%s295] sm:$0x1] %vm2792, %v2658
      %2794 = vst.msk [vmem:[%s295 + $0x1] sm:$0x1] %vm2792, %v2791
      %s2795 = smul.u32 16, %s23
      %p2796 = scmp.lt.s32.totalorder %s22, 1
      %s2797 = scalar_select %p2796, %s22, 1
      %p2798 = scmp.lt.s32.totalorder %s2795, 15
      %s2799 = scalar_select %p2798, %s2795, 15
      %s2800 = smul.addr %s2799, 2
      %s2801 = smul.addr %s2797, 32
      %s2802 = sadd.s32 %s2800, %s2801
      %s2803 = smul.addr %s2802, 4
      %s2804 = scalar_lea.vmem %s5, %s2803
      %p2805 = scmp.lt.s32.totalorder %s22, 1
      %s2806 = scalar_select %p2805, %s22, 1
      %p2807 = scmp.lt.s32.totalorder %s23, 0
      %s2808 = scalar_select %p2807, %s23, 0
      %s2809 = sadd.s32 %s2808, %s2806
      %s2810 = smul.addr %s2809, 2
      %s2811 = scalar_lea.vmem %s6, %s2810
      // Predicated region
      $region45: #{_lambda_.3} parent=39 // pred_check
        %p2812 = pneg %p160
      $region46: #{_lambda_.3} parent=39 // pred_check_branch
        %2814 = sbr.rel (%p2812) target = $region48
      $region47: #{_lambda_.3} parent=39 // pred_region
        %s2815 = smul.u32 16, %s23
      $region48: #{_lambda_.3} parent=39 // pred_fallthru
        _
      // Predicated region
      $region49: #{_lambda_.3} parent=39 // pred_check
        %p2816 = pneg %p188
      $region50: #{_lambda_.3} parent=39 // pred_check_branch
        %2818 = sbr.rel (%p2816) target = $region52
      $region51: #{_lambda_.3} parent=39 // pred_region
        _
      $region52: #{_lambda_.3} parent=39 // pred_fallthru
        _
    $region40: #{_lambda_.3} parent=5 // pred_fallthru
      _
    %p2819 = scmp.le.s32.totalorder 2, %s13
    // Predicated region
    $region53: #{_lambda_.3} parent=5 // pred_check
      %p2820 = pneg %p2819
    $region54: #{_lambda_.3} parent=5 // pred_check_branch
      %2822 = sbr.rel (%p2820) target = $region56
    $region55: #{_lambda_.3} parent=5 // pred_region
      %s2823 = ssub.s32 %s13, 2
      // Predicated region
      $region57: #{_lambda_.3} parent=55 // pred_check
        %p2824 = pneg %p166
      $region58: #{_lambda_.3} parent=55 // pred_check_branch
        %2826 = sbr.rel (%p2824) target = $region60
      $region59: #{_lambda_.3} parent=55 // pred_region
        %s2827 = smul.u32 16, %s25
        %p2828 = scmp.lt.s32.totalorder %s24, 1
        %s2829 = scalar_select %p2828, %s24, 1
        %p2830 = scmp.lt.s32.totalorder %s2827, 15
        %s2831 = scalar_select %p2830, %s2827, 15
        %s2832 = smul.addr %s2831, 2
        %s2833 = smul.addr %s2829, 32
        %s2834 = sadd.s32 %s2832, %s2833
        %s2835 = smul.addr %s2834, 4
        %s2836 = scalar_lea.vmem %s5, %s2835
      $region60: #{_lambda_.3} parent=55 // pred_fallthru
        _
      // Predicated region
      $region61: #{_lambda_.3} parent=55 // pred_check
        %p2837 = pneg %p194
      $region62: #{_lambda_.3} parent=55 // pred_check_branch
        %2839 = sbr.rel (%p2837) target = $region64
      $region63: #{_lambda_.3} parent=55 // pred_region
        %p2840 = scmp.lt.s32.totalorder %s24, 1
        %s2841 = scalar_select %p2840, %s24, 1
        %p2842 = scmp.lt.s32.totalorder %s25, 0
        %s2843 = scalar_select %p2842, %s25, 0
        %s2844 = sadd.s32 %s2843, %s2841
        %s2845 = smul.addr %s2844, 2
        %s2846 = scalar_lea.vmem %s6, %s2845
      $region64: #{_lambda_.3} parent=55 // pred_fallthru
        _
    $region56: #{_lambda_.3} parent=5 // pred_fallthru
      _
  $region6: #{_lambda_.3} parent=0 // loop_footer
    %s17 = sadd.s32 1, %s13
  $region7: #{_lambda_.3} parent=0 // loop_footer_branch
    %12 = sbr.rel target = $region3
  $region8: #{_lambda_.3} parent=0 // loop_exit
    _

// kernel: _lambda_.2
$region0: #{_lambda_.2}
  #allocation0 [shape = 'u32[]', space=smem, size = 0x4, offset = 0x4, fixed_abs, tag = 'smem constant byte address 0x4 - core index']
  #allocation1 [shape = 'u32[144,128]{1,0:T(1,128)}', space=vmem, size = 0x12000, scoped, tag = 'internal scratch']
  #allocation2 [shape = 'bf16[18,16,8]{2,1,0:T(16,128)(2,1)}', space=vmem, size = 0x12000, scoped, tag = 'scratch operand']
  %s0 = inlined_call_operand.vmem [shape: bf16[2,16,16,4], index: 0, kind: input, shape index: {}]
  %s1 = inlined_call_operand.vmem [shape: bf16[2,16,16,4], index: 1, kind: input, shape index: {}]
  %s2 = inlined_call_operand.vmem [shape: bf16[3,24,8], index: 2, kind: input, shape index: {}]
  %s3 = inlined_call_operand.vmem [shape: f32[1,8], index: 3, kind: input, shape index: {}]
  %s4 = inlined_call_operand.vmem [shape: bf16[2,16,16,8], index: 4, kind: output, shape index: {0}]
  %s5 = inlined_call_operand.vmem [shape: f32[2,1,2,8], index: 5, kind: output, shape index: {1}]
  %6 = xla_tuple %s4, %s5
  %s7 = sld [smem:[#allocation0]]
  $region61: #{_lambda_.2} parent=0
    _
  %s9 = ssub.s32 1, %s7
  %s10 = scalar_select 0, %s9, %s7
  loop: start=0, step=1, limit=4
  $region2: #{_lambda_.2} parent=0 // loop_pre_header
    _
  $region3: #{_lambda_.2} parent=0 // loop_header
    %s12 = sphi 0, %s16
    %p13 = scmp.ge.s32.totalorder %s12, 4
    %s19 = sphi 0, %s31
    %s20 = sphi 0, %s27
    %s21 = sphi 0, %s19
    %s22 = sphi 0, %s20
    %s23 = sphi 0, %s21
    %s24 = sphi 0, %s22
    %s34 = sphi 0, %s36
    %s37 = sphi 0, %s34
    %s38 = sphi 0, %s37
    %s54 = sphi 0, %s38
    %s60 = sphi 0, %s62
    %s63 = sphi 0, %s60
    %s64 = sphi 0, %s63
    %s80 = sphi 0, %s64
    %s84 = sphi 0, %s84
    %s86 = sphi 0, %s84
    %s87 = sphi 0, %s86
    %s101 = sphi 0, %s87
    %s105 = sphi 0, %s105
    %s107 = sphi 0, %s105
    %s108 = sphi 0, %s107
    %s122 = sphi 0, %s108
    %s130 = sphi 0, %s132
    %s133 = sphi 0, %s130
    %s134 = sphi 0, %s133
    %s150 = sphi 0, %s134
    %s158 = sphi 0, %s160
    %s161 = sphi 0, %s158
    %s162 = sphi 0, %s161
    %s178 = sphi 0, %s162
  $region4: #{_lambda_.2} parent=0 // loop_header_branch
    %15 = sbr.rel (%p13) target = $region8
  $region5: #{_lambda_.2} parent=0 // loop_body
    %s17 = ssub.s32 %s12, 1
    %s18 = ssub.s32 %s12, 2
    %s25 = sadd.s32 1, %s20
    %p26 = scmp.ge.s32.totalorder %s25, 1
    %s27 = scalar_select %p26, 0, %s25
    %s28 = sadd.s32 1, %s19
    %s29 = scalar_select %p26, %s28, %s19
    %p30 = scmp.ge.s32.totalorder %s29, 2
    %s31 = scalar_select %p30, 0, %s29
    %s32 = ssub.s32 %s19, %s31
    %p33 = scmp.eq.s32.totalorder %s32, 0
    %s35 = sadd.s32 %s34, 1
    %s36 = scalar_select %p33, %s34, %s35
    %p39 = pneg %p33
    %p40 = scmp.eq.s32.totalorder %s12, 1
    %p41 = por %p39, %p40
    %p42 = scmp.ne.s32.totalorder %s34, %s37
    %p43 = scmp.eq.s32.totalorder %s12, 0
    %p44 = por %p42, %p43
    %p45 = scmp.ne.s32.totalorder %s34, %s37
    %p46 = scmp.eq.s32.totalorder %s17, 1
    %p47 = por %p45, %p46
    %p48 = scmp.ne.s32.totalorder %s37, %s38
    %p49 = scmp.eq.s32.totalorder %s17, 0
    %p50 = por %p48, %p49
    %p51 = scmp.ne.s32.totalorder %s37, %s38
    %p52 = scmp.eq.s32.totalorder %s18, 1
    %p53 = por %p51, %p52
    %p55 = scmp.ne.s32.totalorder %s38, %s54
    %p56 = scmp.eq.s32.totalorder %s18, 0
    %p57 = por %p55, %p56
    %s58 = ssub.s32 %s19, %s31
    %p59 = scmp.eq.s32.totalorder %s58, 0
    %s61 = sadd.s32 %s60, 1
    %s62 = scalar_select %p59, %s60, %s61
    %p65 = pneg %p59
    %p66 = scmp.eq.s32.totalorder %s12, 1
    %p67 = por %p65, %p66
    %p68 = scmp.ne.s32.totalorder %s60, %s63
    %p69 = scmp.eq.s32.totalorder %s12, 0
    %p70 = por %p68, %p69
    %p71 = scmp.ne.s32.totalorder %s60, %s63
    %p72 = scmp.eq.s32.totalorder %s17, 1
    %p73 = por %p71, %p72
    %p74 = scmp.ne.s32.totalorder %s63, %s64
    %p75 = scmp.eq.s32.totalorder %s17, 0
    %p76 = por %p74, %p75
    %p77 = scmp.ne.s32.totalorder %s63, %s64
    %p78 = scmp.eq.s32.totalorder %s18, 1
    %p79 = por %p77, %p78
    %p81 = scmp.ne.s32.totalorder %s64, %s80
    %p82 = scmp.eq.s32.totalorder %s18, 0
    %p83 = por %p81, %p82
    %s85 = sadd.s32 %s84, 1
    %p88 = scmp.eq.s32.totalorder %s12, 1
    %p89 = scmp.ne.s32.totalorder %s84, %s86
    %p90 = scmp.eq.s32.totalorder %s12, 0
    %p91 = por %p89, %p90
    %p92 = scmp.ne.s32.totalorder %s84, %s86
    %p93 = scmp.eq.s32.totalorder %s17, 1
    %p94 = por %p92, %p93
    %p95 = scmp.ne.s32.totalorder %s86, %s87
    %p96 = scmp.eq.s32.totalorder %s17, 0
    %p97 = por %p95, %p96
    %p98 = scmp.ne.s32.totalorder %s86, %s87
    %p99 = scmp.eq.s32.totalorder %s18, 1
    %p100 = por %p98, %p99
    %p102 = scmp.ne.s32.totalorder %s87, %s101
    %p103 = scmp.eq.s32.totalorder %s18, 0
    %p104 = por %p102, %p103
    %s106 = sadd.s32 %s105, 1
    %p109 = scmp.eq.s32.totalorder %s12, 1
    %p110 = scmp.ne.s32.totalorder %s105, %s107
    %p111 = scmp.eq.s32.totalorder %s12, 0
    %p112 = por %p110, %p111
    %p113 = scmp.ne.s32.totalorder %s105, %s107
    %p114 = scmp.eq.s32.totalorder %s17, 1
    %p115 = por %p113, %p114
    %p116 = scmp.ne.s32.totalorder %s107, %s108
    %p117 = scmp.eq.s32.totalorder %s17, 0
    %p118 = por %p116, %p117
    %p119 = scmp.ne.s32.totalorder %s107, %s108
    %p120 = scmp.eq.s32.totalorder %s18, 1
    %p121 = por %p119, %p120
    %p123 = scmp.ne.s32.totalorder %s108, %s122
    %p124 = scmp.eq.s32.totalorder %s18, 0
    %p125 = por %p123, %p124
    %s126 = ssub.s32 %s19, %s31
    %s127 = ssub.s32 %s20, %s27
    %s128 = sor.u32 %s126, %s127
    %p129 = scmp.eq.s32.totalorder %s128, 0
    %s131 = sadd.s32 %s130, 1
    %s132 = scalar_select %p129, %s130, %s131
    %p135 = pneg %p129
    %p136 = scmp.eq.s32.totalorder %s12, 1
    %p137 = por %p135, %p136
    %p138 = scmp.ne.s32.totalorder %s130, %s133
    %p139 = scmp.eq.s32.totalorder %s12, 0
    %p140 = por %p138, %p139
    %p141 = scmp.ne.s32.totalorder %s130, %s133
    %p142 = scmp.eq.s32.totalorder %s17, 1
    %p143 = por %p141, %p142
    %p144 = scmp.ne.s32.totalorder %s133, %s134
    %p145 = scmp.eq.s32.totalorder %s17, 0
    %p146 = por %p144, %p145
    %p147 = scmp.ne.s32.totalorder %s133, %s134
    %p148 = scmp.eq.s32.totalorder %s18, 1
    %p149 = por %p147, %p148
    %p151 = scmp.ne.s32.totalorder %s134, %s150
    %p152 = scmp.eq.s32.totalorder %s18, 0
    %p153 = por %p151, %p152
    %s154 = ssub.s32 %s19, %s31
    %s155 = ssub.s32 %s20, %s27
    %s156 = sor.u32 %s154, %s155
    %p157 = scmp.eq.s32.totalorder %s156, 0
    %s159 = sadd.s32 %s158, 1
    %s160 = scalar_select %p157, %s158, %s159
    %p163 = pneg %p157
    %p164 = scmp.eq.s32.totalorder %s12, 1
    %p165 = por %p163, %p164
    %p166 = scmp.ne.s32.totalorder %s158, %s161
    %p167 = scmp.eq.s32.totalorder %s12, 0
    %p168 = por %p166, %p167
    %p169 = scmp.ne.s32.totalorder %s158, %s161
    %p170 = scmp.eq.s32.totalorder %s17, 1
    %p171 = por %p169, %p170
    %p172 = scmp.ne.s32.totalorder %s161, %s162
    %p173 = scmp.eq.s32.totalorder %s17, 0
    %p174 = por %p172, %p173
    %p175 = scmp.ne.s32.totalorder %s161, %s162
    %p176 = scmp.eq.s32.totalorder %s18, 1
    %p177 = por %p175, %p176
    %p179 = scmp.ne.s32.totalorder %s162, %s178
    %p180 = scmp.eq.s32.totalorder %s18, 0
    %p181 = por %p179, %p180
    %p182 = scmp.le.s32.totalorder 1, %s12
    %p183 = scmp.lt.s32.totalorder %s12, 3
    %p184 = pnand %p182, %p183
    %p185 = pneg %p184
    // Predicated region
    $region9: #{_lambda_.2} parent=5 // pred_check
      _
    $region10: #{_lambda_.2} parent=5 // pred_check_branch
      %187 = sbr.rel (%p184) target = $region12
    $region11: #{_lambda_.2} parent=5 // pred_region
      %s188 = ssub.s32 %s12, 1
      // Predicated region
      $region13: #{_lambda_.2} parent=11 // pred_check
        %p189 = pneg %p97
      $region14: #{_lambda_.2} parent=11 // pred_check_branch
        %191 = sbr.rel (%p189) target = $region16
      $region15: #{_lambda_.2} parent=11 // pred_region
        _
      $region16: #{_lambda_.2} parent=11 // pred_fallthru
        _
      // Predicated region
      $region17: #{_lambda_.2} parent=11 // pred_check
        %p192 = pneg %p118
      $region18: #{_lambda_.2} parent=11 // pred_check_branch
        %194 = sbr.rel (%p192) target = $region20
      $region19: #{_lambda_.2} parent=11 // pred_region
        _
      $region20: #{_lambda_.2} parent=11 // pred_fallthru
        _
    $region12: #{_lambda_.2} parent=5 // pred_fallthru
      _
    %p195 = scmp.lt.s32.totalorder %s12, 2
    // Predicated region
    $region21: #{_lambda_.2} parent=5 // pred_check
      %p196 = pneg %p195
    $region22: #{_lambda_.2} parent=5 // pred_check_branch
      %198 = sbr.rel (%p196) target = $region24
    $region23: #{_lambda_.2} parent=5 // pred_region
      // Predicated region
      $region25: #{_lambda_.2} parent=23 // pred_check
        %p199 = pneg %p44
      $region26: #{_lambda_.2} parent=23 // pred_check_branch
        %201 = sbr.rel (%p199) target = $region28
      $region27: #{_lambda_.2} parent=23 // pred_region
        %p202 = scmp.lt.s32.totalorder %s19, 1
        %s203 = scalar_select %p202, %s19, 1
        %s204 = smul.addr %s203, 32
        %s205 = smul.addr %s204, 4
        %s206 = scalar_lea.vmem %s0, %s205
      $region28: #{_lambda_.2} parent=23 // pred_fallthru
        _
      // Predicated region
      $region29: #{_lambda_.2} parent=23 // pred_check
        %p207 = pneg %p70
      $region30: #{_lambda_.2} parent=23 // pred_check_branch
        %209 = sbr.rel (%p207) target = $region32
      $region31: #{_lambda_.2} parent=23 // pred_region
        %p210 = scmp.lt.s32.totalorder %s19, 1
        %s211 = scalar_select %p210, %s19, 1
        %s212 = smul.addr %s211, 32
        %s213 = smul.addr %s212, 4
        %s214 = scalar_lea.vmem %s1, %s213
      $region32: #{_lambda_.2} parent=23 // pred_fallthru
        _
    $region24: #{_lambda_.2} parent=5 // pred_fallthru
      _
    %p215 = scmp.le.s32.totalorder 1, %s12
    %p216 = scmp.lt.s32.totalorder %s12, 3
    %p217 = pnand %p215, %p216
    %p218 = pneg %p217
    // Predicated region
    $region33: #{_lambda_.2} parent=5 // pred_check
      _
    $region34: #{_lambda_.2} parent=5 // pred_check_branch
      %220 = sbr.rel (%p217) target = $region36
    $region35: #{_lambda_.2} parent=5 // pred_region
      %s221 = ssub.s32 %s12, 1
      %p222 = scmp.lt.s32.totalorder %s21, 1
      %s223 = scalar_select %p222, %s21, 1
      %s224 = smul.addr %s223, 32
      %s225 = smul.addr %s224, 4
      %s226 = scalar_lea.vmem %s0, %s225
      %p227 = pneg %p50
      %p228 = pneg %p47
      %p229 = scmp.lt.s32.totalorder %s21, 1
      %s230 = scalar_select %p229, %s21, 1
      %s231 = smul.addr %s230, 32
      %s232 = smul.addr %s231, 4
      %s233 = scalar_lea.vmem %s1, %s232
      %p234 = pneg %p76
      %p235 = pneg %p73
      %p236 = pneg %p97
      %p237 = pneg %p94
      %p238 = pneg %p118
      %p239 = pneg %p115
      %p240 = pneg %p146
      %p241 = pneg %p143
      %s242 = smul.u32 16, %s22
      %p243 = scmp.lt.s32.totalorder %s21, 1
      %s244 = scalar_select %p243, %s21, 1
      %p245 = scmp.lt.s32.totalorder %s242, 15
      %s246 = scalar_select %p245, %s242, 15
      %s247 = smul.addr %s246, 2
      %s248 = smul.addr %s244, 32
      %s249 = sadd.s32 %s247, %s248
      %s250 = smul.addr %s249, 4
      %s251 = scalar_lea.vmem %s4, %s250
      %p252 = pneg %p174
      %p253 = pneg %p171
      %p254 = scmp.lt.s32.totalorder %s21, 1
      %s255 = scalar_select %p254, %s21, 1
      %p256 = scmp.lt.s32.totalorder %s22, 0
      %s257 = scalar_select %p256, %s22, 0
      %s258 = sadd.s32 %s257, %s255
      %s259 = smul.addr %s258, 2
      %s260 = scalar_lea.vmem %s5, %s259
      %p261 = scmp.lt.s32.totalorder %s21, 1
      %s262 = scalar_select %p261, %s21, 1
      %s263 = smul.addr %s262, 32
      %s264 = smul.addr %s263, 4
      %s265 = scalar_lea.vmem %s0, %s264
      %p266 = scmp.lt.s32.totalorder %s21, 1
      %s267 = scalar_select %p266, %s21, 1
      %s268 = smul.addr %s267, 32
      %s269 = smul.addr %s268, 4
      %s270 = scalar_lea.vmem %s1, %s269
      %s271 = smul.u32 16, %s22
      %p272 = scmp.lt.s32.totalorder %s21, 1
      %s273 = scalar_select %p272, %s21, 1
      %p274 = scmp.lt.s32.totalorder %s271, 15
      %s275 = scalar_select %p274, %s271, 15
      %s276 = smul.addr %s275, 2
      %s277 = smul.addr %s273, 32
      %s278 = sadd.s32 %s276, %s277
      %s279 = smul.addr %s278, 4
      %s280 = scalar_lea.vmem %s4, %s279
      %s281 = smul.u32 16, %s22
      %p282 = scmp.lt.s32.totalorder %s21, 1
      %s283 = scalar_select %p282, %s21, 1
      %p284 = scmp.lt.s32.totalorder %s22, 0
      %s285 = scalar_select %p284, %s22, 0
      %s286 = sadd.s32 %s285, %s283
      %s287 = smul.addr %s286, 2
      %s288 = scalar_lea.vmem %s5, %s287
      %p290 = scmp.eq.s32.totalorder %s22, 0
      // Predicated region
      $region37: #{_lambda_.2} parent=35 // pred_check
        %p291 = pneg %p290
      $region38: #{_lambda_.2} parent=35 // pred_check_branch
        %293 = sbr.rel (%p291) target = $region40
      $region39: #{_lambda_.2} parent=35 // pred_region
        %vm294 = vcmask 64512
        %295 = vst.msk [vmem:[#allocation2] sm:$0xff] %vm294, 0
        %s296 = scalar_lea.vmem [#allocation2], 136
        %297 = vst.msk [vmem:[%s296] sm:$0xff] %vm294, 0
        %v298 = vld [vmem:[%s265] sm:$0xf]
        %v299 = vld [vmem:[%s265 + $0x4] sm:$0xf]
        %v300 = vld [vmem:[%s265 + $0x8] sm:$0xf]
        %v301 = vld [vmem:[%s265 + $0xc] sm:$0xf]
        %v302 = vld [vmem:[%s265 + $0x10] sm:$0xf]
        %v303 = vld [vmem:[%s265 + $0x14] sm:$0xf]
        %v304 = vld [vmem:[%s265 + $0x18] sm:$0xf]
        %v305 = vld [vmem:[%s265 + $0x1c] sm:$0xf]
        %v306 = vld [vmem:[%s265 + $0x20] sm:$0xf]
        %v307 = vld [vmem:[%s265 + $0x24] sm:$0xf]
        %v308 = vld [vmem:[%s265 + $0x28] sm:$0xf]
        %v309 = vld [vmem:[%s265 + $0x2c] sm:$0xf]
        %v310 = vld [vmem:[%s265 + $0x30] sm:$0xf]
        %v311 = vld [vmem:[%s265 + $0x34] sm:$0xf]
        %v312 = vld [vmem:[%s265 + $0x38] sm:$0xf]
        %v313 = vld [vmem:[%s265 + $0x3c] sm:$0xf]
        %v314 = vld [vmem:[%s265 + $0x40] sm:$0xf]
        %v315 = vld [vmem:[%s265 + $0x44] sm:$0xf]
        %v316 = vld [vmem:[%s265 + $0x48] sm:$0xf]
        %v317 = vld [vmem:[%s265 + $0x4c] sm:$0xf]
        %v318 = vld [vmem:[%s265 + $0x50] sm:$0xf]
        %v319 = vld [vmem:[%s265 + $0x54] sm:$0xf]
        %v320 = vld [vmem:[%s265 + $0x58] sm:$0xf]
        %v321 = vld [vmem:[%s265 + $0x5c] sm:$0xf]
        %v322 = vld [vmem:[%s265 + $0x60] sm:$0xf]
        %v323 = vld [vmem:[%s265 + $0x64] sm:$0xf]
        %v324 = vld [vmem:[%s265 + $0x68] sm:$0xf]
        %v325 = vld [vmem:[%s265 + $0x6c] sm:$0xf]
        %v326 = vld [vmem:[%s265 + $0x70] sm:$0xf]
        %v327 = vld [vmem:[%s265 + $0x74] sm:$0xf]
        %v328 = vld [vmem:[%s265 + $0x78] sm:$0xf]
        %v329 = vld [vmem:[%s265 + $0x7c] sm:$0xf]
        %v362 = vunpack.c.l.b16 %v298
        %v363 = vunpack.c.l.b16 %v299
        %v364 = vunpack.c.l.b16 %v300
        %v365 = vunpack.c.l.b16 %v301
        %v366 = vunpack.c.l.b16 %v302
        %v367 = vunpack.c.l.b16 %v303
        %v368 = vunpack.c.l.b16 %v304
        %v369 = vunpack.c.l.b16 %v305
        %v370 = vunpack.c.l.b16 %v306
        %v371 = vunpack.c.l.b16 %v307
        %v372 = vunpack.c.l.b16 %v308
        %v373 = vunpack.c.l.b16 %v309
        %v374 = vunpack.c.l.b16 %v310
        %v375 = vunpack.c.l.b16 %v311
        %v376 = vunpack.c.l.b16 %v312
        %v377 = vunpack.c.l.b16 %v313
        %v378 = vunpack.c.l.b16 %v314
        %v379 = vunpack.c.l.b16 %v315
        %v380 = vunpack.c.l.b16 %v316
        %v381 = vunpack.c.l.b16 %v317
        %v382 = vunpack.c.l.b16 %v318
        %v383 = vunpack.c.l.b16 %v319
        %v384 = vunpack.c.l.b16 %v320
        %v385 = vunpack.c.l.b16 %v321
        %v386 = vunpack.c.l.b16 %v322
        %v387 = vunpack.c.l.b16 %v323
        %v388 = vunpack.c.l.b16 %v324
        %v389 = vunpack.c.l.b16 %v325
        %v390 = vunpack.c.l.b16 %v326
        %v391 = vunpack.c.l.b16 %v327
        %v392 = vunpack.c.l.b16 %v328
        %v393 = vunpack.c.l.b16 %v329
        %v394 = vpack.c.b16 %v363, %v362
        %v395 = vpack.c.b16 %v365, %v364
        %v396 = vpack.c.b16 %v367, %v366
        %v397 = vpack.c.b16 %v369, %v368
        %v398 = vpack.c.b16 %v371, %v370
        %v399 = vpack.c.b16 %v373, %v372
        %v400 = vpack.c.b16 %v375, %v374
        %v401 = vpack.c.b16 %v377, %v376
        %v402 = vpack.c.b16 %v379, %v378
        %v403 = vpack.c.b16 %v381, %v380
        %v404 = vpack.c.b16 %v383, %v382
        %v405 = vpack.c.b16 %v385, %v384
        %v406 = vpack.c.b16 %v387, %v386
        %v407 = vpack.c.b16 %v389, %v388
        %v408 = vpack.c.b16 %v391, %v390
        %v409 = vpack.c.b16 %v393, %v392
        %s426 = scalar_lea.vmem [#allocation2], 8
        %vm427 = vcmask 31744
        %428 = vst.msk [vmem:[%s426] sm:$0xff] %vm427, %v394
        %429 = vst.msk [vmem:[%s426 + $0x8] sm:$0xff] %vm427, %v395
        %430 = vst.msk [vmem:[%s426 + $0x10] sm:$0xff] %vm427, %v396
        %431 = vst.msk [vmem:[%s426 + $0x18] sm:$0xff] %vm427, %v397
        %432 = vst.msk [vmem:[%s426 + $0x20] sm:$0xff] %vm427, %v398
        %433 = vst.msk [vmem:[%s426 + $0x28] sm:$0xff] %vm427, %v399
        %434 = vst.msk [vmem:[%s426 + $0x30] sm:$0xff] %vm427, %v400
        %435 = vst.msk [vmem:[%s426 + $0x38] sm:$0xff] %vm427, %v401
        %436 = vst.msk [vmem:[%s426 + $0x40] sm:$0xff] %vm427, %v402
        %437 = vst.msk [vmem:[%s426 + $0x48] sm:$0xff] %vm427, %v403
        %438 = vst.msk [vmem:[%s426 + $0x50] sm:$0xff] %vm427, %v404
        %439 = vst.msk [vmem:[%s426 + $0x58] sm:$0xff] %vm427, %v405
        %440 = vst.msk [vmem:[%s426 + $0x60] sm:$0xff] %vm427, %v406
        %441 = vst.msk [vmem:[%s426 + $0x68] sm:$0xff] %vm427, %v407
        %442 = vst.msk [vmem:[%s426 + $0x70] sm:$0xff] %vm427, %v408
        %443 = vst.msk [vmem:[%s426 + $0x78] sm:$0xff] %vm427, %v409
        %v444 = vld [vmem:[%s270] sm:$0xf]
        %v445 = vld [vmem:[%s270 + $0x4] sm:$0xf]
        %v446 = vld [vmem:[%s270 + $0x8] sm:$0xf]
        %v447 = vld [vmem:[%s270 + $0xc] sm:$0xf]
        %v448 = vld [vmem:[%s270 + $0x10] sm:$0xf]
        %v449 = vld [vmem:[%s270 + $0x14] sm:$0xf]
        %v450 = vld [vmem:[%s270 + $0x18] sm:$0xf]
        %v451 = vld [vmem:[%s270 + $0x1c] sm:$0xf]
        %v452 = vld [vmem:[%s270 + $0x20] sm:$0xf]
        %v453 = vld [vmem:[%s270 + $0x24] sm:$0xf]
        %v454 = vld [vmem:[%s270 + $0x28] sm:$0xf]
        %v455 = vld [vmem:[%s270 + $0x2c] sm:$0xf]
        %v456 = vld [vmem:[%s270 + $0x30] sm:$0xf]
        %v457 = vld [vmem:[%s270 + $0x34] sm:$0xf]
        %v458 = vld [vmem:[%s270 + $0x38] sm:$0xf]
        %v459 = vld [vmem:[%s270 + $0x3c] sm:$0xf]
        %v460 = vld [vmem:[%s270 + $0x40] sm:$0xf]
        %v461 = vld [vmem:[%s270 + $0x44] sm:$0xf]
        %v462 = vld [vmem:[%s270 + $0x48] sm:$0xf]
        %v463 = vld [vmem:[%s270 + $0x4c] sm:$0xf]
        %v464 = vld [vmem:[%s270 + $0x50] sm:$0xf]
        %v465 = vld [vmem:[%s270 + $0x54] sm:$0xf]
        %v466 = vld [vmem:[%s270 + $0x58] sm:$0xf]
        %v467 = vld [vmem:[%s270 + $0x5c] sm:$0xf]
        %v468 = vld [vmem:[%s270 + $0x60] sm:$0xf]
        %v469 = vld [vmem:[%s270 + $0x64] sm:$0xf]
        %v470 = vld [vmem:[%s270 + $0x68] sm:$0xf]
        %v471 = vld [vmem:[%s270 + $0x6c] sm:$0xf]
        %v472 = vld [vmem:[%s270 + $0x70] sm:$0xf]
        %v473 = vld [vmem:[%s270 + $0x74] sm:$0xf]
        %v474 = vld [vmem:[%s270 + $0x78] sm:$0xf]
        %v475 = vld [vmem:[%s270 + $0x7c] sm:$0xf]
        %v508 = vunpack.c.l.b16 %v444
        %v509 = vunpack.c.l.b16 %v445
        %v510 = vunpack.c.l.b16 %v446
        %v511 = vunpack.c.l.b16 %v447
        %v512 = vunpack.c.l.b16 %v448
        %v513 = vunpack.c.l.b16 %v449
        %v514 = vunpack.c.l.b16 %v450
        %v515 = vunpack.c.l.b16 %v451
        %v516 = vunpack.c.l.b16 %v452
        %v517 = vunpack.c.l.b16 %v453
        %v518 = vunpack.c.l.b16 %v454
        %v519 = vunpack.c.l.b16 %v455
        %v520 = vunpack.c.l.b16 %v456
        %v521 = vunpack.c.l.b16 %v457
        %v522 = vunpack.c.l.b16 %v458
        %v523 = vunpack.c.l.b16 %v459
        %v524 = vunpack.c.l.b16 %v460
        %v525 = vunpack.c.l.b16 %v461
        %v526 = vunpack.c.l.b16 %v462
        %v527 = vunpack.c.l.b16 %v463
        %v528 = vunpack.c.l.b16 %v464
        %v529 = vunpack.c.l.b16 %v465
        %v530 = vunpack.c.l.b16 %v466
        %v531 = vunpack.c.l.b16 %v467
        %v532 = vunpack.c.l.b16 %v468
        %v533 = vunpack.c.l.b16 %v469
        %v534 = vunpack.c.l.b16 %v470
        %v535 = vunpack.c.l.b16 %v471
        %v536 = vunpack.c.l.b16 %v472
        %v537 = vunpack.c.l.b16 %v473
        %v538 = vunpack.c.l.b16 %v474
        %v539 = vunpack.c.l.b16 %v475
        %v540 = vpack.c.b16 %v509, %v508
        %v541 = vpack.c.b16 %v511, %v510
        %v542 = vpack.c.b16 %v513, %v512
        %v543 = vpack.c.b16 %v515, %v514
        %v544 = vpack.c.b16 %v517, %v516
        %v545 = vpack.c.b16 %v519, %v518
        %v546 = vpack.c.b16 %v521, %v520
        %v547 = vpack.c.b16 %v523, %v522
        %v548 = vpack.c.b16 %v525, %v524
        %v549 = vpack.c.b16 %v527, %v526
        %v550 = vpack.c.b16 %v529, %v528
        %v551 = vpack.c.b16 %v531, %v530
        %v552 = vpack.c.b16 %v533, %v532
        %v553 = vpack.c.b16 %v535, %v534
        %v554 = vpack.c.b16 %v537, %v536
        %v555 = vpack.c.b16 %v539, %v538
        %556 = vrot.lane.b32.xlu0 %v540, 4
        %v557 = vpop.permute.xlu0 %556
        %558 = vrot.lane.b32.xlu0 %v541, 4
        %v559 = vpop.permute.xlu0 %558
        %560 = vrot.lane.b32.xlu0 %v542, 4
        %v561 = vpop.permute.xlu0 %560
        %562 = vrot.lane.b32.xlu0 %v543, 4
        %v563 = vpop.permute.xlu0 %562
        %564 = vrot.lane.b32.xlu0 %v544, 4
        %v565 = vpop.permute.xlu0 %564
        %566 = vrot.lane.b32.xlu0 %v545, 4
        %v567 = vpop.permute.xlu0 %566
        %568 = vrot.lane.b32.xlu0 %v546, 4
        %v569 = vpop.permute.xlu0 %568
        %570 = vrot.lane.b32.xlu0 %v547, 4
        %v571 = vpop.permute.xlu0 %570
        %572 = vrot.lane.b32.xlu0 %v548, 4
        %v573 = vpop.permute.xlu0 %572
        %574 = vrot.lane.b32.xlu0 %v549, 4
        %v575 = vpop.permute.xlu0 %574
        %576 = vrot.lane.b32.xlu0 %v550, 4
        %v577 = vpop.permute.xlu0 %576
        %578 = vrot.lane.b32.xlu0 %v551, 4
        %v579 = vpop.permute.xlu0 %578
        %580 = vrot.lane.b32.xlu0 %v552, 4
        %v581 = vpop.permute.xlu0 %580
        %582 = vrot.lane.b32.xlu0 %v553, 4
        %v583 = vpop.permute.xlu0 %582
        %584 = vrot.lane.b32.xlu0 %v554, 4
        %v585 = vpop.permute.xlu0 %584
        %586 = vrot.lane.b32.xlu0 %v555, 4
        %v587 = vpop.permute.xlu0 %586
        %vm604 = vcmask 64544
        %605 = vst.msk [vmem:[%s426] sm:$0xff] %vm604, %v557
        %606 = vst.msk [vmem:[%s426 + $0x8] sm:$0xff] %vm604, %v559
        %607 = vst.msk [vmem:[%s426 + $0x10] sm:$0xff] %vm604, %v561
        %608 = vst.msk [vmem:[%s426 + $0x18] sm:$0xff] %vm604, %v563
        %609 = vst.msk [vmem:[%s426 + $0x20] sm:$0xff] %vm604, %v565
        %610 = vst.msk [vmem:[%s426 + $0x28] sm:$0xff] %vm604, %v567
        %611 = vst.msk [vmem:[%s426 + $0x30] sm:$0xff] %vm604, %v569
        %612 = vst.msk [vmem:[%s426 + $0x38] sm:$0xff] %vm604, %v571
        %613 = vst.msk [vmem:[%s426 + $0x40] sm:$0xff] %vm604, %v573
        %614 = vst.msk [vmem:[%s426 + $0x48] sm:$0xff] %vm604, %v575
        %615 = vst.msk [vmem:[%s426 + $0x50] sm:$0xff] %vm604, %v577
        %616 = vst.msk [vmem:[%s426 + $0x58] sm:$0xff] %vm604, %v579
        %617 = vst.msk [vmem:[%s426 + $0x60] sm:$0xff] %vm604, %v581
        %618 = vst.msk [vmem:[%s426 + $0x68] sm:$0xff] %vm604, %v583
        %619 = vst.msk [vmem:[%s426 + $0x70] sm:$0xff] %vm604, %v585
        %620 = vst.msk [vmem:[%s426 + $0x78] sm:$0xff] %vm604, %v587
      $region40: #{_lambda_.2} parent=35 // pred_fallthru
        _
      %s621 = smul.u32 %s22, 16
      %s622 = smul.addr %s621, 8
      %s623 = scalar_lea.vmem [#allocation2], %s622
      %v624 = vld [vmem:[%s623] sm:$0xff]
      %v625 = vld [vmem:[%s623 + $0x8] sm:$0xff]
      %v626 = vld [vmem:[%s623 + $0x10] sm:$0xff]
      %v627 = vld [vmem:[%s623 + $0x18] sm:$0xff]
      %v628 = vld [vmem:[%s623 + $0x20] sm:$0xff]
      %v629 = vld [vmem:[%s623 + $0x28] sm:$0xff]
      %v630 = vld [vmem:[%s623 + $0x30] sm:$0xff]
      %v631 = vld [vmem:[%s623 + $0x38] sm:$0xff]
      %v632 = vld [vmem:[%s623 + $0x40] sm:$0xff]
      %v633 = vld [vmem:[%s623 + $0x48] sm:$0xff]
      %v634 = vld [vmem:[%s623 + $0x50] sm:$0xff]
      %v635 = vld [vmem:[%s623 + $0x58] sm:$0xff]
      %v636 = vld [vmem:[%s623 + $0x60] sm:$0xff]
      %v637 = vld [vmem:[%s623 + $0x68] sm:$0xff]
      %v638 = vld [vmem:[%s623 + $0x70] sm:$0xff]
      %v639 = vld [vmem:[%s623 + $0x78] sm:$0xff]
      %v641 = vshrl.u32 %v624, 16
      %v643 = vrot.slane %v641, 7
      %v644 = vshll.u32 %v624, 16
      %v646 = vor.u32 %v643, %v644
      %v648 = vshrl.u32 %v625, 16
      %v650 = vrot.slane %v648, 7
      %v651 = vshll.u32 %v625, 16
      %v653 = vor.u32 %v650, %v651
      %v655 = vshrl.u32 %v626, 16
      %v657 = vrot.slane %v655, 7
      %v658 = vshll.u32 %v626, 16
      %v660 = vor.u32 %v657, %v658
      %v662 = vshrl.u32 %v627, 16
      %v664 = vrot.slane %v662, 7
      %v665 = vshll.u32 %v627, 16
      %v667 = vor.u32 %v664, %v665
      %v669 = vshrl.u32 %v628, 16
      %v671 = vrot.slane %v669, 7
      %v672 = vshll.u32 %v628, 16
      %v674 = vor.u32 %v671, %v672
      %v676 = vshrl.u32 %v629, 16
      %v678 = vrot.slane %v676, 7
      %v679 = vshll.u32 %v629, 16
      %v681 = vor.u32 %v678, %v679
      %v683 = vshrl.u32 %v630, 16
      %v685 = vrot.slane %v683, 7
      %v686 = vshll.u32 %v630, 16
      %v688 = vor.u32 %v685, %v686
      %v690 = vshrl.u32 %v631, 16
      %v692 = vrot.slane %v690, 7
      %v693 = vshll.u32 %v631, 16
      %v695 = vor.u32 %v692, %v693
      %v697 = vshrl.u32 %v632, 16
      %v699 = vrot.slane %v697, 7
      %v700 = vshll.u32 %v632, 16
      %v702 = vor.u32 %v699, %v700
      %v704 = vshrl.u32 %v633, 16
      %v706 = vrot.slane %v704, 7
      %v707 = vshll.u32 %v633, 16
      %v709 = vor.u32 %v706, %v707
      %v711 = vshrl.u32 %v634, 16
      %v713 = vrot.slane %v711, 7
      %v714 = vshll.u32 %v634, 16
      %v716 = vor.u32 %v713, %v714
      %v718 = vshrl.u32 %v635, 16
      %v720 = vrot.slane %v718, 7
      %v721 = vshll.u32 %v635, 16
      %v723 = vor.u32 %v720, %v721
      %v725 = vshrl.u32 %v636, 16
      %v727 = vrot.slane %v725, 7
      %v728 = vshll.u32 %v636, 16
      %v730 = vor.u32 %v727, %v728
      %v732 = vshrl.u32 %v637, 16
      %v734 = vrot.slane %v732, 7
      %v735 = vshll.u32 %v637, 16
      %v737 = vor.u32 %v734, %v735
      %v739 = vshrl.u32 %v638, 16
      %v741 = vrot.slane %v739, 7
      %v742 = vshll.u32 %v638, 16
      %v744 = vor.u32 %v741, %v742
      %v746 = vshrl.u32 %v639, 16
      %v748 = vrot.slane %v746, 7
      %v749 = vshll.u32 %v639, 16
      %v751 = vor.u32 %v748, %v749
      %vm768 = vcmask 1040384
      %vm769 = vsmask.f32 256
      %vm770 = vmand %vm768, %vm769
      %v771 = vsel %vm770, 0, %v646
      %v772 = vsel %vm770, 0, %v653
      %v773 = vsel %vm770, 0, %v660
      %v774 = vsel %vm770, 0, %v667
      %v775 = vsel %vm770, 0, %v674
      %v776 = vsel %vm770, 0, %v681
      %v777 = vsel %vm770, 0, %v688
      %v778 = vsel %vm770, 0, %v695
      %v779 = vsel %vm770, 0, %v702
      %v780 = vsel %vm770, 0, %v709
      %v781 = vsel %vm770, 0, %v716
      %v782 = vsel %vm770, 0, %v723
      %v783 = vsel %vm770, 0, %v730
      %v784 = vsel %vm770, 0, %v737
      %v785 = vsel %vm770, 0, %v744
      %v786 = vsel %vm770, 0, %v751
      %v787 = vrot.slane %v644, 1
      %v788 = vor.u32 %v641, %v787
      %v789 = vrot.slane %v651, 1
      %v790 = vor.u32 %v648, %v789
      %v791 = vrot.slane %v658, 1
      %v792 = vor.u32 %v655, %v791
      %v793 = vrot.slane %v665, 1
      %v794 = vor.u32 %v662, %v793
      %v795 = vrot.slane %v672, 1
      %v796 = vor.u32 %v669, %v795
      %v797 = vrot.slane %v679, 1
      %v798 = vor.u32 %v676, %v797
      %v799 = vrot.slane %v686, 1
      %v800 = vor.u32 %v683, %v799
      %v801 = vrot.slane %v693, 1
      %v802 = vor.u32 %v690, %v801
      %v803 = vrot.slane %v700, 1
      %v804 = vor.u32 %v697, %v803
      %v805 = vrot.slane %v707, 1
      %v806 = vor.u32 %v704, %v805
      %v807 = vrot.slane %v714, 1
      %v808 = vor.u32 %v711, %v807
      %v809 = vrot.slane %v721, 1
      %v810 = vor.u32 %v718, %v809
      %v811 = vrot.slane %v728, 1
      %v812 = vor.u32 %v725, %v811
      %v813 = vrot.slane %v735, 1
      %v814 = vor.u32 %v732, %v813
      %v815 = vrot.slane %v742, 1
      %v816 = vor.u32 %v739, %v815
      %v817 = vrot.slane %v749, 1
      %v818 = vor.u32 %v746, %v817
      %vm835 = vcmask 1047552
      %vm836 = vsmask.f32 7424
      %vm837 = vmand %vm835, %vm836
      %v838 = vsel %vm837, %v788, 0
      %v839 = vsel %vm837, %v790, 0
      %v840 = vsel %vm837, %v792, 0
      %v841 = vsel %vm837, %v794, 0
      %v842 = vsel %vm837, %v796, 0
      %v843 = vsel %vm837, %v798, 0
      %v844 = vsel %vm837, %v800, 0
      %v845 = vsel %vm837, %v802, 0
      %v846 = vsel %vm837, %v804, 0
      %v847 = vsel %vm837, %v806, 0
      %v848 = vsel %vm837, %v808, 0
      %v849 = vsel %vm837, %v810, 0
      %v850 = vsel %vm837, %v812, 0
      %v851 = vsel %vm837, %v814, 0
      %v852 = vsel %vm837, %v816, 0
      %v853 = vsel %vm837, %v818, 0
      %870 = vrot.lane.b32.xlu0 %v624, 8
      %v871 = vpop.permute.xlu0 %870
      %872 = vrot.lane.b32.xlu0 %v625, 8
      %v873 = vpop.permute.xlu0 %872
      %874 = vrot.lane.b32.xlu0 %v626, 8
      %v875 = vpop.permute.xlu0 %874
      %876 = vrot.lane.b32.xlu0 %v627, 8
      %v877 = vpop.permute.xlu0 %876
      %878 = vrot.lane.b32.xlu0 %v628, 8
      %v879 = vpop.permute.xlu0 %878
      %880 = vrot.lane.b32.xlu0 %v629, 8
      %v881 = vpop.permute.xlu0 %880
      %882 = vrot.lane.b32.xlu0 %v630, 8
      %v883 = vpop.permute.xlu0 %882
      %884 = vrot.lane.b32.xlu0 %v631, 8
      %v885 = vpop.permute.xlu0 %884
      %886 = vrot.lane.b32.xlu0 %v632, 8
      %v887 = vpop.permute.xlu0 %886
      %888 = vrot.lane.b32.xlu0 %v633, 8
      %v889 = vpop.permute.xlu0 %888
      %890 = vrot.lane.b32.xlu0 %v634, 8
      %v891 = vpop.permute.xlu0 %890
      %892 = vrot.lane.b32.xlu0 %v635, 8
      %v893 = vpop.permute.xlu0 %892
      %894 = vrot.lane.b32.xlu0 %v636, 8
      %v895 = vpop.permute.xlu0 %894
      %896 = vrot.lane.b32.xlu0 %v637, 8
      %v897 = vpop.permute.xlu0 %896
      %898 = vrot.lane.b32.xlu0 %v638, 8
      %v899 = vpop.permute.xlu0 %898
      %900 = vrot.lane.b32.xlu0 %v639, 8
      %v901 = vpop.permute.xlu0 %900
      %918 = vrot.lane.b32.xlu0 %v838, 16
      %v919 = vpop.permute.xlu0 %918
      %920 = vrot.lane.b32.xlu0 %v839, 16
      %v921 = vpop.permute.xlu0 %920
      %922 = vrot.lane.b32.xlu0 %v840, 16
      %v923 = vpop.permute.xlu0 %922
      %924 = vrot.lane.b32.xlu0 %v841, 16
      %v925 = vpop.permute.xlu0 %924
      %926 = vrot.lane.b32.xlu0 %v842, 16
      %v927 = vpop.permute.xlu0 %926
      %928 = vrot.lane.b32.xlu0 %v843, 16
      %v929 = vpop.permute.xlu0 %928
      %930 = vrot.lane.b32.xlu0 %v844, 16
      %v931 = vpop.permute.xlu0 %930
      %932 = vrot.lane.b32.xlu0 %v845, 16
      %v933 = vpop.permute.xlu0 %932
      %934 = vrot.lane.b32.xlu0 %v846, 16
      %v935 = vpop.permute.xlu0 %934
      %936 = vrot.lane.b32.xlu0 %v847, 16
      %v937 = vpop.permute.xlu0 %936
      %938 = vrot.lane.b32.xlu0 %v848, 16
      %v939 = vpop.permute.xlu0 %938
      %940 = vrot.lane.b32.xlu0 %v849, 16
      %v941 = vpop.permute.xlu0 %940
      %942 = vrot.lane.b32.xlu0 %v850, 16
      %v943 = vpop.permute.xlu0 %942
      %944 = vrot.lane.b32.xlu0 %v851, 16
      %v945 = vpop.permute.xlu0 %944
      %946 = vrot.lane.b32.xlu0 %v852, 16
      %v947 = vpop.permute.xlu0 %946
      %948 = vrot.lane.b32.xlu0 %v853, 16
      %v949 = vpop.permute.xlu0 %948
      %vm950 = vcmask 64512
      %v953 = vsel %vm950, %v771, %v871
      %v956 = vsel %vm950, %v772, %v873
      %v959 = vsel %vm950, %v773, %v875
      %v962 = vsel %vm950, %v774, %v877
      %v965 = vsel %vm950, %v775, %v879
      %v968 = vsel %vm950, %v776, %v881
      %v971 = vsel %vm950, %v777, %v883
      %v974 = vsel %vm950, %v778, %v885
      %v977 = vsel %vm950, %v779, %v887
      %v980 = vsel %vm950, %v780, %v889
      %v983 = vsel %vm950, %v781, %v891
      %v986 = vsel %vm950, %v782, %v893
      %v989 = vsel %vm950, %v783, %v895
      %v992 = vsel %vm950, %v784, %v897
      %v995 = vsel %vm950, %v785, %v899
      %v998 = vsel %vm950, %v786, %v901
      %vm999 = vcmask 130048
      %v1001 = vsel %vm999, %v953, %v919
      %v1003 = vsel %vm999, %v956, %v921
      %v1005 = vsel %vm999, %v959, %v923
      %v1007 = vsel %vm999, %v962, %v925
      %v1009 = vsel %vm999, %v965, %v927
      %v1011 = vsel %vm999, %v968, %v929
      %v1013 = vsel %vm999, %v971, %v931
      %v1015 = vsel %vm999, %v974, %v933
      %v1017 = vsel %vm999, %v977, %v935
      %v1019 = vsel %vm999, %v980, %v937
      %v1021 = vsel %vm999, %v983, %v939
      %v1023 = vsel %vm999, %v986, %v941
      %v1025 = vsel %vm999, %v989, %v943
      %v1027 = vsel %vm999, %v992, %v945
      %v1029 = vsel %vm999, %v995, %v947
      %v1031 = vsel %vm999, %v998, %v949
      %v1032 = vld [vmem:[%s2] sm:$0xf]
      %v1033 = vld [vmem:[%s2 + $0x4] sm:$0xf]
      %v1034 = vld [vmem:[%s2 + $0x8] sm:$0xf]
      %s1035 = sadd.s32 %s621, 1
      %s1036 = smul.addr %s1035, 8
      %s1037 = scalar_lea.vmem [#allocation2], %s1036
      %v1038 = vld [vmem:[%s1037] sm:$0xff]
      %v1039 = vld [vmem:[%s1037 + $0x8] sm:$0xff]
      %v1040 = vld [vmem:[%s1037 + $0x10] sm:$0xff]
      %v1041 = vld [vmem:[%s1037 + $0x18] sm:$0xff]
      %v1042 = vld [vmem:[%s1037 + $0x20] sm:$0xff]
      %v1043 = vld [vmem:[%s1037 + $0x28] sm:$0xff]
      %v1044 = vld [vmem:[%s1037 + $0x30] sm:$0xff]
      %v1045 = vld [vmem:[%s1037 + $0x38] sm:$0xff]
      %v1046 = vld [vmem:[%s1037 + $0x40] sm:$0xff]
      %v1047 = vld [vmem:[%s1037 + $0x48] sm:$0xff]
      %v1048 = vld [vmem:[%s1037 + $0x50] sm:$0xff]
      %v1049 = vld [vmem:[%s1037 + $0x58] sm:$0xff]
      %v1050 = vld [vmem:[%s1037 + $0x60] sm:$0xff]
      %v1051 = vld [vmem:[%s1037 + $0x68] sm:$0xff]
      %v1052 = vld [vmem:[%s1037 + $0x70] sm:$0xff]
      %v1053 = vld [vmem:[%s1037 + $0x78] sm:$0xff]
      %v1055 = vshrl.u32 %v1038, 16
      %v1057 = vrot.slane %v1055, 7
      %v1058 = vshll.u32 %v1038, 16
      %v1060 = vor.u32 %v1057, %v1058
      %v1062 = vshrl.u32 %v1039, 16
      %v1064 = vrot.slane %v1062, 7
      %v1065 = vshll.u32 %v1039, 16
      %v1067 = vor.u32 %v1064, %v1065
      %v1069 = vshrl.u32 %v1040, 16
      %v1071 = vrot.slane %v1069, 7
      %v1072 = vshll.u32 %v1040, 16
      %v1074 = vor.u32 %v1071, %v1072
      %v1076 = vshrl.u32 %v1041, 16
      %v1078 = vrot.slane %v1076, 7
      %v1079 = vshll.u32 %v1041, 16
      %v1081 = vor.u32 %v1078, %v1079
      %v1083 = vshrl.u32 %v1042, 16
      %v1085 = vrot.slane %v1083, 7
      %v1086 = vshll.u32 %v1042, 16
      %v1088 = vor.u32 %v1085, %v1086
      %v1090 = vshrl.u32 %v1043, 16
      %v1092 = vrot.slane %v1090, 7
      %v1093 = vshll.u32 %v1043, 16
      %v1095 = vor.u32 %v1092, %v1093
      %v1097 = vshrl.u32 %v1044, 16
      %v1099 = vrot.slane %v1097, 7
      %v1100 = vshll.u32 %v1044, 16
      %v1102 = vor.u32 %v1099, %v1100
      %v1104 = vshrl.u32 %v1045, 16
      %v1106 = vrot.slane %v1104, 7
      %v1107 = vshll.u32 %v1045, 16
      %v1109 = vor.u32 %v1106, %v1107
      %v1111 = vshrl.u32 %v1046, 16
      %v1113 = vrot.slane %v1111, 7
      %v1114 = vshll.u32 %v1046, 16
      %v1116 = vor.u32 %v1113, %v1114
      %v1118 = vshrl.u32 %v1047, 16
      %v1120 = vrot.slane %v1118, 7
      %v1121 = vshll.u32 %v1047, 16
      %v1123 = vor.u32 %v1120, %v1121
      %v1125 = vshrl.u32 %v1048, 16
      %v1127 = vrot.slane %v1125, 7
      %v1128 = vshll.u32 %v1048, 16
      %v1130 = vor.u32 %v1127, %v1128
      %v1132 = vshrl.u32 %v1049, 16
      %v1134 = vrot.slane %v1132, 7
      %v1135 = vshll.u32 %v1049, 16
      %v1137 = vor.u32 %v1134, %v1135
      %v1139 = vshrl.u32 %v1050, 16
      %v1141 = vrot.slane %v1139, 7
      %v1142 = vshll.u32 %v1050, 16
      %v1144 = vor.u32 %v1141, %v1142
      %v1146 = vshrl.u32 %v1051, 16
      %v1148 = vrot.slane %v1146, 7
      %v1149 = vshll.u32 %v1051, 16
      %v1151 = vor.u32 %v1148, %v1149
      %v1153 = vshrl.u32 %v1052, 16
      %v1155 = vrot.slane %v1153, 7
      %v1156 = vshll.u32 %v1052, 16
      %v1158 = vor.u32 %v1155, %v1156
      %v1160 = vshrl.u32 %v1053, 16
      %v1162 = vrot.slane %v1160, 7
      %v1163 = vshll.u32 %v1053, 16
      %v1165 = vor.u32 %v1162, %v1163
      %v1182 = vsel %vm770, 0, %v1060
      %v1183 = vsel %vm770, 0, %v1067
      %v1184 = vsel %vm770, 0, %v1074
      %v1185 = vsel %vm770, 0, %v1081
      %v1186 = vsel %vm770, 0, %v1088
      %v1187 = vsel %vm770, 0, %v1095
      %v1188 = vsel %vm770, 0, %v1102
      %v1189 = vsel %vm770, 0, %v1109
      %v1190 = vsel %vm770, 0, %v1116
      %v1191 = vsel %vm770, 0, %v1123
      %v1192 = vsel %vm770, 0, %v1130
      %v1193 = vsel %vm770, 0, %v1137
      %v1194 = vsel %vm770, 0, %v1144
      %v1195 = vsel %vm770, 0, %v1151
      %v1196 = vsel %vm770, 0, %v1158
      %v1197 = vsel %vm770, 0, %v1165
      %v1198 = vrot.slane %v1058, 1
      %v1199 = vor.u32 %v1055, %v1198
      %v1200 = vrot.slane %v1065, 1
      %v1201 = vor.u32 %v1062, %v1200
      %v1202 = vrot.slane %v1072, 1
      %v1203 = vor.u32 %v1069, %v1202
      %v1204 = vrot.slane %v1079, 1
      %v1205 = vor.u32 %v1076, %v1204
      %v1206 = vrot.slane %v1086, 1
      %v1207 = vor.u32 %v1083, %v1206
      %v1208 = vrot.slane %v1093, 1
      %v1209 = vor.u32 %v1090, %v1208
      %v1210 = vrot.slane %v1100, 1
      %v1211 = vor.u32 %v1097, %v1210
      %v1212 = vrot.slane %v1107, 1
      %v1213 = vor.u32 %v1104, %v1212
      %v1214 = vrot.slane %v1114, 1
      %v1215 = vor.u32 %v1111, %v1214
      %v1216 = vrot.slane %v1121, 1
      %v1217 = vor.u32 %v1118, %v1216
      %v1218 = vrot.slane %v1128, 1
      %v1219 = vor.u32 %v1125, %v1218
      %v1220 = vrot.slane %v1135, 1
      %v1221 = vor.u32 %v1132, %v1220
      %v1222 = vrot.slane %v1142, 1
      %v1223 = vor.u32 %v1139, %v1222
      %v1224 = vrot.slane %v1149, 1
      %v1225 = vor.u32 %v1146, %v1224
      %v1226 = vrot.slane %v1156, 1
      %v1227 = vor.u32 %v1153, %v1226
      %v1228 = vrot.slane %v1163, 1
      %v1229 = vor.u32 %v1160, %v1228
      %v1246 = vsel %vm837, %v1199, 0
      %v1247 = vsel %vm837, %v1201, 0
      %v1248 = vsel %vm837, %v1203, 0
      %v1249 = vsel %vm837, %v1205, 0
      %v1250 = vsel %vm837, %v1207, 0
      %v1251 = vsel %vm837, %v1209, 0
      %v1252 = vsel %vm837, %v1211, 0
      %v1253 = vsel %vm837, %v1213, 0
      %v1254 = vsel %vm837, %v1215, 0
      %v1255 = vsel %vm837, %v1217, 0
      %v1256 = vsel %vm837, %v1219, 0
      %v1257 = vsel %vm837, %v1221, 0
      %v1258 = vsel %vm837, %v1223, 0
      %v1259 = vsel %vm837, %v1225, 0
      %v1260 = vsel %vm837, %v1227, 0
      %v1261 = vsel %vm837, %v1229, 0
      %1278 = vrot.lane.b32.xlu0 %v1038, 8
      %v1279 = vpop.permute.xlu0 %1278
      %1280 = vrot.lane.b32.xlu0 %v1039, 8
      %v1281 = vpop.permute.xlu0 %1280
      %1282 = vrot.lane.b32.xlu0 %v1040, 8
      %v1283 = vpop.permute.xlu0 %1282
      %1284 = vrot.lane.b32.xlu0 %v1041, 8
      %v1285 = vpop.permute.xlu0 %1284
      %1286 = vrot.lane.b32.xlu0 %v1042, 8
      %v1287 = vpop.permute.xlu0 %1286
      %1288 = vrot.lane.b32.xlu0 %v1043, 8
      %v1289 = vpop.permute.xlu0 %1288
      %1290 = vrot.lane.b32.xlu0 %v1044, 8
      %v1291 = vpop.permute.xlu0 %1290
      %1292 = vrot.lane.b32.xlu0 %v1045, 8
      %v1293 = vpop.permute.xlu0 %1292
      %1294 = vrot.lane.b32.xlu0 %v1046, 8
      %v1295 = vpop.permute.xlu0 %1294
      %1296 = vrot.lane.b32.xlu0 %v1047, 8
      %v1297 = vpop.permute.xlu0 %1296
      %1298 = vrot.lane.b32.xlu0 %v1048, 8
      %v1299 = vpop.permute.xlu0 %1298
      %1300 = vrot.lane.b32.xlu0 %v1049, 8
      %v1301 = vpop.permute.xlu0 %1300
      %1302 = vrot.lane.b32.xlu0 %v1050, 8
      %v1303 = vpop.permute.xlu0 %1302
      %1304 = vrot.lane.b32.xlu0 %v1051, 8
      %v1305 = vpop.permute.xlu0 %1304
      %1306 = vrot.lane.b32.xlu0 %v1052, 8
      %v1307 = vpop.permute.xlu0 %1306
      %1308 = vrot.lane.b32.xlu0 %v1053, 8
      %v1309 = vpop.permute.xlu0 %1308
      %1326 = vrot.lane.b32.xlu0 %v1246, 16
      %v1327 = vpop.permute.xlu0 %1326
      %1328 = vrot.lane.b32.xlu0 %v1247, 16
      %v1329 = vpop.permute.xlu0 %1328
      %1330 = vrot.lane.b32.xlu0 %v1248, 16
      %v1331 = vpop.permute.xlu0 %1330
      %1332 = vrot.lane.b32.xlu0 %v1249, 16
      %v1333 = vpop.permute.xlu0 %1332
      %1334 = vrot.lane.b32.xlu0 %v1250, 16
      %v1335 = vpop.permute.xlu0 %1334
      %1336 = vrot.lane.b32.xlu0 %v1251, 16
      %v1337 = vpop.permute.xlu0 %1336
      %1338 = vrot.lane.b32.xlu0 %v1252, 16
      %v1339 = vpop.permute.xlu0 %1338
      %1340 = vrot.lane.b32.xlu0 %v1253, 16
      %v1341 = vpop.permute.xlu0 %1340
      %1342 = vrot.lane.b32.xlu0 %v1254, 16
      %v1343 = vpop.permute.xlu0 %1342
      %1344 = vrot.lane.b32.xlu0 %v1255, 16
      %v1345 = vpop.permute.xlu0 %1344
      %1346 = vrot.lane.b32.xlu0 %v1256, 16
      %v1347 = vpop.permute.xlu0 %1346
      %1348 = vrot.lane.b32.xlu0 %v1257, 16
      %v1349 = vpop.permute.xlu0 %1348
      %1350 = vrot.lane.b32.xlu0 %v1258, 16
      %v1351 = vpop.permute.xlu0 %1350
      %1352 = vrot.lane.b32.xlu0 %v1259, 16
      %v1353 = vpop.permute.xlu0 %1352
      %1354 = vrot.lane.b32.xlu0 %v1260, 16
      %v1355 = vpop.permute.xlu0 %1354
      %1356 = vrot.lane.b32.xlu0 %v1261, 16
      %v1357 = vpop.permute.xlu0 %1356
      %v1360 = vsel %vm950, %v1182, %v1279
      %v1363 = vsel %vm950, %v1183, %v1281
      %v1366 = vsel %vm950, %v1184, %v1283
      %v1369 = vsel %vm950, %v1185, %v1285
      %v1372 = vsel %vm950, %v1186, %v1287
      %v1375 = vsel %vm950, %v1187, %v1289
      %v1378 = vsel %vm950, %v1188, %v1291
      %v1381 = vsel %vm950, %v1189, %v1293
      %v1384 = vsel %vm950, %v1190, %v1295
      %v1387 = vsel %vm950, %v1191, %v1297
      %v1390 = vsel %vm950, %v1192, %v1299
      %v1393 = vsel %vm950, %v1193, %v1301
      %v1396 = vsel %vm950, %v1194, %v1303
      %v1399 = vsel %vm950, %v1195, %v1305
      %v1402 = vsel %vm950, %v1196, %v1307
      %v1405 = vsel %vm950, %v1197, %v1309
      %v1407 = vsel %vm999, %v1360, %v1327
      %v1409 = vsel %vm999, %v1363, %v1329
      %v1411 = vsel %vm999, %v1366, %v1331
      %v1413 = vsel %vm999, %v1369, %v1333
      %v1415 = vsel %vm999, %v1372, %v1335
      %v1417 = vsel %vm999, %v1375, %v1337
      %v1419 = vsel %vm999, %v1378, %v1339
      %v1421 = vsel %vm999, %v1381, %v1341
      %v1423 = vsel %vm999, %v1384, %v1343
      %v1425 = vsel %vm999, %v1387, %v1345
      %v1427 = vsel %vm999, %v1390, %v1347
      %v1429 = vsel %vm999, %v1393, %v1349
      %v1431 = vsel %vm999, %v1396, %v1351
      %v1433 = vsel %vm999, %v1399, %v1353
      %v1435 = vsel %vm999, %v1402, %v1355
      %v1437 = vsel %vm999, %v1405, %v1357
      %s1438 = scalar_lea.vmem %s2, 12
      %v1439 = vld [vmem:[%s1438] sm:$0xf]
      %v1440 = vld [vmem:[%s1438 + $0x4] sm:$0xf]
      %v1441 = vld [vmem:[%s1438 + $0x8] sm:$0xf]
      %v1445 = vunpack.c.l.b16 %v1439
      %v1446 = vunpack.c.l.b16 %v1440
      %v1447 = vunpack.c.l.b16 %v1441
      %v1448 = vpack.c.b16 %v1446, %v1445
      %v1449 = vpack.c.b16 %v1447, %v1447
      %vm1451 = vcmask 195584
      %v1452 = vsel %vm1451, %v1407, 0
      %v1454 = vsel %vm1451, %v1409, 0
      %v1456 = vsel %vm1451, %v1411, 0
      %v1458 = vsel %vm1451, %v1413, 0
      %v1460 = vsel %vm1451, %v1415, 0
      %v1462 = vsel %vm1451, %v1417, 0
      %v1464 = vsel %vm1451, %v1419, 0
      %v1466 = vsel %vm1451, %v1421, 0
      %v1468 = vsel %vm1451, %v1423, 0
      %v1470 = vsel %vm1451, %v1425, 0
      %v1472 = vsel %vm1451, %v1427, 0
      %v1474 = vsel %vm1451, %v1429, 0
      %v1476 = vsel %vm1451, %v1431, 0
      %v1478 = vsel %vm1451, %v1433, 0
      %v1480 = vsel %vm1451, %v1435, 0
      %v1482 = vsel %vm1451, %v1437, 0
      %vm1484 = vcmask 1043456
      %v1486 = vsel %vm1484, %v1449, 0
      %1488 = vmatprep.subr.bf16.mxu0 0
      %1489 = vmatpush1.bf16.msra.mxu0 %v1448
      %1490 = vmatprep.subr.bf16.mxu0 0
      %1491 = vmatpush1.bf16.msra.mxu0 %v1486
      %1492 = vmatprep.subr.bf16.mxu0 0
      %1493 = vmatpush1.bf16.msra.mxu0 0
      %1494 = vmatprep.subr.bf16.mxu0 0
      %1495 = vmatpush1.bf16.msra.mxu0 0
      %1496 = vmatprep.subr.bf16.mxu0 0
      %1497 = vmatpush1.bf16.msra.mxu0 0
      %1498 = vmatprep.subr.bf16.mxu0 0
      %1499 = vmatpush1.bf16.msra.mxu0 0
      %1500 = vmatprep.subr.bf16.mxu0 0
      %1501 = vmatpush1.bf16.msra.mxu0 0
      %1502 = vmatprep.subr.bf16.mxu0 0
      %1503 = vmatpush1.bf16.msra.mxu0 0
      %1504 = vmatprep.subr.bf16.mxu0 0
      %1505 = vmatpush1.bf16.msra.mxu0 0
      %1506 = vmatprep.subr.bf16.mxu0 0
      %1507 = vmatpush1.bf16.msra.mxu0 0
      %1508 = vmatprep.subr.bf16.mxu0 0
      %1509 = vmatpush1.bf16.msra.mxu0 0
      %1510 = vmatprep.subr.bf16.mxu0 0
      %1511 = vmatpush1.bf16.msra.mxu0 0
      %1512 = vmatprep.subr.bf16.mxu0 0
      %1513 = vmatpush1.bf16.msra.mxu0 0
      %1514 = vmatprep.subr.bf16.mxu0 0
      %1515 = vmatpush1.bf16.msra.mxu0 0
      %1516 = vmatprep.subr.bf16.mxu0 0
      %1517 = vmatpush1.bf16.msra.mxu0 0
      %1518 = vmatprep.subr.bf16.mxu0 0
      %1519 = vmatpush1.bf16.msra.mxu0 0
      %1520 = vmatprep.mubr.bf16.mxu0 0
      %1521 = vmatmul.mubr.bf16.gmra.mrb[0].mxu0 %v1452
      %v1522 = vpop.f32.mrb[0].mxu0
      %v1523 = vadd.f32 0.0, %v1522
      %v1524 = vpop.f32.mrb[0].mxu0
      %v1525 = vpop.f32.mrb[0].mxu0
      %v1526 = vadd.f32 0.0, %v1525
      %v1527 = vpop.f32.mrb[0].mxu0
      %1528 = vmatprep.mubr.bf16.mxu0 0
      %1529 = vmatmul.mubr.bf16.gmra.mrb[0].mxu0 %v1454
      %v1530 = vpop.f32.mrb[0].mxu0
      %v1531 = vadd.f32 0.0, %v1530
      %v1532 = vpop.f32.mrb[0].mxu0
      %v1533 = vpop.f32.mrb[0].mxu0
      %v1534 = vadd.f32 0.0, %v1533
      %v1535 = vpop.f32.mrb[0].mxu0
      %1536 = vmatprep.mubr.bf16.mxu0 0
      %1537 = vmatmul.mubr.bf16.gmra.mrb[0].mxu0 %v1456
      %v1538 = vpop.f32.mrb[0].mxu0
      %v1539 = vadd.f32 0.0, %v1538
      %v1540 = vpop.f32.mrb[0].mxu0
      %v1541 = vpop.f32.mrb[0].mxu0
      %v1542 = vadd.f32 0.0, %v1541
      %v1543 = vpop.f32.mrb[0].mxu0
      %1544 = vmatprep.mubr.bf16.mxu0 0
      %1545 = vmatmul.mubr.bf16.gmra.mrb[0].mxu0 %v1458
      %v1546 = vpop.f32.mrb[0].mxu0
      %v1547 = vadd.f32 0.0, %v1546
      %v1548 = vpop.f32.mrb[0].mxu0
      %v1549 = vpop.f32.mrb[0].mxu0
      %v1550 = vadd.f32 0.0, %v1549
      %v1551 = vpop.f32.mrb[0].mxu0
      %1552 = vmatprep.mubr.bf16.mxu0 0
      %1553 = vmatmul.mubr.bf16.gmra.mrb[0].mxu0 %v1460
      %v1554 = vpop.f32.mrb[0].mxu0
      %v1555 = vadd.f32 0.0, %v1554
      %v1556 = vpop.f32.mrb[0].mxu0
      %v1557 = vpop.f32.mrb[0].mxu0
      %v1558 = vadd.f32 0.0, %v1557
      %v1559 = vpop.f32.mrb[0].mxu0
      %1560 = vmatprep.mubr.bf16.mxu0 0
      %1561 = vmatmul.mubr.bf16.gmra.mrb[0].mxu0 %v1462
      %v1562 = vpop.f32.mrb[0].mxu0
      %v1563 = vadd.f32 0.0, %v1562
      %v1564 = vpop.f32.mrb[0].mxu0
      %v1565 = vpop.f32.mrb[0].mxu0
      %v1566 = vadd.f32 0.0, %v1565
      %v1567 = vpop.f32.mrb[0].mxu0
      %1568 = vmatprep.mubr.bf16.mxu0 0
      %1569 = vmatmul.mubr.bf16.gmra.mrb[0].mxu0 %v1464
      %v1570 = vpop.f32.mrb[0].mxu0
      %v1571 = vadd.f32 0.0, %v1570
      %v1572 = vpop.f32.mrb[0].mxu0
      %v1573 = vpop.f32.mrb[0].mxu0
      %v1574 = vadd.f32 0.0, %v1573
      %v1575 = vpop.f32.mrb[0].mxu0
      %1576 = vmatprep.mubr.bf16.mxu0 0
      %1577 = vmatmul.mubr.bf16.gmra.mrb[0].mxu0 %v1466
      %v1578 = vpop.f32.mrb[0].mxu0
      %v1579 = vadd.f32 0.0, %v1578
      %v1580 = vpop.f32.mrb[0].mxu0
      %v1581 = vpop.f32.mrb[0].mxu0
      %v1582 = vadd.f32 0.0, %v1581
      %v1583 = vpop.f32.mrb[0].mxu0
      %1584 = vmatprep.mubr.bf16.mxu0 0
      %1585 = vmatmul.mubr.bf16.gmra.mrb[0].mxu0 %v1468
      %v1586 = vpop.f32.mrb[0].mxu0
      %v1587 = vadd.f32 0.0, %v1586
      %v1588 = vpop.f32.mrb[0].mxu0
      %v1589 = vpop.f32.mrb[0].mxu0
      %v1590 = vadd.f32 0.0, %v1589
      %v1591 = vpop.f32.mrb[0].mxu0
      %1592 = vmatprep.mubr.bf16.mxu0 0
      %1593 = vmatmul.mubr.bf16.gmra.mrb[0].mxu0 %v1470
      %v1594 = vpop.f32.mrb[0].mxu0
      %v1595 = vadd.f32 0.0, %v1594
      %v1596 = vpop.f32.mrb[0].mxu0
      %v1597 = vpop.f32.mrb[0].mxu0
      %v1598 = vadd.f32 0.0, %v1597
      %v1599 = vpop.f32.mrb[0].mxu0
      %1600 = vmatprep.mubr.bf16.mxu0 0
      %1601 = vmatmul.mubr.bf16.gmra.mrb[0].mxu0 %v1472
      %v1602 = vpop.f32.mrb[0].mxu0
      %v1603 = vadd.f32 0.0, %v1602
      %v1604 = vpop.f32.mrb[0].mxu0
      %v1605 = vpop.f32.mrb[0].mxu0
      %v1606 = vadd.f32 0.0, %v1605
      %v1607 = vpop.f32.mrb[0].mxu0
      %1608 = vmatprep.mubr.bf16.mxu0 0
      %1609 = vmatmul.mubr.bf16.gmra.mrb[0].mxu0 %v1474
      %v1610 = vpop.f32.mrb[0].mxu0
      %v1611 = vadd.f32 0.0, %v1610
      %v1612 = vpop.f32.mrb[0].mxu0
      %v1613 = vpop.f32.mrb[0].mxu0
      %v1614 = vadd.f32 0.0, %v1613
      %v1615 = vpop.f32.mrb[0].mxu0
      %1616 = vmatprep.mubr.bf16.mxu0 0
      %1617 = vmatmul.mubr.bf16.gmra.mrb[0].mxu0 %v1476
      %v1618 = vpop.f32.mrb[0].mxu0
      %v1619 = vadd.f32 0.0, %v1618
      %v1620 = vpop.f32.mrb[0].mxu0
      %v1621 = vpop.f32.mrb[0].mxu0
      %v1622 = vadd.f32 0.0, %v1621
      %v1623 = vpop.f32.mrb[0].mxu0
      %1624 = vmatprep.mubr.bf16.mxu0 0
      %1625 = vmatmul.mubr.bf16.gmra.mrb[0].mxu0 %v1478
      %v1626 = vpop.f32.mrb[0].mxu0
      %v1627 = vadd.f32 0.0, %v1626
      %v1628 = vpop.f32.mrb[0].mxu0
      %v1629 = vpop.f32.mrb[0].mxu0
      %v1630 = vadd.f32 0.0, %v1629
      %v1631 = vpop.f32.mrb[0].mxu0
      %1632 = vmatprep.mubr.bf16.mxu0 0
      %1633 = vmatmul.mubr.bf16.gmra.mrb[0].mxu0 %v1480
      %v1634 = vpop.f32.mrb[0].mxu0
      %v1635 = vadd.f32 0.0, %v1634
      %v1636 = vpop.f32.mrb[0].mxu0
      %v1637 = vpop.f32.mrb[0].mxu0
      %v1638 = vadd.f32 0.0, %v1637
      %v1639 = vpop.f32.mrb[0].mxu0
      %1640 = vmatprep.mubr.bf16.mxu0 0
      %1641 = vmatmul.mubr.bf16.gmra.mrb[0].mxu0 %v1482
      %v1642 = vpop.f32.mrb[0].mxu0
      %v1643 = vadd.f32 0.0, %v1642
      %v1644 = vpop.f32.mrb[0].mxu0
      %v1645 = vpop.f32.mrb[0].mxu0
      %v1646 = vadd.f32 0.0, %v1645
      %v1647 = vpop.f32.mrb[0].mxu0
      %1648 = vdwg.mxu0
      %v1652 = vunpack.c.l.b16 %v1032
      %v1653 = vunpack.c.l.b16 %v1033
      %v1654 = vunpack.c.l.b16 %v1034
      %v1655 = vpack.c.b16 %v1653, %v1652
      %v1656 = vpack.c.b16 %v1654, %v1654
      %v1658 = vsel %vm1451, %v1001, 0
      %v1660 = vsel %vm1451, %v1003, 0
      %v1662 = vsel %vm1451, %v1005, 0
      %v1664 = vsel %vm1451, %v1007, 0
      %v1666 = vsel %vm1451, %v1009, 0
      %v1668 = vsel %vm1451, %v1011, 0
      %v1670 = vsel %vm1451, %v1013, 0
      %v1672 = vsel %vm1451, %v1015, 0
      %v1674 = vsel %vm1451, %v1017, 0
      %v1676 = vsel %vm1451, %v1019, 0
      %v1678 = vsel %vm1451, %v1021, 0
      %v1680 = vsel %vm1451, %v1023, 0
      %v1682 = vsel %vm1451, %v1025, 0
      %v1684 = vsel %vm1451, %v1027, 0
      %v1686 = vsel %vm1451, %v1029, 0
      %v1688 = vsel %vm1451, %v1031, 0
      %v1691 = vsel %vm1484, %v1656, 0
      %1693 = vmatprep.subr.bf16.mxu0 0
      %1694 = vmatpush1.bf16.msra.mxu0 %v1655
      %1695 = vmatprep.subr.bf16.mxu0 0
      %1696 = vmatpush1.bf16.msra.mxu0 %v1691
      %1697 = vmatprep.subr.bf16.mxu0 0
      %1698 = vmatpush1.bf16.msra.mxu0 0
      %1699 = vmatprep.subr.bf16.mxu0 0
      %1700 = vmatpush1.bf16.msra.mxu0 0
      %1701 = vmatprep.subr.bf16.mxu0 0
      %1702 = vmatpush1.bf16.msra.mxu0 0
      %1703 = vmatprep.subr.bf16.mxu0 0
      %1704 = vmatpush1.bf16.msra.mxu0 0
      %1705 = vmatprep.subr.bf16.mxu0 0
      %1706 = vmatpush1.bf16.msra.mxu0 0
      %1707 = vmatprep.subr.bf16.mxu0 0
      %1708 = vmatpush1.bf16.msra.mxu0 0
      %1709 = vmatprep.subr.bf16.mxu0 0
      %1710 = vmatpush1.bf16.msra.mxu0 0
      %1711 = vmatprep.subr.bf16.mxu0 0
      %1712 = vmatpush1.bf16.msra.mxu0 0
      %1713 = vmatprep.subr.bf16.mxu0 0
      %1714 = vmatpush1.bf16.msra.mxu0 0
      %1715 = vmatprep.subr.bf16.mxu0 0
      %1716 = vmatpush1.bf16.msra.mxu0 0
      %1717 = vmatprep.subr.bf16.mxu0 0
      %1718 = vmatpush1.bf16.msra.mxu0 0
      %1719 = vmatprep.subr.bf16.mxu0 0
      %1720 = vmatpush1.bf16.msra.mxu0 0
      %1721 = vmatprep.subr.bf16.mxu0 0
      %1722 = vmatpush1.bf16.msra.mxu0 0
      %1723 = vmatprep.subr.bf16.mxu0 0
      %1724 = vmatpush1.bf16.msra.mxu0 0
      %1725 = vmatprep.mubr.bf16.mxu0 0
      %1726 = vmatmul.mubr.bf16.gmra.mrb[0].mxu0 %v1658
      %v1727 = vpop.f32.mrb[0].mxu0
      %v1728 = vadd.f32 %v1523, %v1727
      %v1729 = vpop.f32.mrb[0].mxu0
      %v1730 = vpop.f32.mrb[0].mxu0
      %v1731 = vadd.f32 %v1526, %v1730
      %v1732 = vpop.f32.mrb[0].mxu0
      %1733 = vmatprep.mubr.bf16.mxu0 0
      %1734 = vmatmul.mubr.bf16.gmra.mrb[0].mxu0 %v1660
      %v1735 = vpop.f32.mrb[0].mxu0
      %v1736 = vadd.f32 %v1531, %v1735
      %v1737 = vpop.f32.mrb[0].mxu0
      %v1738 = vpop.f32.mrb[0].mxu0
      %v1739 = vadd.f32 %v1534, %v1738
      %v1740 = vpop.f32.mrb[0].mxu0
      %1741 = vmatprep.mubr.bf16.mxu0 0
      %1742 = vmatmul.mubr.bf16.gmra.mrb[0].mxu0 %v1662
      %v1743 = vpop.f32.mrb[0].mxu0
      %v1744 = vadd.f32 %v1539, %v1743
      %v1745 = vpop.f32.mrb[0].mxu0
      %v1746 = vpop.f32.mrb[0].mxu0
      %v1747 = vadd.f32 %v1542, %v1746
      %v1748 = vpop.f32.mrb[0].mxu0
      %1749 = vmatprep.mubr.bf16.mxu0 0
      %1750 = vmatmul.mubr.bf16.gmra.mrb[0].mxu0 %v1664
      %v1751 = vpop.f32.mrb[0].mxu0
      %v1752 = vadd.f32 %v1547, %v1751
      %v1753 = vpop.f32.mrb[0].mxu0
      %v1754 = vpop.f32.mrb[0].mxu0
      %v1755 = vadd.f32 %v1550, %v1754
      %v1756 = vpop.f32.mrb[0].mxu0
      %1757 = vmatprep.mubr.bf16.mxu0 0
      %1758 = vmatmul.mubr.bf16.gmra.mrb[0].mxu0 %v1666
      %v1759 = vpop.f32.mrb[0].mxu0
      %v1760 = vadd.f32 %v1555, %v1759
      %v1761 = vpop.f32.mrb[0].mxu0
      %v1762 = vpop.f32.mrb[0].mxu0
      %v1763 = vadd.f32 %v1558, %v1762
      %v1764 = vpop.f32.mrb[0].mxu0
      %1765 = vmatprep.mubr.bf16.mxu0 0
      %1766 = vmatmul.mubr.bf16.gmra.mrb[0].mxu0 %v1668
      %v1767 = vpop.f32.mrb[0].mxu0
      %v1768 = vadd.f32 %v1563, %v1767
      %v1769 = vpop.f32.mrb[0].mxu0
      %v1770 = vpop.f32.mrb[0].mxu0
      %v1771 = vadd.f32 %v1566, %v1770
      %v1772 = vpop.f32.mrb[0].mxu0
      %1773 = vmatprep.mubr.bf16.mxu0 0
      %1774 = vmatmul.mubr.bf16.gmra.mrb[0].mxu0 %v1670
      %v1775 = vpop.f32.mrb[0].mxu0
      %v1776 = vadd.f32 %v1571, %v1775
      %v1777 = vpop.f32.mrb[0].mxu0
      %v1778 = vpop.f32.mrb[0].mxu0
      %v1779 = vadd.f32 %v1574, %v1778
      %v1780 = vpop.f32.mrb[0].mxu0
      %1781 = vmatprep.mubr.bf16.mxu0 0
      %1782 = vmatmul.mubr.bf16.gmra.mrb[0].mxu0 %v1672
      %v1783 = vpop.f32.mrb[0].mxu0
      %v1784 = vadd.f32 %v1579, %v1783
      %v1785 = vpop.f32.mrb[0].mxu0
      %v1786 = vpop.f32.mrb[0].mxu0
      %v1787 = vadd.f32 %v1582, %v1786
      %v1788 = vpop.f32.mrb[0].mxu0
      %1789 = vmatprep.mubr.bf16.mxu0 0
      %1790 = vmatmul.mubr.bf16.gmra.mrb[0].mxu0 %v1674
      %v1791 = vpop.f32.mrb[0].mxu0
      %v1792 = vadd.f32 %v1587, %v1791
      %v1793 = vpop.f32.mrb[0].mxu0
      %v1794 = vpop.f32.mrb[0].mxu0
      %v1795 = vadd.f32 %v1590, %v1794
      %v1796 = vpop.f32.mrb[0].mxu0
      %1797 = vmatprep.mubr.bf16.mxu0 0
      %1798 = vmatmul.mubr.bf16.gmra.mrb[0].mxu0 %v1676
      %v1799 = vpop.f32.mrb[0].mxu0
      %v1800 = vadd.f32 %v1595, %v1799
      %v1801 = vpop.f32.mrb[0].mxu0
      %v1802 = vpop.f32.mrb[0].mxu0
      %v1803 = vadd.f32 %v1598, %v1802
      %v1804 = vpop.f32.mrb[0].mxu0
      %1805 = vmatprep.mubr.bf16.mxu0 0
      %1806 = vmatmul.mubr.bf16.gmra.mrb[0].mxu0 %v1678
      %v1807 = vpop.f32.mrb[0].mxu0
      %v1808 = vadd.f32 %v1603, %v1807
      %v1809 = vpop.f32.mrb[0].mxu0
      %v1810 = vpop.f32.mrb[0].mxu0
      %v1811 = vadd.f32 %v1606, %v1810
      %v1812 = vpop.f32.mrb[0].mxu0
      %1813 = vmatprep.mubr.bf16.mxu0 0
      %1814 = vmatmul.mubr.bf16.gmra.mrb[0].mxu0 %v1680
      %v1815 = vpop.f32.mrb[0].mxu0
      %v1816 = vadd.f32 %v1611, %v1815
      %v1817 = vpop.f32.mrb[0].mxu0
      %v1818 = vpop.f32.mrb[0].mxu0
      %v1819 = vadd.f32 %v1614, %v1818
      %v1820 = vpop.f32.mrb[0].mxu0
      %1821 = vmatprep.mubr.bf16.mxu0 0
      %1822 = vmatmul.mubr.bf16.gmra.mrb[0].mxu0 %v1682
      %v1823 = vpop.f32.mrb[0].mxu0
      %v1824 = vadd.f32 %v1619, %v1823
      %v1825 = vpop.f32.mrb[0].mxu0
      %v1826 = vpop.f32.mrb[0].mxu0
      %v1827 = vadd.f32 %v1622, %v1826
      %v1828 = vpop.f32.mrb[0].mxu0
      %1829 = vmatprep.mubr.bf16.mxu0 0
      %1830 = vmatmul.mubr.bf16.gmra.mrb[0].mxu0 %v1684
      %v1831 = vpop.f32.mrb[0].mxu0
      %v1832 = vadd.f32 %v1627, %v1831
      %v1833 = vpop.f32.mrb[0].mxu0
      %v1834 = vpop.f32.mrb[0].mxu0
      %v1835 = vadd.f32 %v1630, %v1834
      %v1836 = vpop.f32.mrb[0].mxu0
      %1837 = vmatprep.mubr.bf16.mxu0 0
      %1838 = vmatmul.mubr.bf16.gmra.mrb[0].mxu0 %v1686
      %v1839 = vpop.f32.mrb[0].mxu0
      %v1840 = vadd.f32 %v1635, %v1839
      %v1841 = vpop.f32.mrb[0].mxu0
      %v1842 = vpop.f32.mrb[0].mxu0
      %v1843 = vadd.f32 %v1638, %v1842
      %v1844 = vpop.f32.mrb[0].mxu0
      %1845 = vmatprep.mubr.bf16.mxu0 0
      %1846 = vmatmul.mubr.bf16.gmra.mrb[0].mxu0 %v1688
      %v1847 = vpop.f32.mrb[0].mxu0
      %v1848 = vadd.f32 %v1643, %v1847
      %v1849 = vpop.f32.mrb[0].mxu0
      %v1850 = vpop.f32.mrb[0].mxu0
      %v1851 = vadd.f32 %v1646, %v1850
      %v1852 = vpop.f32.mrb[0].mxu0
      %1853 = vdwg.mxu0
      %s1854 = sadd.s32 %s621, 2
      %s1855 = smul.addr %s1854, 8
      %s1856 = scalar_lea.vmem [#allocation2], %s1855
      %v1857 = vld [vmem:[%s1856] sm:$0xff]
      %v1858 = vld [vmem:[%s1856 + $0x8] sm:$0xff]
      %v1859 = vld [vmem:[%s1856 + $0x10] sm:$0xff]
      %v1860 = vld [vmem:[%s1856 + $0x18] sm:$0xff]
      %v1861 = vld [vmem:[%s1856 + $0x20] sm:$0xff]
      %v1862 = vld [vmem:[%s1856 + $0x28] sm:$0xff]
      %v1863 = vld [vmem:[%s1856 + $0x30] sm:$0xff]
      %v1864 = vld [vmem:[%s1856 + $0x38] sm:$0xff]
      %v1865 = vld [vmem:[%s1856 + $0x40] sm:$0xff]
      %v1866 = vld [vmem:[%s1856 + $0x48] sm:$0xff]
      %v1867 = vld [vmem:[%s1856 + $0x50] sm:$0xff]
      %v1868 = vld [vmem:[%s1856 + $0x58] sm:$0xff]
      %v1869 = vld [vmem:[%s1856 + $0x60] sm:$0xff]
      %v1870 = vld [vmem:[%s1856 + $0x68] sm:$0xff]
      %v1871 = vld [vmem:[%s1856 + $0x70] sm:$0xff]
      %v1872 = vld [vmem:[%s1856 + $0x78] sm:$0xff]
      %v1874 = vshrl.u32 %v1857, 16
      %v1876 = vrot.slane %v1874, 7
      %v1877 = vshll.u32 %v1857, 16
      %v1879 = vor.u32 %v1876, %v1877
      %v1881 = vshrl.u32 %v1858, 16
      %v1883 = vrot.slane %v1881, 7
      %v1884 = vshll.u32 %v1858, 16
      %v1886 = vor.u32 %v1883, %v1884
      %v1888 = vshrl.u32 %v1859, 16
      %v1890 = vrot.slane %v1888, 7
      %v1891 = vshll.u32 %v1859, 16
      %v1893 = vor.u32 %v1890, %v1891
      %v1895 = vshrl.u32 %v1860, 16
      %v1897 = vrot.slane %v1895, 7
      %v1898 = vshll.u32 %v1860, 16
      %v1900 = vor.u32 %v1897, %v1898
      %v1902 = vshrl.u32 %v1861, 16
      %v1904 = vrot.slane %v1902, 7
      %v1905 = vshll.u32 %v1861, 16
      %v1907 = vor.u32 %v1904, %v1905
      %v1909 = vshrl.u32 %v1862, 16
      %v1911 = vrot.slane %v1909, 7
      %v1912 = vshll.u32 %v1862, 16
      %v1914 = vor.u32 %v1911, %v1912
      %v1916 = vshrl.u32 %v1863, 16
      %v1918 = vrot.slane %v1916, 7
      %v1919 = vshll.u32 %v1863, 16
      %v1921 = vor.u32 %v1918, %v1919
      %v1923 = vshrl.u32 %v1864, 16
      %v1925 = vrot.slane %v1923, 7
      %v1926 = vshll.u32 %v1864, 16
      %v1928 = vor.u32 %v1925, %v1926
      %v1930 = vshrl.u32 %v1865, 16
      %v1932 = vrot.slane %v1930, 7
      %v1933 = vshll.u32 %v1865, 16
      %v1935 = vor.u32 %v1932, %v1933
      %v1937 = vshrl.u32 %v1866, 16
      %v1939 = vrot.slane %v1937, 7
      %v1940 = vshll.u32 %v1866, 16
      %v1942 = vor.u32 %v1939, %v1940
      %v1944 = vshrl.u32 %v1867, 16
      %v1946 = vrot.slane %v1944, 7
      %v1947 = vshll.u32 %v1867, 16
      %v1949 = vor.u32 %v1946, %v1947
      %v1951 = vshrl.u32 %v1868, 16
      %v1953 = vrot.slane %v1951, 7
      %v1954 = vshll.u32 %v1868, 16
      %v1956 = vor.u32 %v1953, %v1954
      %v1958 = vshrl.u32 %v1869, 16
      %v1960 = vrot.slane %v1958, 7
      %v1961 = vshll.u32 %v1869, 16
      %v1963 = vor.u32 %v1960, %v1961
      %v1965 = vshrl.u32 %v1870, 16
      %v1967 = vrot.slane %v1965, 7
      %v1968 = vshll.u32 %v1870, 16
      %v1970 = vor.u32 %v1967, %v1968
      %v1972 = vshrl.u32 %v1871, 16
      %v1974 = vrot.slane %v1972, 7
      %v1975 = vshll.u32 %v1871, 16
      %v1977 = vor.u32 %v1974, %v1975
      %v1979 = vshrl.u32 %v1872, 16
      %v1981 = vrot.slane %v1979, 7
      %v1982 = vshll.u32 %v1872, 16
      %v1984 = vor.u32 %v1981, %v1982
      %v2001 = vsel %vm770, 0, %v1879
      %v2002 = vsel %vm770, 0, %v1886
      %v2003 = vsel %vm770, 0, %v1893
      %v2004 = vsel %vm770, 0, %v1900
      %v2005 = vsel %vm770, 0, %v1907
      %v2006 = vsel %vm770, 0, %v1914
      %v2007 = vsel %vm770, 0, %v1921
      %v2008 = vsel %vm770, 0, %v1928
      %v2009 = vsel %vm770, 0, %v1935
      %v2010 = vsel %vm770, 0, %v1942
      %v2011 = vsel %vm770, 0, %v1949
      %v2012 = vsel %vm770, 0, %v1956
      %v2013 = vsel %vm770, 0, %v1963
      %v2014 = vsel %vm770, 0, %v1970
      %v2015 = vsel %vm770, 0, %v1977
      %v2016 = vsel %vm770, 0, %v1984
      %v2017 = vrot.slane %v1877, 1
      %v2018 = vor.u32 %v1874, %v2017
      %v2019 = vrot.slane %v1884, 1
      %v2020 = vor.u32 %v1881, %v2019
      %v2021 = vrot.slane %v1891, 1
      %v2022 = vor.u32 %v1888, %v2021
      %v2023 = vrot.slane %v1898, 1
      %v2024 = vor.u32 %v1895, %v2023
      %v2025 = vrot.slane %v1905, 1
      %v2026 = vor.u32 %v1902, %v2025
      %v2027 = vrot.slane %v1912, 1
      %v2028 = vor.u32 %v1909, %v2027
      %v2029 = vrot.slane %v1919, 1
      %v2030 = vor.u32 %v1916, %v2029
      %v2031 = vrot.slane %v1926, 1
      %v2032 = vor.u32 %v1923, %v2031
      %v2033 = vrot.slane %v1933, 1
      %v2034 = vor.u32 %v1930, %v2033
      %v2035 = vrot.slane %v1940, 1
      %v2036 = vor.u32 %v1937, %v2035
      %v2037 = vrot.slane %v1947, 1
      %v2038 = vor.u32 %v1944, %v2037
      %v2039 = vrot.slane %v1954, 1
      %v2040 = vor.u32 %v1951, %v2039
      %v2041 = vrot.slane %v1961, 1
      %v2042 = vor.u32 %v1958, %v2041
      %v2043 = vrot.slane %v1968, 1
      %v2044 = vor.u32 %v1965, %v2043
      %v2045 = vrot.slane %v1975, 1
      %v2046 = vor.u32 %v1972, %v2045
      %v2047 = vrot.slane %v1982, 1
      %v2048 = vor.u32 %v1979, %v2047
      %v2065 = vsel %vm837, %v2018, 0
      %v2066 = vsel %vm837, %v2020, 0
      %v2067 = vsel %vm837, %v2022, 0
      %v2068 = vsel %vm837, %v2024, 0
      %v2069 = vsel %vm837, %v2026, 0
      %v2070 = vsel %vm837, %v2028, 0
      %v2071 = vsel %vm837, %v2030, 0
      %v2072 = vsel %vm837, %v2032, 0
      %v2073 = vsel %vm837, %v2034, 0
      %v2074 = vsel %vm837, %v2036, 0
      %v2075 = vsel %vm837, %v2038, 0
      %v2076 = vsel %vm837, %v2040, 0
      %v2077 = vsel %vm837, %v2042, 0
      %v2078 = vsel %vm837, %v2044, 0
      %v2079 = vsel %vm837, %v2046, 0
      %v2080 = vsel %vm837, %v2048, 0
      %2097 = vrot.lane.b32.xlu0 %v1857, 8
      %v2098 = vpop.permute.xlu0 %2097
      %2099 = vrot.lane.b32.xlu0 %v1858, 8
      %v2100 = vpop.permute.xlu0 %2099
      %2101 = vrot.lane.b32.xlu0 %v1859, 8
      %v2102 = vpop.permute.xlu0 %2101
      %2103 = vrot.lane.b32.xlu0 %v1860, 8
      %v2104 = vpop.permute.xlu0 %2103
      %2105 = vrot.lane.b32.xlu0 %v1861, 8
      %v2106 = vpop.permute.xlu0 %2105
      %2107 = vrot.lane.b32.xlu0 %v1862, 8
      %v2108 = vpop.permute.xlu0 %2107
      %2109 = vrot.lane.b32.xlu0 %v1863, 8
      %v2110 = vpop.permute.xlu0 %2109
      %2111 = vrot.lane.b32.xlu0 %v1864, 8
      %v2112 = vpop.permute.xlu0 %2111
      %2113 = vrot.lane.b32.xlu0 %v1865, 8
      %v2114 = vpop.permute.xlu0 %2113
      %2115 = vrot.lane.b32.xlu0 %v1866, 8
      %v2116 = vpop.permute.xlu0 %2115
      %2117 = vrot.lane.b32.xlu0 %v1867, 8
      %v2118 = vpop.permute.xlu0 %2117
      %2119 = vrot.lane.b32.xlu0 %v1868, 8
      %v2120 = vpop.permute.xlu0 %2119
      %2121 = vrot.lane.b32.xlu0 %v1869, 8
      %v2122 = vpop.permute.xlu0 %2121
      %2123 = vrot.lane.b32.xlu0 %v1870, 8
      %v2124 = vpop.permute.xlu0 %2123
      %2125 = vrot.lane.b32.xlu0 %v1871, 8
      %v2126 = vpop.permute.xlu0 %2125
      %2127 = vrot.lane.b32.xlu0 %v1872, 8
      %v2128 = vpop.permute.xlu0 %2127
      %2145 = vrot.lane.b32.xlu0 %v2065, 16
      %v2146 = vpop.permute.xlu0 %2145
      %2147 = vrot.lane.b32.xlu0 %v2066, 16
      %v2148 = vpop.permute.xlu0 %2147
      %2149 = vrot.lane.b32.xlu0 %v2067, 16
      %v2150 = vpop.permute.xlu0 %2149
      %2151 = vrot.lane.b32.xlu0 %v2068, 16
      %v2152 = vpop.permute.xlu0 %2151
      %2153 = vrot.lane.b32.xlu0 %v2069, 16
      %v2154 = vpop.permute.xlu0 %2153
      %2155 = vrot.lane.b32.xlu0 %v2070, 16
      %v2156 = vpop.permute.xlu0 %2155
      %2157 = vrot.lane.b32.xlu0 %v2071, 16
      %v2158 = vpop.permute.xlu0 %2157
      %2159 = vrot.lane.b32.xlu0 %v2072, 16
      %v2160 = vpop.permute.xlu0 %2159
      %2161 = vrot.lane.b32.xlu0 %v2073, 16
      %v2162 = vpop.permute.xlu0 %2161
      %2163 = vrot.lane.b32.xlu0 %v2074, 16
      %v2164 = vpop.permute.xlu0 %2163
      %2165 = vrot.lane.b32.xlu0 %v2075, 16
      %v2166 = vpop.permute.xlu0 %2165
      %2167 = vrot.lane.b32.xlu0 %v2076, 16
      %v2168 = vpop.permute.xlu0 %2167
      %2169 = vrot.lane.b32.xlu0 %v2077, 16
      %v2170 = vpop.permute.xlu0 %2169
      %2171 = vrot.lane.b32.xlu0 %v2078, 16
      %v2172 = vpop.permute.xlu0 %2171
      %2173 = vrot.lane.b32.xlu0 %v2079, 16
      %v2174 = vpop.permute.xlu0 %2173
      %2175 = vrot.lane.b32.xlu0 %v2080, 16
      %v2176 = vpop.permute.xlu0 %2175
      %v2179 = vsel %vm950, %v2001, %v2098
      %v2182 = vsel %vm950, %v2002, %v2100
      %v2185 = vsel %vm950, %v2003, %v2102
      %v2188 = vsel %vm950, %v2004, %v2104
      %v2191 = vsel %vm950, %v2005, %v2106
      %v2194 = vsel %vm950, %v2006, %v2108
      %v2197 = vsel %vm950, %v2007, %v2110
      %v2200 = vsel %vm950, %v2008, %v2112
      %v2203 = vsel %vm950, %v2009, %v2114
      %v2206 = vsel %vm950, %v2010, %v2116
      %v2209 = vsel %vm950, %v2011, %v2118
      %v2212 = vsel %vm950, %v2012, %v2120
      %v2215 = vsel %vm950, %v2013, %v2122
      %v2218 = vsel %vm950, %v2014, %v2124
      %v2221 = vsel %vm950, %v2015, %v2126
      %v2224 = vsel %vm950, %v2016, %v2128
      %v2226 = vsel %vm999, %v2179, %v2146
      %v2228 = vsel %vm999, %v2182, %v2148
      %v2230 = vsel %vm999, %v2185, %v2150
      %v2232 = vsel %vm999, %v2188, %v2152
      %v2234 = vsel %vm999, %v2191, %v2154
      %v2236 = vsel %vm999, %v2194, %v2156
      %v2238 = vsel %vm999, %v2197, %v2158
      %v2240 = vsel %vm999, %v2200, %v2160
      %v2242 = vsel %vm999, %v2203, %v2162
      %v2244 = vsel %vm999, %v2206, %v2164
      %v2246 = vsel %vm999, %v2209, %v2166
      %v2248 = vsel %vm999, %v2212, %v2168
      %v2250 = vsel %vm999, %v2215, %v2170
      %v2252 = vsel %vm999, %v2218, %v2172
      %v2254 = vsel %vm999, %v2221, %v2174
      %v2256 = vsel %vm999, %v2224, %v2176
      %s2257 = scalar_lea.vmem %s2, 24
      %v2258 = vld [vmem:[%s2257] sm:$0xf]
      %v2259 = vld [vmem:[%s2257 + $0x4] sm:$0xf]
      %v2260 = vld [vmem:[%s2257 + $0x8] sm:$0xf]
      %v2264 = vunpack.c.l.b16 %v2258
      %v2265 = vunpack.c.l.b16 %v2259
      %v2266 = vunpack.c.l.b16 %v2260
      %v2267 = vpack.c.b16 %v2265, %v2264
      %v2268 = vpack.c.b16 %v2266, %v2266
      %v2270 = vsel %vm1451, %v2226, 0
      %v2272 = vsel %vm1451, %v2228, 0
      %v2274 = vsel %vm1451, %v2230, 0
      %v2276 = vsel %vm1451, %v2232, 0
      %v2278 = vsel %vm1451, %v2234, 0
      %v2280 = vsel %vm1451, %v2236, 0
      %v2282 = vsel %vm1451, %v2238, 0
      %v2284 = vsel %vm1451, %v2240, 0
      %v2286 = vsel %vm1451, %v2242, 0
      %v2288 = vsel %vm1451, %v2244, 0
      %v2290 = vsel %vm1451, %v2246, 0
      %v2292 = vsel %vm1451, %v2248, 0
      %v2294 = vsel %vm1451, %v2250, 0
      %v2296 = vsel %vm1451, %v2252, 0
      %v2298 = vsel %vm1451, %v2254, 0
      %v2300 = vsel %vm1451, %v2256, 0
      %v2303 = vsel %vm1484, %v2268, 0
      %2305 = vmatprep.subr.bf16.mxu0 0
      %2306 = vmatpush1.bf16.msra.mxu0 %v2267
      %2307 = vmatprep.subr.bf16.mxu0 0
      %2308 = vmatpush1.bf16.msra.mxu0 %v2303
      %2309 = vmatprep.subr.bf16.mxu0 0
      %2310 = vmatpush1.bf16.msra.mxu0 0
      %2311 = vmatprep.subr.bf16.mxu0 0
      %2312 = vmatpush1.bf16.msra.mxu0 0
      %2313 = vmatprep.subr.bf16.mxu0 0
      %2314 = vmatpush1.bf16.msra.mxu0 0
      %2315 = vmatprep.subr.bf16.mxu0 0
      %2316 = vmatpush1.bf16.msra.mxu0 0
      %2317 = vmatprep.subr.bf16.mxu0 0
      %2318 = vmatpush1.bf16.msra.mxu0 0
      %2319 = vmatprep.subr.bf16.mxu0 0
      %2320 = vmatpush1.bf16.msra.mxu0 0
      %2321 = vmatprep.subr.bf16.mxu0 0
      %2322 = vmatpush1.bf16.msra.mxu0 0
      %2323 = vmatprep.subr.bf16.mxu0 0
      %2324 = vmatpush1.bf16.msra.mxu0 0
      %2325 = vmatprep.subr.bf16.mxu0 0
      %2326 = vmatpush1.bf16.msra.mxu0 0
      %2327 = vmatprep.subr.bf16.mxu0 0
      %2328 = vmatpush1.bf16.msra.mxu0 0
      %2329 = vmatprep.subr.bf16.mxu0 0
      %2330 = vmatpush1.bf16.msra.mxu0 0
      %2331 = vmatprep.subr.bf16.mxu0 0
      %2332 = vmatpush1.bf16.msra.mxu0 0
      %2333 = vmatprep.subr.bf16.mxu0 0
      %2334 = vmatpush1.bf16.msra.mxu0 0
      %2335 = vmatprep.subr.bf16.mxu0 0
      %2336 = vmatpush1.bf16.msra.mxu0 0
      %2337 = vmatprep.mubr.bf16.mxu0 0
      %2338 = vmatmul.mubr.bf16.gmra.mrb[0].mxu0 %v2270
      %v2339 = vpop.f32.mrb[0].mxu0
      %v2340 = vadd.f32 0.0, %v2339
      %v2341 = vpop.f32.mrb[0].mxu0
      %v2342 = vpop.f32.mrb[0].mxu0
      %v2343 = vadd.f32 0.0, %v2342
      %v2344 = vpop.f32.mrb[0].mxu0
      %2345 = vmatprep.mubr.bf16.mxu0 0
      %2346 = vmatmul.mubr.bf16.gmra.mrb[0].mxu0 %v2272
      %v2347 = vpop.f32.mrb[0].mxu0
      %v2348 = vadd.f32 0.0, %v2347
      %v2349 = vpop.f32.mrb[0].mxu0
      %v2350 = vpop.f32.mrb[0].mxu0
      %v2351 = vadd.f32 0.0, %v2350
      %v2352 = vpop.f32.mrb[0].mxu0
      %2353 = vmatprep.mubr.bf16.mxu0 0
      %2354 = vmatmul.mubr.bf16.gmra.mrb[0].mxu0 %v2274
      %v2355 = vpop.f32.mrb[0].mxu0
      %v2356 = vadd.f32 0.0, %v2355
      %v2357 = vpop.f32.mrb[0].mxu0
      %v2358 = vpop.f32.mrb[0].mxu0
      %v2359 = vadd.f32 0.0, %v2358
      %v2360 = vpop.f32.mrb[0].mxu0
      %2361 = vmatprep.mubr.bf16.mxu0 0
      %2362 = vmatmul.mubr.bf16.gmra.mrb[0].mxu0 %v2276
      %v2363 = vpop.f32.mrb[0].mxu0
      %v2364 = vadd.f32 0.0, %v2363
      %v2365 = vpop.f32.mrb[0].mxu0
      %v2366 = vpop.f32.mrb[0].mxu0
      %v2367 = vadd.f32 0.0, %v2366
      %v2368 = vpop.f32.mrb[0].mxu0
      %2369 = vmatprep.mubr.bf16.mxu0 0
      %2370 = vmatmul.mubr.bf16.gmra.mrb[0].mxu0 %v2278
      %v2371 = vpop.f32.mrb[0].mxu0
      %v2372 = vadd.f32 0.0, %v2371
      %v2373 = vpop.f32.mrb[0].mxu0
      %v2374 = vpop.f32.mrb[0].mxu0
      %v2375 = vadd.f32 0.0, %v2374
      %v2376 = vpop.f32.mrb[0].mxu0
      %2377 = vmatprep.mubr.bf16.mxu0 0
      %2378 = vmatmul.mubr.bf16.gmra.mrb[0].mxu0 %v2280
      %v2379 = vpop.f32.mrb[0].mxu0
      %v2380 = vadd.f32 0.0, %v2379
      %v2381 = vpop.f32.mrb[0].mxu0
      %v2382 = vpop.f32.mrb[0].mxu0
      %v2383 = vadd.f32 0.0, %v2382
      %v2384 = vpop.f32.mrb[0].mxu0
      %2385 = vmatprep.mubr.bf16.mxu0 0
      %2386 = vmatmul.mubr.bf16.gmra.mrb[0].mxu0 %v2282
      %v2387 = vpop.f32.mrb[0].mxu0
      %v2388 = vadd.f32 0.0, %v2387
      %v2389 = vpop.f32.mrb[0].mxu0
      %v2390 = vpop.f32.mrb[0].mxu0
      %v2391 = vadd.f32 0.0, %v2390
      %v2392 = vpop.f32.mrb[0].mxu0
      %2393 = vmatprep.mubr.bf16.mxu0 0
      %2394 = vmatmul.mubr.bf16.gmra.mrb[0].mxu0 %v2284
      %v2395 = vpop.f32.mrb[0].mxu0
      %v2396 = vadd.f32 0.0, %v2395
      %v2397 = vpop.f32.mrb[0].mxu0
      %v2398 = vpop.f32.mrb[0].mxu0
      %v2399 = vadd.f32 0.0, %v2398
      %v2400 = vpop.f32.mrb[0].mxu0
      %2401 = vmatprep.mubr.bf16.mxu0 0
      %2402 = vmatmul.mubr.bf16.gmra.mrb[0].mxu0 %v2286
      %v2403 = vpop.f32.mrb[0].mxu0
      %v2404 = vadd.f32 0.0, %v2403
      %v2405 = vpop.f32.mrb[0].mxu0
      %v2406 = vpop.f32.mrb[0].mxu0
      %v2407 = vadd.f32 0.0, %v2406
      %v2408 = vpop.f32.mrb[0].mxu0
      %2409 = vmatprep.mubr.bf16.mxu0 0
      %2410 = vmatmul.mubr.bf16.gmra.mrb[0].mxu0 %v2288
      %v2411 = vpop.f32.mrb[0].mxu0
      %v2412 = vadd.f32 0.0, %v2411
      %v2413 = vpop.f32.mrb[0].mxu0
      %v2414 = vpop.f32.mrb[0].mxu0
      %v2415 = vadd.f32 0.0, %v2414
      %v2416 = vpop.f32.mrb[0].mxu0
      %2417 = vmatprep.mubr.bf16.mxu0 0
      %2418 = vmatmul.mubr.bf16.gmra.mrb[0].mxu0 %v2290
      %v2419 = vpop.f32.mrb[0].mxu0
      %v2420 = vadd.f32 0.0, %v2419
      %v2421 = vpop.f32.mrb[0].mxu0
      %v2422 = vpop.f32.mrb[0].mxu0
      %v2423 = vadd.f32 0.0, %v2422
      %v2424 = vpop.f32.mrb[0].mxu0
      %2425 = vmatprep.mubr.bf16.mxu0 0
      %2426 = vmatmul.mubr.bf16.gmra.mrb[0].mxu0 %v2292
      %v2427 = vpop.f32.mrb[0].mxu0
      %v2428 = vadd.f32 0.0, %v2427
      %v2429 = vpop.f32.mrb[0].mxu0
      %v2430 = vpop.f32.mrb[0].mxu0
      %v2431 = vadd.f32 0.0, %v2430
      %v2432 = vpop.f32.mrb[0].mxu0
      %2433 = vmatprep.mubr.bf16.mxu0 0
      %2434 = vmatmul.mubr.bf16.gmra.mrb[0].mxu0 %v2294
      %v2435 = vpop.f32.mrb[0].mxu0
      %v2436 = vadd.f32 0.0, %v2435
      %v2437 = vpop.f32.mrb[0].mxu0
      %v2438 = vpop.f32.mrb[0].mxu0
      %v2439 = vadd.f32 0.0, %v2438
      %v2440 = vpop.f32.mrb[0].mxu0
      %2441 = vmatprep.mubr.bf16.mxu0 0
      %2442 = vmatmul.mubr.bf16.gmra.mrb[0].mxu0 %v2296
      %v2443 = vpop.f32.mrb[0].mxu0
      %v2444 = vadd.f32 0.0, %v2443
      %v2445 = vpop.f32.mrb[0].mxu0
      %v2446 = vpop.f32.mrb[0].mxu0
      %v2447 = vadd.f32 0.0, %v2446
      %v2448 = vpop.f32.mrb[0].mxu0
      %2449 = vmatprep.mubr.bf16.mxu0 0
      %2450 = vmatmul.mubr.bf16.gmra.mrb[0].mxu0 %v2298
      %v2451 = vpop.f32.mrb[0].mxu0
      %v2452 = vadd.f32 0.0, %v2451
      %v2453 = vpop.f32.mrb[0].mxu0
      %v2454 = vpop.f32.mrb[0].mxu0
      %v2455 = vadd.f32 0.0, %v2454
      %v2456 = vpop.f32.mrb[0].mxu0
      %2457 = vmatprep.mubr.bf16.mxu0 0
      %2458 = vmatmul.mubr.bf16.gmra.mrb[0].mxu0 %v2300
      %v2459 = vpop.f32.mrb[0].mxu0
      %v2460 = vadd.f32 0.0, %v2459
      %v2461 = vpop.f32.mrb[0].mxu0
      %v2462 = vpop.f32.mrb[0].mxu0
      %v2463 = vadd.f32 0.0, %v2462
      %v2464 = vpop.f32.mrb[0].mxu0
      %2465 = vdwg.mxu0
      %v2466 = vadd.f32 %v1728, %v2340
      %v2467 = vadd.f32 %v1731, %v2343
      %v2468 = vadd.f32 %v1736, %v2348
      %v2469 = vadd.f32 %v1739, %v2351
      %v2470 = vadd.f32 %v1744, %v2356
      %v2471 = vadd.f32 %v1747, %v2359
      %v2472 = vadd.f32 %v1752, %v2364
      %v2473 = vadd.f32 %v1755, %v2367
      %v2474 = vadd.f32 %v1760, %v2372
      %v2475 = vadd.f32 %v1763, %v2375
      %v2476 = vadd.f32 %v1768, %v2380
      %v2477 = vadd.f32 %v1771, %v2383
      %v2478 = vadd.f32 %v1776, %v2388
      %v2479 = vadd.f32 %v1779, %v2391
      %v2480 = vadd.f32 %v1784, %v2396
      %v2481 = vadd.f32 %v1787, %v2399
      %v2482 = vadd.f32 %v1792, %v2404
      %v2483 = vadd.f32 %v1795, %v2407
      %v2484 = vadd.f32 %v1800, %v2412
      %v2485 = vadd.f32 %v1803, %v2415
      %v2486 = vadd.f32 %v1808, %v2420
      %v2487 = vadd.f32 %v1811, %v2423
      %v2488 = vadd.f32 %v1816, %v2428
      %v2489 = vadd.f32 %v1819, %v2431
      %v2490 = vadd.f32 %v1824, %v2436
      %v2491 = vadd.f32 %v1827, %v2439
      %v2492 = vadd.f32 %v1832, %v2444
      %v2493 = vadd.f32 %v1835, %v2447
      %v2494 = vadd.f32 %v1840, %v2452
      %v2495 = vadd.f32 %v1843, %v2455
      %v2496 = vadd.f32 %v1848, %v2460
      %v2497 = vadd.f32 %v1851, %v2463
      %v2498 = vld [vmem:[%s3] sm:$0x1]
      %v2500 = vlaneseq
      %v2501 = vshrl.u32 %v2500, 7
      %v2502 = vsub.s32 0, %v2501
      %v2503 = vrot.slane %v2498, %v2502
      %v2505 = vadd.f32 %v2466, %v2503
      %v2506 = vadd.f32 %v2467, %v2503
      %v2507 = vadd.f32 %v2468, %v2503
      %v2508 = vadd.f32 %v2469, %v2503
      %v2509 = vadd.f32 %v2470, %v2503
      %v2510 = vadd.f32 %v2471, %v2503
      %v2511 = vadd.f32 %v2472, %v2503
      %v2512 = vadd.f32 %v2473, %v2503
      %v2513 = vadd.f32 %v2474, %v2503
      %v2514 = vadd.f32 %v2475, %v2503
      %v2515 = vadd.f32 %v2476, %v2503
      %v2516 = vadd.f32 %v2477, %v2503
      %v2517 = vadd.f32 %v2478, %v2503
      %v2518 = vadd.f32 %v2479, %v2503
      %v2519 = vadd.f32 %v2480, %v2503
      %v2520 = vadd.f32 %v2481, %v2503
      %v2521 = vadd.f32 %v2482, %v2503
      %v2522 = vadd.f32 %v2483, %v2503
      %v2523 = vadd.f32 %v2484, %v2503
      %v2524 = vadd.f32 %v2485, %v2503
      %v2525 = vadd.f32 %v2486, %v2503
      %v2526 = vadd.f32 %v2487, %v2503
      %v2527 = vadd.f32 %v2488, %v2503
      %v2528 = vadd.f32 %v2489, %v2503
      %v2529 = vadd.f32 %v2490, %v2503
      %v2530 = vadd.f32 %v2491, %v2503
      %v2531 = vadd.f32 %v2492, %v2503
      %v2532 = vadd.f32 %v2493, %v2503
      %v2533 = vadd.f32 %v2494, %v2503
      %v2534 = vadd.f32 %v2495, %v2503
      %v2535 = vadd.f32 %v2496, %v2503
      %v2536 = vadd.f32 %v2497, %v2503
      %v2537 = vmax.f32 %v2505, 0.0
      %v2538 = vmax.f32 %v2506, 0.0
      %v2539 = vmax.f32 %v2507, 0.0
      %v2540 = vmax.f32 %v2508, 0.0
      %v2541 = vmax.f32 %v2509, 0.0
      %v2542 = vmax.f32 %v2510, 0.0
      %v2543 = vmax.f32 %v2511, 0.0
      %v2544 = vmax.f32 %v2512, 0.0
      %v2545 = vmax.f32 %v2513, 0.0
      %v2546 = vmax.f32 %v2514, 0.0
      %v2547 = vmax.f32 %v2515, 0.0
      %v2548 = vmax.f32 %v2516, 0.0
      %v2549 = vmax.f32 %v2517, 0.0
      %v2550 = vmax.f32 %v2518, 0.0
      %v2551 = vmax.f32 %v2519, 0.0
      %v2552 = vmax.f32 %v2520, 0.0
      %v2553 = vmax.f32 %v2521, 0.0
      %v2554 = vmax.f32 %v2522, 0.0
      %v2555 = vmax.f32 %v2523, 0.0
      %v2556 = vmax.f32 %v2524, 0.0
      %v2557 = vmax.f32 %v2525, 0.0
      %v2558 = vmax.f32 %v2526, 0.0
      %v2559 = vmax.f32 %v2527, 0.0
      %v2560 = vmax.f32 %v2528, 0.0
      %v2561 = vmax.f32 %v2529, 0.0
      %v2562 = vmax.f32 %v2530, 0.0
      %v2563 = vmax.f32 %v2531, 0.0
      %v2564 = vmax.f32 %v2532, 0.0
      %v2565 = vmax.f32 %v2533, 0.0
      %v2566 = vmax.f32 %v2534, 0.0
      %v2567 = vmax.f32 %v2535, 0.0
      %v2568 = vmax.f32 %v2536, 0.0
      %v2569 = vpack.c.bf16 %v2538, %v2537
      %v2570 = vpack.c.bf16 %v2540, %v2539
      %v2571 = vpack.c.bf16 %v2542, %v2541
      %v2572 = vpack.c.bf16 %v2544, %v2543
      %v2573 = vpack.c.bf16 %v2546, %v2545
      %v2574 = vpack.c.bf16 %v2548, %v2547
      %v2575 = vpack.c.bf16 %v2550, %v2549
      %v2576 = vpack.c.bf16 %v2552, %v2551
      %v2577 = vpack.c.bf16 %v2554, %v2553
      %v2578 = vpack.c.bf16 %v2556, %v2555
      %v2579 = vpack.c.bf16 %v2558, %v2557
      %v2580 = vpack.c.bf16 %v2560, %v2559
      %v2581 = vpack.c.bf16 %v2562, %v2561
      %v2582 = vpack.c.bf16 %v2564, %v2563
      %v2583 = vpack.c.bf16 %v2566, %v2565
      %v2584 = vpack.c.bf16 %v2568, %v2567
      %v2601 = vunpack.c.l.b16 %v2569
      %v2602 = vunpack.c.h.b16 %v2569
      %v2603 = vunpack.c.l.b16 %v2570
      %v2604 = vunpack.c.h.b16 %v2570
      %v2605 = vunpack.c.l.b16 %v2571
      %v2606 = vunpack.c.h.b16 %v2571
      %v2607 = vunpack.c.l.b16 %v2572
      %v2608 = vunpack.c.h.b16 %v2572
      %v2609 = vunpack.c.l.b16 %v2573
      %v2610 = vunpack.c.h.b16 %v2573
      %v2611 = vunpack.c.l.b16 %v2574
      %v2612 = vunpack.c.h.b16 %v2574
      %v2613 = vunpack.c.l.b16 %v2575
      %v2614 = vunpack.c.h.b16 %v2575
      %v2615 = vunpack.c.l.b16 %v2576
      %v2616 = vunpack.c.h.b16 %v2576
      %v2617 = vunpack.c.l.b16 %v2577
      %v2618 = vunpack.c.h.b16 %v2577
      %v2619 = vunpack.c.l.b16 %v2578
      %v2620 = vunpack.c.h.b16 %v2578
      %v2621 = vunpack.c.l.b16 %v2579
      %v2622 = vunpack.c.h.b16 %v2579
      %v2623 = vunpack.c.l.b16 %v2580
      %v2624 = vunpack.c.h.b16 %v2580
      %v2625 = vunpack.c.l.b16 %v2581
      %v2626 = vunpack.c.h.b16 %v2581
      %v2627 = vunpack.c.l.b16 %v2582
      %v2628 = vunpack.c.h.b16 %v2582
      %v2629 = vunpack.c.l.b16 %v2583
      %v2630 = vunpack.c.h.b16 %v2583
      %v2631 = vunpack.c.l.b16 %v2584
      %v2632 = vunpack.c.h.b16 %v2584
      %v2633 = vpack.c.b16 %v2601, %v2601
      %v2634 = vpack.c.b16 %v2602, %v2602
      %v2635 = vpack.c.b16 %v2603, %v2603
      %v2636 = vpack.c.b16 %v2604, %v2604
      %v2637 = vpack.c.b16 %v2605, %v2605
      %v2638 = vpack.c.b16 %v2606, %v2606
      %v2639 = vpack.c.b16 %v2607, %v2607
      %v2640 = vpack.c.b16 %v2608, %v2608
      %v2641 = vpack.c.b16 %v2609, %v2609
      %v2642 = vpack.c.b16 %v2610, %v2610
      %v2643 = vpack.c.b16 %v2611, %v2611
      %v2644 = vpack.c.b16 %v2612, %v2612
      %v2645 = vpack.c.b16 %v2613, %v2613
      %v2646 = vpack.c.b16 %v2614, %v2614
      %v2647 = vpack.c.b16 %v2615, %v2615
      %v2648 = vpack.c.b16 %v2616, %v2616
      %v2649 = vpack.c.b16 %v2617, %v2617
      %v2650 = vpack.c.b16 %v2618, %v2618
      %v2651 = vpack.c.b16 %v2619, %v2619
      %v2652 = vpack.c.b16 %v2620, %v2620
      %v2653 = vpack.c.b16 %v2621, %v2621
      %v2654 = vpack.c.b16 %v2622, %v2622
      %v2655 = vpack.c.b16 %v2623, %v2623
      %v2656 = vpack.c.b16 %v2624, %v2624
      %v2657 = vpack.c.b16 %v2625, %v2625
      %v2658 = vpack.c.b16 %v2626, %v2626
      %v2659 = vpack.c.b16 %v2627, %v2627
      %v2660 = vpack.c.b16 %v2628, %v2628
      %v2661 = vpack.c.b16 %v2629, %v2629
      %v2662 = vpack.c.b16 %v2630, %v2630
      %v2663 = vpack.c.b16 %v2631, %v2631
      %v2664 = vpack.c.b16 %v2632, %v2632
      %vm2697 = vcmask 60416
      %2698 = vst.msk [vmem:[%s280] sm:$0xf] %vm2697, %v2633
      %2699 = vst.msk [vmem:[%s280 + $0x4] sm:$0xf] %vm2697, %v2634
      %2700 = vst.msk [vmem:[%s280 + $0x8] sm:$0xf] %vm2697, %v2635
      %2701 = vst.msk [vmem:[%s280 + $0xc] sm:$0xf] %vm2697, %v2636
      %2702 = vst.msk [vmem:[%s280 + $0x10] sm:$0xf] %vm2697, %v2637
      %2703 = vst.msk [vmem:[%s280 + $0x14] sm:$0xf] %vm2697, %v2638
      %2704 = vst.msk [vmem:[%s280 + $0x18] sm:$0xf] %vm2697, %v2639
      %2705 = vst.msk [vmem:[%s280 + $0x1c] sm:$0xf] %vm2697, %v2640
      %2706 = vst.msk [vmem:[%s280 + $0x20] sm:$0xf] %vm2697, %v2641
      %2707 = vst.msk [vmem:[%s280 + $0x24] sm:$0xf] %vm2697, %v2642
      %2708 = vst.msk [vmem:[%s280 + $0x28] sm:$0xf] %vm2697, %v2643
      %2709 = vst.msk [vmem:[%s280 + $0x2c] sm:$0xf] %vm2697, %v2644
      %2710 = vst.msk [vmem:[%s280 + $0x30] sm:$0xf] %vm2697, %v2645
      %2711 = vst.msk [vmem:[%s280 + $0x34] sm:$0xf] %vm2697, %v2646
      %2712 = vst.msk [vmem:[%s280 + $0x38] sm:$0xf] %vm2697, %v2647
      %2713 = vst.msk [vmem:[%s280 + $0x3c] sm:$0xf] %vm2697, %v2648
      %2714 = vst.msk [vmem:[%s280 + $0x40] sm:$0xf] %vm2697, %v2649
      %2715 = vst.msk [vmem:[%s280 + $0x44] sm:$0xf] %vm2697, %v2650
      %2716 = vst.msk [vmem:[%s280 + $0x48] sm:$0xf] %vm2697, %v2651
      %2717 = vst.msk [vmem:[%s280 + $0x4c] sm:$0xf] %vm2697, %v2652
      %2718 = vst.msk [vmem:[%s280 + $0x50] sm:$0xf] %vm2697, %v2653
      %2719 = vst.msk [vmem:[%s280 + $0x54] sm:$0xf] %vm2697, %v2654
      %2720 = vst.msk [vmem:[%s280 + $0x58] sm:$0xf] %vm2697, %v2655
      %2721 = vst.msk [vmem:[%s280 + $0x5c] sm:$0xf] %vm2697, %v2656
      %2722 = vst.msk [vmem:[%s280 + $0x60] sm:$0xf] %vm2697, %v2657
      %2723 = vst.msk [vmem:[%s280 + $0x64] sm:$0xf] %vm2697, %v2658
      %2724 = vst.msk [vmem:[%s280 + $0x68] sm:$0xf] %vm2697, %v2659
      %2725 = vst.msk [vmem:[%s280 + $0x6c] sm:$0xf] %vm2697, %v2660
      %2726 = vst.msk [vmem:[%s280 + $0x70] sm:$0xf] %vm2697, %v2661
      %2727 = vst.msk [vmem:[%s280 + $0x74] sm:$0xf] %vm2697, %v2662
      %2728 = vst.msk [vmem:[%s280 + $0x78] sm:$0xf] %vm2697, %v2663
      %2729 = vst.msk [vmem:[%s280 + $0x7c] sm:$0xf] %vm2697, %v2664
      %v2730 = vsel %vm950, %v2537, 0.0
      %v2731 = vsel %vm950, %v2538, 0.0
      %v2732 = vadd.f32 %v2730, %v2731
      %v2733 = vsel %vm950, %v2539, 0.0
      %v2734 = vadd.f32 %v2732, %v2733
      %v2735 = vsel %vm950, %v2540, 0.0
      %v2736 = vadd.f32 %v2734, %v2735
      %v2737 = vsel %vm950, %v2541, 0.0
      %v2738 = vadd.f32 %v2736, %v2737
      %v2739 = vsel %vm950, %v2542, 0.0
      %v2740 = vadd.f32 %v2738, %v2739
      %v2741 = vsel %vm950, %v2543, 0.0
      %v2742 = vadd.f32 %v2740, %v2741
      %v2743 = vsel %vm950, %v2544, 0.0
      %v2744 = vadd.f32 %v2742, %v2743
      %v2745 = vsel %vm950, %v2545, 0.0
      %v2746 = vadd.f32 %v2744, %v2745
      %v2747 = vsel %vm950, %v2546, 0.0
      %v2748 = vadd.f32 %v2746, %v2747
      %v2749 = vsel %vm950, %v2547, 0.0
      %v2750 = vadd.f32 %v2748, %v2749
      %v2751 = vsel %vm950, %v2548, 0.0
      %v2752 = vadd.f32 %v2750, %v2751
      %v2753 = vsel %vm950, %v2549, 0.0
      %v2754 = vadd.f32 %v2752, %v2753
      %v2755 = vsel %vm950, %v2550, 0.0
      %v2756 = vadd.f32 %v2754, %v2755
      %v2757 = vsel %vm950, %v2551, 0.0
      %v2758 = vadd.f32 %v2756, %v2757
      %v2759 = vsel %vm950, %v2552, 0.0
      %v2760 = vadd.f32 %v2758, %v2759
      %v2761 = vsel %vm950, %v2553, 0.0
      %v2762 = vadd.f32 %v2760, %v2761
      %v2763 = vsel %vm950, %v2554, 0.0
      %v2764 = vadd.f32 %v2762, %v2763
      %v2765 = vsel %vm950, %v2555, 0.0
      %v2766 = vadd.f32 %v2764, %v2765
      %v2767 = vsel %vm950, %v2556, 0.0
      %v2768 = vadd.f32 %v2766, %v2767
      %v2769 = vsel %vm950, %v2557, 0.0
      %v2770 = vadd.f32 %v2768, %v2769
      %v2771 = vsel %vm950, %v2558, 0.0
      %v2772 = vadd.f32 %v2770, %v2771
      %v2773 = vsel %vm950, %v2559, 0.0
      %v2774 = vadd.f32 %v2772, %v2773
      %v2775 = vsel %vm950, %v2560, 0.0
      %v2776 = vadd.f32 %v2774, %v2775
      %v2777 = vsel %vm950, %v2561, 0.0
      %v2778 = vadd.f32 %v2776, %v2777
      %v2779 = vsel %vm950, %v2562, 0.0
      %v2780 = vadd.f32 %v2778, %v2779
      %v2781 = vsel %vm950, %v2563, 0.0
      %v2782 = vadd.f32 %v2780, %v2781
      %v2783 = vsel %vm950, %v2564, 0.0
      %v2784 = vadd.f32 %v2782, %v2783
      %v2785 = vsel %vm950, %v2565, 0.0
      %v2786 = vadd.f32 %v2784, %v2785
      %v2787 = vsel %vm950, %v2566, 0.0
      %v2788 = vadd.f32 %v2786, %v2787
      %v2789 = vsel %vm950, %v2567, 0.0
      %v2790 = vadd.f32 %v2788, %v2789
      %v2791 = vsel %vm950, %v2568, 0.0
      %v2792 = vadd.f32 %v2790, %v2791
      %v2793 = vrot.slane %v2792, 4
      %v2794 = vadd.f32 %v2792, %v2793
      %v2795 = vrot.slane %v2794, 2
      %v2796 = vadd.f32 %v2794, %v2795
      %v2797 = vrot.slane %v2796, 1
      %v2798 = vadd.f32 %v2796, %v2797
      %v2799 = vmul.f32 %v2798, 0.00390625
      %v2800 = vsub.f32 %v2537, %v2799
      %v2801 = vsub.f32 %v2538, %v2799
      %v2802 = vsub.f32 %v2539, %v2799
      %v2803 = vsub.f32 %v2540, %v2799
      %v2804 = vsub.f32 %v2541, %v2799
      %v2805 = vsub.f32 %v2542, %v2799
      %v2806 = vsub.f32 %v2543, %v2799
      %v2807 = vsub.f32 %v2544, %v2799
      %v2808 = vsub.f32 %v2545, %v2799
      %v2809 = vsub.f32 %v2546, %v2799
      %v2810 = vsub.f32 %v2547, %v2799
      %v2811 = vsub.f32 %v2548, %v2799
      %v2812 = vsub.f32 %v2549, %v2799
      %v2813 = vsub.f32 %v2550, %v2799
      %v2814 = vsub.f32 %v2551, %v2799
      %v2815 = vsub.f32 %v2552, %v2799
      %v2816 = vsub.f32 %v2553, %v2799
      %v2817 = vsub.f32 %v2554, %v2799
      %v2818 = vsub.f32 %v2555, %v2799
      %v2819 = vsub.f32 %v2556, %v2799
      %v2820 = vsub.f32 %v2557, %v2799
      %v2821 = vsub.f32 %v2558, %v2799
      %v2822 = vsub.f32 %v2559, %v2799
      %v2823 = vsub.f32 %v2560, %v2799
      %v2824 = vsub.f32 %v2561, %v2799
      %v2825 = vsub.f32 %v2562, %v2799
      %v2826 = vsub.f32 %v2563, %v2799
      %v2827 = vsub.f32 %v2564, %v2799
      %v2828 = vsub.f32 %v2565, %v2799
      %v2829 = vsub.f32 %v2566, %v2799
      %v2830 = vsub.f32 %v2567, %v2799
      %v2831 = vsub.f32 %v2568, %v2799
      %v2832 = vmul.f32 %v2800, %v2800
      %v2833 = vmul.f32 %v2801, %v2801
      %v2834 = vmul.f32 %v2802, %v2802
      %v2835 = vmul.f32 %v2803, %v2803
      %v2836 = vmul.f32 %v2804, %v2804
      %v2837 = vmul.f32 %v2805, %v2805
      %v2838 = vmul.f32 %v2806, %v2806
      %v2839 = vmul.f32 %v2807, %v2807
      %v2840 = vmul.f32 %v2808, %v2808
      %v2841 = vmul.f32 %v2809, %v2809
      %v2842 = vmul.f32 %v2810, %v2810
      %v2843 = vmul.f32 %v2811, %v2811
      %v2844 = vmul.f32 %v2812, %v2812
      %v2845 = vmul.f32 %v2813, %v2813
      %v2846 = vmul.f32 %v2814, %v2814
      %v2847 = vmul.f32 %v2815, %v2815
      %v2848 = vmul.f32 %v2816, %v2816
      %v2849 = vmul.f32 %v2817, %v2817
      %v2850 = vmul.f32 %v2818, %v2818
      %v2851 = vmul.f32 %v2819, %v2819
      %v2852 = vmul.f32 %v2820, %v2820
      %v2853 = vmul.f32 %v2821, %v2821
      %v2854 = vmul.f32 %v2822, %v2822
      %v2855 = vmul.f32 %v2823, %v2823
      %v2856 = vmul.f32 %v2824, %v2824
      %v2857 = vmul.f32 %v2825, %v2825
      %v2858 = vmul.f32 %v2826, %v2826
      %v2859 = vmul.f32 %v2827, %v2827
      %v2860 = vmul.f32 %v2828, %v2828
      %v2861 = vmul.f32 %v2829, %v2829
      %v2862 = vmul.f32 %v2830, %v2830
      %v2863 = vmul.f32 %v2831, %v2831
      %v2864 = vsel %vm950, %v2832, 0.0
      %v2865 = vsel %vm950, %v2833, 0.0
      %v2866 = vadd.f32 %v2864, %v2865
      %v2867 = vsel %vm950, %v2834, 0.0
      %v2868 = vadd.f32 %v2866, %v2867
      %v2869 = vsel %vm950, %v2835, 0.0
      %v2870 = vadd.f32 %v2868, %v2869
      %v2871 = vsel %vm950, %v2836, 0.0
      %v2872 = vadd.f32 %v2870, %v2871
      %v2873 = vsel %vm950, %v2837, 0.0
      %v2874 = vadd.f32 %v2872, %v2873
      %v2875 = vsel %vm950, %v2838, 0.0
      %v2876 = vadd.f32 %v2874, %v2875
      %v2877 = vsel %vm950, %v2839, 0.0
      %v2878 = vadd.f32 %v2876, %v2877
      %v2879 = vsel %vm950, %v2840, 0.0
      %v2880 = vadd.f32 %v2878, %v2879
      %v2881 = vsel %vm950, %v2841, 0.0
      %v2882 = vadd.f32 %v2880, %v2881
      %v2883 = vsel %vm950, %v2842, 0.0
      %v2884 = vadd.f32 %v2882, %v2883
      %v2885 = vsel %vm950, %v2843, 0.0
      %v2886 = vadd.f32 %v2884, %v2885
      %v2887 = vsel %vm950, %v2844, 0.0
      %v2888 = vadd.f32 %v2886, %v2887
      %v2889 = vsel %vm950, %v2845, 0.0
      %v2890 = vadd.f32 %v2888, %v2889
      %v2891 = vsel %vm950, %v2846, 0.0
      %v2892 = vadd.f32 %v2890, %v2891
      %v2893 = vsel %vm950, %v2847, 0.0
      %v2894 = vadd.f32 %v2892, %v2893
      %v2895 = vsel %vm950, %v2848, 0.0
      %v2896 = vadd.f32 %v2894, %v2895
      %v2897 = vsel %vm950, %v2849, 0.0
      %v2898 = vadd.f32 %v2896, %v2897
      %v2899 = vsel %vm950, %v2850, 0.0
      %v2900 = vadd.f32 %v2898, %v2899
      %v2901 = vsel %vm950, %v2851, 0.0
      %v2902 = vadd.f32 %v2900, %v2901
      %v2903 = vsel %vm950, %v2852, 0.0
      %v2904 = vadd.f32 %v2902, %v2903
      %v2905 = vsel %vm950, %v2853, 0.0
      %v2906 = vadd.f32 %v2904, %v2905
      %v2907 = vsel %vm950, %v2854, 0.0
      %v2908 = vadd.f32 %v2906, %v2907
      %v2909 = vsel %vm950, %v2855, 0.0
      %v2910 = vadd.f32 %v2908, %v2909
      %v2911 = vsel %vm950, %v2856, 0.0
      %v2912 = vadd.f32 %v2910, %v2911
      %v2913 = vsel %vm950, %v2857, 0.0
      %v2914 = vadd.f32 %v2912, %v2913
      %v2915 = vsel %vm950, %v2858, 0.0
      %v2916 = vadd.f32 %v2914, %v2915
      %v2917 = vsel %vm950, %v2859, 0.0
      %v2918 = vadd.f32 %v2916, %v2917
      %v2919 = vsel %vm950, %v2860, 0.0
      %v2920 = vadd.f32 %v2918, %v2919
      %v2921 = vsel %vm950, %v2861, 0.0
      %v2922 = vadd.f32 %v2920, %v2921
      %v2923 = vsel %vm950, %v2862, 0.0
      %v2924 = vadd.f32 %v2922, %v2923
      %v2925 = vsel %vm950, %v2863, 0.0
      %v2926 = vadd.f32 %v2924, %v2925
      %v2927 = vrot.slane %v2926, 4
      %v2928 = vadd.f32 %v2926, %v2927
      %v2929 = vrot.slane %v2928, 2
      %v2930 = vadd.f32 %v2928, %v2929
      %v2931 = vrot.slane %v2930, 1
      %v2932 = vadd.f32 %v2930, %v2931
      %vm2933 = vcmask 57344
      %2934 = vst.msk [vmem:[%s288] sm:$0x1] %vm2933, %v2799
      %2935 = vst.msk [vmem:[%s288 + $0x1] sm:$0x1] %vm2933, %v2932
      %s2936 = smul.u32 16, %s22
      %p2937 = scmp.lt.s32.totalorder %s21, 1
      %s2938 = scalar_select %p2937, %s21, 1
      %p2939 = scmp.lt.s32.totalorder %s2936, 15
      %s2940 = scalar_select %p2939, %s2936, 15
      %s2941 = smul.addr %s2940, 2
      %s2942 = smul.addr %s2938, 32
      %s2943 = sadd.s32 %s2941, %s2942
      %s2944 = smul.addr %s2943, 4
      %s2945 = scalar_lea.vmem %s4, %s2944
      %p2946 = scmp.lt.s32.totalorder %s21, 1
      %s2947 = scalar_select %p2946, %s21, 1
      %p2948 = scmp.lt.s32.totalorder %s22, 0
      %s2949 = scalar_select %p2948, %s22, 0
      %s2950 = sadd.s32 %s2949, %s2947
      %s2951 = smul.addr %s2950, 2
      %s2952 = scalar_lea.vmem %s5, %s2951
      // Predicated region
      $region41: #{_lambda_.2} parent=35 // pred_check
        %p2953 = pneg %p143
      $region42: #{_lambda_.2} parent=35 // pred_check_branch
        %2955 = sbr.rel (%p2953) target = $region44
      $region43: #{_lambda_.2} parent=35 // pred_region
        %s2956 = smul.u32 16, %s22
      $region44: #{_lambda_.2} parent=35 // pred_fallthru
        _
      // Predicated region
      $region45: #{_lambda_.2} parent=35 // pred_check
        %p2957 = pneg %p171
      $region46: #{_lambda_.2} parent=35 // pred_check_branch
        %2959 = sbr.rel (%p2957) target = $region48
      $region47: #{_lambda_.2} parent=35 // pred_region
        _
      $region48: #{_lambda_.2} parent=35 // pred_fallthru
        _
    $region36: #{_lambda_.2} parent=5 // pred_fallthru
      _
    %p2960 = scmp.le.s32.totalorder 2, %s12
    // Predicated region
    $region49: #{_lambda_.2} parent=5 // pred_check
      %p2961 = pneg %p2960
    $region50: #{_lambda_.2} parent=5 // pred_check_branch
      %2963 = sbr.rel (%p2961) target = $region52
    $region51: #{_lambda_.2} parent=5 // pred_region
      %s2964 = ssub.s32 %s12, 2
      // Predicated region
      $region53: #{_lambda_.2} parent=51 // pred_check
        %p2965 = pneg %p149
      $region54: #{_lambda_.2} parent=51 // pred_check_branch
        %2967 = sbr.rel (%p2965) target = $region56
      $region55: #{_lambda_.2} parent=51 // pred_region
        %s2968 = smul.u32 16, %s24
        %p2969 = scmp.lt.s32.totalorder %s23, 1
        %s2970 = scalar_select %p2969, %s23, 1
        %p2971 = scmp.lt.s32.totalorder %s2968, 15
        %s2972 = scalar_select %p2971, %s2968, 15
        %s2973 = smul.addr %s2972, 2
        %s2974 = smul.addr %s2970, 32
        %s2975 = sadd.s32 %s2973, %s2974
        %s2976 = smul.addr %s2975, 4
        %s2977 = scalar_lea.vmem %s4, %s2976
      $region56: #{_lambda_.2} parent=51 // pred_fallthru
        _
      // Predicated region
      $region57: #{_lambda_.2} parent=51 // pred_check
        %p2978 = pneg %p177
      $region58: #{_lambda_.2} parent=51 // pred_check_branch
        %2980 = sbr.rel (%p2978) target = $region60
      $region59: #{_lambda_.2} parent=51 // pred_region
        %p2981 = scmp.lt.s32.totalorder %s23, 1
        %s2982 = scalar_select %p2981, %s23, 1
        %p2983 = scmp.lt.s32.totalorder %s24, 0
        %s2984 = scalar_select %p2983, %s24, 0
        %s2985 = sadd.s32 %s2984, %s2982
        %s2986 = smul.addr %s2985, 2
        %s2987 = scalar_lea.vmem %s5, %s2986
      $region60: #{_lambda_.2} parent=51 // pred_fallthru
        _
    $region52: #{_lambda_.2} parent=5 // pred_fallthru
      _
  $region6: #{_lambda_.2} parent=0 // loop_footer
    %s16 = sadd.s32 1, %s12
  $region7: #{_lambda_.2} parent=0 // loop_footer_branch
    %11 = sbr.rel target = $region3
  $region8: #{_lambda_.2} parent=0 // loop_exit
    _

</llo_original>
